<compile_context>
chip_gen: v7x
topology: tpu7x:2x2x1
jax: 0.10.0
libtpu: 0.0.40
codegen_flags: <defaults>
</compile_context>

<pallas_src>
import functools
import math

import jax
import jax.numpy as jnp
from jax.experimental import pallas as pl
from jax.experimental.pallas import tpu as pltpu

EPS = 1e-5
# Conservative per-step VMEM budget: v7x has 64 MiB per TensorCore (vs 128 MiB
# on v5e/v6e); stay comfortably under the default scoped limits.
_VMEM_BUDGET = 20 << 20


def _round_up(x, m):
    return (x + m - 1) // m * m


def _shift_offsets(tile_size):
    # Same ordering as the PyTorch forward: (0,0), H-shifts, W-shifts, HW-shifts.
    offs = [(0, 0)]
    offs += [(i, 0) for i in range(1, tile_size)]
    offs += [(0, i) for i in range(1, tile_size)]
    offs += [(j, k) for j in range(1, tile_size) for k in range(1, tile_size)]
    return tuple(offs)


def _bn_fold(gamma, beta, mean, var, eps=EPS):
    scale = gamma / jnp.sqrt(var + eps)
    bias = beta - mean * scale
    return scale, bias


def _sl(start, num, step):
    if step == 1:
        return slice(start, start + num)
    return slice(start, start + (num - 1) * step + 1, step)


# ----------------------------- Pallas kernel --------------------------------
def _tlconv_kernel(a_ref, hal_ref, rm_ref, cm_ref, w1_ref, b1_ref, w2_ref,
                   b2_ref, o_ref, hbuf,
                   *, offsets, th, wo_p, stride, ths, tc, use_mask):
    """Fused per-row-block hot path.

    a_ref   : (1, TH*stride, WsP, F)  bf16  main im2col row block
    hal_ref : (1, hB, WsP, F)         bf16  halo rows (start of next row block)
    rm_ref  : (1, TH, 1, F)           bf16  row boundary mask (shift-then-pad)
    cm_ref  : (1, WoP, F)             bf16  col boundary mask
    w1_ref  : (S, F, tc)              bf16  per-shift conv weights (BN1 folded)
    b1_ref  : (S, 1, tc)              f32   per-shift BN1 bias
    w2_ref  : (S*tc, OPAD)            bf16  fused 1x1 trans-conv weights (BN2)
    b2_ref  : (1, OPAD)               f32   BN2 bias
    o_ref   : (1, 1, TH*WoP, OPAD)    bf16
    hbuf    : (TH*WoP, S*tc)          bf16  scratch for the fused 2nd matmul
    """
    rows = th * wo_p
    mask = rm_ref[0] * cm_ref[...] if use_mask else None  # (th, wo_p, F)

    for s, (dy, dx) in enumerate(offsets):
        # Split the shifted row window between the main block and the halo.
        n_a = sum(1 for t in range(th) if dy + t * stride < ths)
        parts = [a_ref[0, _sl(dy, n_a, stride), _sl(dx, wo_p, stride), :]]
        if n_a < th:
            start_b = dy + n_a * stride - ths
            parts.append(hal_ref[0, _sl(start_b, th - n_a, stride),
                                 _sl(dx, wo_p, stride), :])
        lhs = parts[0] if len(parts) == 1 else jnp.concatenate(parts, axis=0)
        if use_mask:
            lhs = lhs * mask                       # shift-then-pad semantics
        lhs = lhs.reshape(rows, lhs.shape[-1])     # (rows, F)

        h = jnp.dot(lhs, w1_ref[s], preferred_element_type=jnp.float32)
        h = jnp.maximum(h + b1_ref[s], 0.0).astype(jnp.bfloat16)  # BN1 + ReLU
        hbuf[:, s * tc:(s + 1) * tc] = h

    # Single fused 1x1 trans-conv matmul over all S*tc channels.
    y = jnp.dot(hbuf[...], w2_ref[...], preferred_element_type=jnp.float32)
    y = jnp.maximum(y + b2_ref[...], 0.0)                          # BN2 + ReLU
    o_ref[0, 0] = y.astype(o_ref.dtype)


# ------------------------------ public wrapper -------------------------------
def tlconv_forward(x_nchw, params, *, kernel_size, stride=1, padding=0,
                   dilation=1, tile_size=2):
    N, C, H, W = x_nchw.shape
    K, d, p, s = kernel_size, dilation, padding, stride
    S = tile_size * tile_size
    e = tile_size - 1
    tc = params['conv_w'].shape[1]
    Op = params['trans_w'].shape[0]
    F = K * K * C

    Ho = (H + 2 * p - d * (K - 1) - 1) // s + 1
    Wo = (W + 2 * p - d * (K - 1) - 1) // s + 1

    # ---- single deduplicated unit-stride im2col (bf16) ----------------------
    x = jnp.transpose(x_nchw, (0, 2, 3, 1)).astype(jnp.bfloat16)      # NHWC
    xp = jnp.pad(x, ((0, 0), (p, p + e), (p, p + e), (0, 0)))         # super-pad
    Hs = H + 2 * p + e - d * (K - 1)
    Ws = W + 2 * p + e - d * (K - 1)
    cols = jnp.concatenate(
        [xp[:, kh * d:kh * d + Hs, kw * d:kw * d + Ws, :]
         for kh in range(K) for kw in range(K)], axis=-1)             # (N,Hs,Ws,F)

    # pad the W axis so every shifted window of WoP columns is in-bounds
    WoP = _round_up(Wo, 16)                      # sublane-friendly merge reshape
    WsP = _round_up(max(Ws, e + (WoP - 1) * s + 1), 8)
    cols = jnp.pad(cols, ((0, 0), (0, 0), (0, WsP - Ws), (0, 0)))

    # ---- output lane padding: keep it near Op (don't blow up HBM writeback) -
    OPAD = _round_up(Op, 128) if Op > 64 else _round_up(Op, 8)

    # ---- row blocking (main block + small halo block, no jnp.take) ----------
    hB = _round_up(max(e, 1), 8)                 # halo rows (block-aligned)
    align = hB // math.gcd(s, hB)                # TH*stride must divide by hB

    def _vmem_est(th):
        ths_ = th * s
        rows = th * WoP
        a_blk = ths_ * WsP * F * 2
        h_blk = hB * WsP * F * 2
        m_blk = (th * F + WoP * F) * 2
        o_blk = rows * OPAD * 2
        wts = S * F * tc * 2 + S * tc * 4 + S * tc * OPAD * 2 + OPAD * 4
        scratch = rows * max(S * tc, 128) * 2            # lane-padding worst case
        live = rows * F * 2 * 2 + rows * OPAD * 4 + rows * max(tc, 128) * 4
        return 2 * (a_blk + h_blk + m_blk + o_blk + wts) + scratch + live

    TH = max(_round_up(Ho, align), align)
    while TH > align and _vmem_est(TH) > _VMEM_BUDGET:
        TH = max(_round_up((TH + 1) // 2, align), align)
    NB = -(-Ho // TH)
    THs = TH * s
    ROWS = TH * WoP
    ratio = THs // hB
    vmem_limit = int(min(max(_vmem_est(TH) * 2, 32 << 20), 48 << 20))

    HsTot = max(NB * THs + hB, Hs)
    if HsTot > Hs:
        cols = jnp.pad(cols, ((0, 0), (0, HsTot - Hs), (0, 0), (0, 0)))

    # ---- shift-then-pad boundary masks (shift-independent) ------------------
    use_mask = (p > 0) and (e > 0)
    khd = (jnp.arange(F) // (K * C)) * d
    kwd = ((jnp.arange(F) // C) % K) * d
    oy = jnp.arange(NB * TH)
    row_ok = (oy[:, None] * s + khd[None, :]) >= p                   # (NB*TH, F)
    rowmask = row_ok.astype(jnp.bfloat16).reshape(NB, TH, 1, F)
    ox = jnp.arange(WoP)
    col_ok = (ox[:, None] * s + kwd[None, :]) >= p                   # (WoP, F)
    colmask = col_ok.astype(jnp.bfloat16).reshape(1, WoP, F)

    # ---- weights with eval-mode BatchNorm folded in -------------------------
    sc1, bi1 = _bn_fold(params['conv_bn_g'], params['conv_bn_b'],
                        params['conv_bn_m'], params['conv_bn_v'])     # (S, tc)
    w1 = jnp.transpose(params['conv_w'], (0, 3, 4, 2, 1)).reshape(S, F, tc)
    w1 = (w1 * sc1[:, None, :]).astype(jnp.bfloat16)
    b1 = bi1.reshape(S, 1, tc).astype(jnp.float32)

    sc2, bi2 = _bn_fold(params['trans_bn_g'], params['trans_bn_b'],
                        params['trans_bn_m'], params['trans_bn_v'])   # (Op,)
    w2 = params['trans_w'].reshape(Op, S * tc).T * sc2[None, :]       # (S*tc, Op)
    w2 = jnp.pad(w2, ((0, 0), (0, OPAD - Op))).astype(jnp.bfloat16)   # (S*tc,OPAD)
    b2 = jnp.pad(bi2, (0, OPAD - Op)).reshape(1, OPAD).astype(jnp.float32)

    # ---- Pallas hot path -----------------------------------------------------
    kernel = functools.partial(
        _tlconv_kernel, offsets=_shift_offsets(tile_size),
        th=TH, wo_p=WoP, stride=s, ths=THs, tc=tc, use_mask=use_mask)

    out = pl.pallas_call(
        kernel,
        out_shape=jax.ShapeDtypeStruct((N, NB, ROWS, OPAD), jnp.bfloat16),
        grid=(N, NB),
        in_specs=[
            pl.BlockSpec((1, THs, WsP, F), lambda n, b: (n, b, 0, 0)),
            pl.BlockSpec((1, hB, WsP, F),
                         lambda n, b, r=ratio: (n, (b + 1) * r, 0, 0)),
            pl.BlockSpec((1, TH, 1, F), lambda n, b: (b, 0, 0, 0)),
            pl.BlockSpec((1, WoP, F), lambda n, b: (0, 0, 0)),
            pl.BlockSpec((S, F, tc), lambda n, b: (0, 0, 0)),
            pl.BlockSpec((S, 1, tc), lambda n, b: (0, 0, 0)),
            pl.BlockSpec((S * tc, OPAD), lambda n, b: (0, 0)),
            pl.BlockSpec((1, OPAD), lambda n, b: (0, 0)),
        ],
        out_specs=pl.BlockSpec((1, 1, ROWS, OPAD), lambda n, b: (n, b, 0, 0)),
        scratch_shapes=[pltpu.VMEM((ROWS, S * tc), jnp.bfloat16)],
        compiler_params=pltpu.CompilerParams(
            dimension_semantics=("parallel", "parallel"),
            vmem_limit_bytes=vmem_limit),
    )(cols, cols, rowmask, colmask, w1, b1, w2, b2)

    # undo the padding / blocking, back to NCHW (f32 for the consumer)
    out = out.reshape(N, NB, TH, WoP, OPAD)[:, :, :, :Wo, :Op]
    out = out.reshape(N, NB * TH, Wo, Op)[:, :Ho]
    return jnp.transpose(out, (0, 3, 1, 2)).astype(jnp.float32)


# --------------------------- deterministic params ----------------------------
def init_params(key, in_planes, out_planes, kernel_size, tile_size):
    tile_chn = max(in_planes // (tile_size * tile_size), 1)
    S = tile_size * tile_size
    ks = jax.random.split(key, 10)
    p = {}
    p['conv_w'] = 0.1 * jax.random.normal(
        ks[0], (S, tile_chn, in_planes, kernel_size, kernel_size), jnp.float32)
    p['conv_bn_g'] = jax.random.uniform(ks[1], (S, tile_chn), jnp.float32, 0.5, 1.5)
    p['conv_bn_b'] = 0.1 * jax.random.normal(ks[2], (S, tile_chn), jnp.float32)
    p['conv_bn_m'] = 0.1 * jax.random.normal(ks[3], (S, tile_chn), jnp.float32)
    p['conv_bn_v'] = jax.random.uniform(ks[4], (S, tile_chn), jnp.float32, 0.5, 1.5)
    p['trans_w'] = 0.1 * jax.random.normal(
        ks[5], (out_planes, S * tile_chn, 1, 1), jnp.float32)
    p['trans_bn_g'] = jax.random.uniform(ks[6], (out_planes,), jnp.float32, 0.5, 1.5)
    p['trans_bn_b'] = 0.1 * jax.random.normal(ks[7], (out_planes,), jnp.float32)
    p['trans_bn_m'] = 0.1 * jax.random.normal(ks[8], (out_planes,), jnp.float32)
    p['trans_bn_v'] = jax.random.uniform(ks[9], (out_planes,), jnp.float32, 0.5, 1.5)
    return p


# ------------------------------ pure-JAX reference ---------------------------
def tlconv_reference(x, params, *, kernel_size, stride=1, padding=0,
                     dilation=1, tile_size=2):
    def bn(y, g, b, m, v):
        return (y - m[None, :, None, None]) / jnp.sqrt(v[None, :, None, None] + EPS) \
               * g[None, :, None, None] + b[None, :, None, None]

    outs = []
    for s, (dy, dx) in enumerate(_shift_offsets(tile_size)):
        xs = jnp.pad(x[:, :, dy:, dx:], ((0, 0), (0, 0), (0, dy), (0, dx)))
        y = jax.lax.conv_general_dilated(
            xs, params['conv_w'][s], (stride, stride),
            [(padding, padding), (padding, padding)],
            rhs_dilation=(dilation, dilation),
            dimension_numbers=('NCHW', 'OIHW', 'NCHW'))
        y = bn(y, params['conv_bn_g'][s], params['conv_bn_b'][s],
               params['conv_bn_m'][s], params['conv_bn_v'][s])
        outs.append(jnp.maximum(y, 0.0))
    feats = jnp.concatenate(outs, axis=1)
    y = jax.lax.conv_general_dilated(
        feats, params['trans_w'], (1, 1), [(0, 0), (0, 0)],
        dimension_numbers=('NCHW', 'OIHW', 'NCHW'))
    y = bn(y, params['trans_bn_g'], params['trans_bn_b'],
           params['trans_bn_m'], params['trans_bn_v'])
    return jnp.maximum(y, 0.0)


# ----------------------------------- main ------------------------------------
if __name__ == "__main__":
    key = jax.random.PRNGKey(0)
    kx, kp = jax.random.split(key)

    # small shapes consistent with the module
    N, C, H, W = 2, 4, 16, 16
    out_planes, K, tile_size = 8, 3, 2
    stride, padding, dilation = 1, 1, 1

    x = jax.random.normal(kx, (N, C, H, W), jnp.float32)
    params = init_params(kp, C, out_planes, K, tile_size)

    fwd = jax.jit(tlconv_forward,
                  static_argnames=("kernel_size", "stride", "padding",
                                   "dilation", "tile_size"))
    y = fwd(x, params, kernel_size=K, stride=stride, padding=padding,
            dilation=dilation, tile_size=tile_size)
    y = jax.block_until_ready(y)

    y_ref = tlconv_reference(x, params, kernel_size=K, stride=stride,
                             padding=padding, dilation=dilation,
                             tile_size=tile_size)
    assert y.shape == y_ref.shape, (y.shape, y_ref.shape)
    # bf16 MXU operands / bf16 output (f32 accumulate) => loose tolerance
    max_err = float(jnp.max(jnp.abs(y - y_ref)))
    assert jnp.allclose(y, y_ref, rtol=5e-2, atol=5e-2), max_err

    print("KERNEL_OK")
</pallas_src>

<mosaic_0001>
module attributes {stable_mosaic.version = 11 : i64} {
  func.func @_tlconv_kernel(%arg0: i32, %arg1: i32, %arg2: memref<1x16x24x36xbf16, #tpu.memory_space<vmem>>, %arg3: memref<1x8x24x36xbf16, #tpu.memory_space<vmem>>, %arg4: memref<1x16x1x36xbf16, #tpu.memory_space<vmem>>, %arg5: memref<1x16x36xbf16, #tpu.memory_space<vmem>>, %arg6: memref<4x36x1xbf16, #tpu.memory_space<vmem>>, %arg7: memref<4x1x1xf32, #tpu.memory_space<vmem>>, %arg8: memref<4x8xbf16, #tpu.memory_space<vmem>>, %arg9: memref<1x8xf32, #tpu.memory_space<vmem>>, %arg10: memref<1x1x256x8xbf16, #tpu.memory_space<vmem>>, %arg11: memref<256x4xbf16, #tpu.memory_space<vmem>>) attributes {dimension_semantics = [#tpu.dimension_semantics<parallel>, #tpu.dimension_semantics<parallel>], iteration_bounds = array<i64: 2, 1>, scalar_prefetch = 0 : i64, scratch_operands = 1 : i64, tpu.core_type = #tpu.core_type<tc>, window_params = [{transform_indices = @transform_0, window_bounds = array<i64: 1, 16, 24, 36>}, {transform_indices = @transform_1, window_bounds = array<i64: 1, 8, 24, 36>}, {transform_indices = @transform_2, window_bounds = array<i64: 1, 16, 1, 36>}, {pipeline_mode = #tpu.pipeline_mode<synchronous>, transform_indices = @transform_3, window_bounds = array<i64: 1, 16, 36>}, {pipeline_mode = #tpu.pipeline_mode<synchronous>, transform_indices = @transform_4, window_bounds = array<i64: 4, 36, 1>}, {pipeline_mode = #tpu.pipeline_mode<synchronous>, transform_indices = @transform_5, window_bounds = array<i64: 4, 1, 1>}, {pipeline_mode = #tpu.pipeline_mode<synchronous>, transform_indices = @transform_6, window_bounds = array<i64: 4, 8>}, {pipeline_mode = #tpu.pipeline_mode<synchronous>, transform_indices = @transform_7, window_bounds = array<i64: 1, 8>}, {transform_indices = @transform_8, window_bounds = array<i64: 1, 1, 256, 8>}]} {
    %c0 = arith.constant 0 : index
    %c0_0 = arith.constant 0 : index
    %c0_1 = arith.constant 0 : index
    %c0_2 = arith.constant 0 : index
    %0 = vector.load %arg4[%c0, %c0_0, %c0_1, %c0_2] : memref<1x16x1x36xbf16, #tpu.memory_space<vmem>>, vector<1x16x1x36xbf16>
    %1 = vector.shape_cast %0 : vector<1x16x1x36xbf16> to vector<16x1x36xbf16>
    %c0_3 = arith.constant 0 : index
    %c0_4 = arith.constant 0 : index
    %c0_5 = arith.constant 0 : index
    %2 = vector.load %arg5[%c0_3, %c0_4, %c0_5] : memref<1x16x36xbf16, #tpu.memory_space<vmem>>, vector<1x16x36xbf16>
    %3 = vector.broadcast %1 : vector<16x1x36xbf16> to vector<16x16x36xbf16>
    %4 = vector.broadcast %2 : vector<1x16x36xbf16> to vector<16x16x36xbf16>
    %5 = arith.mulf %3, %4 : vector<16x16x36xbf16>
    %c0_6 = arith.constant 0 : index
    %c0_7 = arith.constant 0 : index
    %c0_8 = arith.constant 0 : index
    %c0_9 = arith.constant 0 : index
    %6 = vector.load %arg2[%c0_6, %c0_7, %c0_8, %c0_9] : memref<1x16x24x36xbf16, #tpu.memory_space<vmem>>, vector<1x16x16x36xbf16>
    %7 = vector.shape_cast %6 : vector<1x16x16x36xbf16> to vector<16x16x36xbf16>
    %8 = arith.mulf %7, %5 : vector<16x16x36xbf16>
    %9 = vector.shape_cast %8 : vector<16x16x36xbf16> to vector<256x36xbf16>
    %c0_10 = arith.constant 0 : index
    %c0_11 = arith.constant 0 : index
    %c0_12 = arith.constant 0 : index
    %10 = vector.load %arg6[%c0_10, %c0_11, %c0_12] : memref<4x36x1xbf16, #tpu.memory_space<vmem>>, vector<1x36x1xbf16>
    %11 = vector.shape_cast %10 : vector<1x36x1xbf16> to vector<36x1xbf16>
    %cst = arith.constant dense<0.000000e+00> : vector<256x1xf32>
    %12 = tpu.matmul %9, %11, %cst {dimension_numbers = #tpu.dot_dimension_numbers<[1], [0], [0], [1], [0, 0, 1, 1], [], []>} : vector<256x36xbf16>, vector<36x1xbf16>, vector<256x1xf32> -> vector<256x1xf32>
    %c0_13 = arith.constant 0 : index
    %c0_14 = arith.constant 0 : index
    %c0_15 = arith.constant 0 : index
    %13 = vector.load %arg7[%c0_13, %c0_14, %c0_15] : memref<4x1x1xf32, #tpu.memory_space<vmem>>, vector<1x1x1xf32>
    %14 = vector.shape_cast %13 : vector<1x1x1xf32> to vector<1x1xf32>
    %15 = vector.broadcast %14 : vector<1x1xf32> to vector<256x1xf32>
    %16 = arith.addf %12, %15 : vector<256x1xf32>
    %cst_16 = arith.constant 0.000000e+00 : f32
    %17 = vector.broadcast %cst_16 : f32 to vector<256x1xf32>
    %18 = arith.maximumf %16, %17 : vector<256x1xf32>
    %19 = arith.truncf %18 : vector<256x1xf32> to vector<256x1xbf16>
    %c0_17 = arith.constant 0 : index
    %c0_18 = arith.constant 0 : index
    %20 = vector.load %arg11[%c0_17, %c0_18] : memref<256x4xbf16, #tpu.memory_space<vmem>>, vector<256x1xbf16>
    tpu.vector_store %arg11[%c0_17, %c0_18], %19 {strides = array<i32>} : memref<256x4xbf16, #tpu.memory_space<vmem>>, vector<256x1xbf16>,
    %c0_19 = arith.constant 0 : index
    %c1 = arith.constant 1 : index
    %c0_20 = arith.constant 0 : index
    %c0_21 = arith.constant 0 : index
    %21 = vector.load %arg2[%c0_19, %c1, %c0_20, %c0_21] : memref<1x16x24x36xbf16, #tpu.memory_space<vmem>>, vector<1x15x16x36xbf16>
    %22 = vector.shape_cast %21 : vector<1x15x16x36xbf16> to vector<15x16x36xbf16>
    %c0_22 = arith.constant 0 : index
    %c0_23 = arith.constant 0 : index
    %c0_24 = arith.constant 0 : index
    %c0_25 = arith.constant 0 : index
    %23 = vector.load %arg3[%c0_22, %c0_23, %c0_24, %c0_25] : memref<1x8x24x36xbf16, #tpu.memory_space<vmem>>, vector<1x1x16x36xbf16>
    %24 = vector.shape_cast %23 : vector<1x1x16x36xbf16> to vector<1x16x36xbf16>
    %25 = tpu.concatenate %22, %24 in 0 : vector<15x16x36xbf16>, vector<1x16x36xbf16> -> vector<16x16x36xbf16>
    %26 = arith.mulf %25, %5 : vector<16x16x36xbf16>
    %27 = vector.shape_cast %26 : vector<16x16x36xbf16> to vector<256x36xbf16>
    %c1_26 = arith.constant 1 : index
    %c0_27 = arith.constant 0 : index
    %c0_28 = arith.constant 0 : index
    %28 = vector.load %arg6[%c1_26, %c0_27, %c0_28] : memref<4x36x1xbf16, #tpu.memory_space<vmem>>, vector<1x36x1xbf16>
    %29 = vector.shape_cast %28 : vector<1x36x1xbf16> to vector<36x1xbf16>
    %cst_29 = arith.constant dense<0.000000e+00> : vector<256x1xf32>
    %30 = tpu.matmul %27, %29, %cst_29 {dimension_numbers = #tpu.dot_dimension_numbers<[1], [0], [0], [1], [0, 0, 1, 1], [], []>} : vector<256x36xbf16>, vector<36x1xbf16>, vector<256x1xf32> -> vector<256x1xf32>
    %c1_30 = arith.constant 1 : index
    %c0_31 = arith.constant 0 : index
    %c0_32 = arith.constant 0 : index
    %31 = vector.load %arg7[%c1_30, %c0_31, %c0_32] : memref<4x1x1xf32, #tpu.memory_space<vmem>>, vector<1x1x1xf32>
    %32 = vector.shape_cast %31 : vector<1x1x1xf32> to vector<1x1xf32>
    %33 = vector.broadcast %32 : vector<1x1xf32> to vector<256x1xf32>
    %34 = arith.addf %30, %33 : vector<256x1xf32>
    %cst_33 = arith.constant 0.000000e+00 : f32
    %35 = vector.broadcast %cst_33 : f32 to vector<256x1xf32>
    %36 = arith.maximumf %34, %35 : vector<256x1xf32>
    %37 = arith.truncf %36 : vector<256x1xf32> to vector<256x1xbf16>
    %c0_34 = arith.constant 0 : index
    %c1_35 = arith.constant 1 : index
    %38 = vector.load %arg11[%c0_34, %c1_35] : memref<256x4xbf16, #tpu.memory_space<vmem>>, vector<256x1xbf16>
    tpu.vector_store %arg11[%c0_34, %c1_35], %37 {strides = array<i32>} : memref<256x4xbf16, #tpu.memory_space<vmem>>, vector<256x1xbf16>,
    %c0_36 = arith.constant 0 : index
    %c0_37 = arith.constant 0 : index
    %c1_38 = arith.constant 1 : index
    %c0_39 = arith.constant 0 : index
    %39 = vector.load %arg2[%c0_36, %c0_37, %c1_38, %c0_39] : memref<1x16x24x36xbf16, #tpu.memory_space<vmem>>, vector<1x16x16x36xbf16>
    %40 = vector.shape_cast %39 : vector<1x16x16x36xbf16> to vector<16x16x36xbf16>
    %41 = arith.mulf %40, %5 : vector<16x16x36xbf16>
    %42 = vector.shape_cast %41 : vector<16x16x36xbf16> to vector<256x36xbf16>
    %c2 = arith.constant 2 : index
    %c0_40 = arith.constant 0 : index
    %c0_41 = arith.constant 0 : index
    %43 = vector.load %arg6[%c2, %c0_40, %c0_41] : memref<4x36x1xbf16, #tpu.memory_space<vmem>>, vector<1x36x1xbf16>
    %44 = vector.shape_cast %43 : vector<1x36x1xbf16> to vector<36x1xbf16>
    %cst_42 = arith.constant dense<0.000000e+00> : vector<256x1xf32>
    %45 = tpu.matmul %42, %44, %cst_42 {dimension_numbers = #tpu.dot_dimension_numbers<[1], [0], [0], [1], [0, 0, 1, 1], [], []>} : vector<256x36xbf16>, vector<36x1xbf16>, vector<256x1xf32> -> vector<256x1xf32>
    %c2_43 = arith.constant 2 : index
    %c0_44 = arith.constant 0 : index
    %c0_45 = arith.constant 0 : index
    %46 = vector.load %arg7[%c2_43, %c0_44, %c0_45] : memref<4x1x1xf32, #tpu.memory_space<vmem>>, vector<1x1x1xf32>
    %47 = vector.shape_cast %46 : vector<1x1x1xf32> to vector<1x1xf32>
    %48 = vector.broadcast %47 : vector<1x1xf32> to vector<256x1xf32>
    %49 = arith.addf %45, %48 : vector<256x1xf32>
    %cst_46 = arith.constant 0.000000e+00 : f32
    %50 = vector.broadcast %cst_46 : f32 to vector<256x1xf32>
    %51 = arith.maximumf %49, %50 : vector<256x1xf32>
    %52 = arith.truncf %51 : vector<256x1xf32> to vector<256x1xbf16>
    %c0_47 = arith.constant 0 : index
    %c2_48 = arith.constant 2 : index
    %53 = vector.load %arg11[%c0_47, %c2_48] : memref<256x4xbf16, #tpu.memory_space<vmem>>, vector<256x1xbf16>
    tpu.vector_store %arg11[%c0_47, %c2_48], %52 {strides = array<i32>} : memref<256x4xbf16, #tpu.memory_space<vmem>>, vector<256x1xbf16>,
    %c0_49 = arith.constant 0 : index
    %c1_50 = arith.constant 1 : index
    %c1_51 = arith.constant 1 : index
    %c0_52 = arith.constant 0 : index
    %54 = vector.load %arg2[%c0_49, %c1_50, %c1_51, %c0_52] : memref<1x16x24x36xbf16, #tpu.memory_space<vmem>>, vector<1x15x16x36xbf16>
    %55 = vector.shape_cast %54 : vector<1x15x16x36xbf16> to vector<15x16x36xbf16>
    %c0_53 = arith.constant 0 : index
    %c0_54 = arith.constant 0 : index
    %c1_55 = arith.constant 1 : index
    %c0_56 = arith.constant 0 : index
    %56 = vector.load %arg3[%c0_53, %c0_54, %c1_55, %c0_56] : memref<1x8x24x36xbf16, #tpu.memory_space<vmem>>, vector<1x1x16x36xbf16>
    %57 = vector.shape_cast %56 : vector<1x1x16x36xbf16> to vector<1x16x36xbf16>
    %58 = tpu.concatenate %55, %57 in 0 : vector<15x16x36xbf16>, vector<1x16x36xbf16> -> vector<16x16x36xbf16>
    %59 = arith.mulf %58, %5 : vector<16x16x36xbf16>
    %60 = vector.shape_cast %59 : vector<16x16x36xbf16> to vector<256x36xbf16>
    %c3 = arith.constant 3 : index
    %c0_57 = arith.constant 0 : index
    %c0_58 = arith.constant 0 : index
    %61 = vector.load %arg6[%c3, %c0_57, %c0_58] : memref<4x36x1xbf16, #tpu.memory_space<vmem>>, vector<1x36x1xbf16>
    %62 = vector.shape_cast %61 : vector<1x36x1xbf16> to vector<36x1xbf16>
    %cst_59 = arith.constant dense<0.000000e+00> : vector<256x1xf32>
    %63 = tpu.matmul %60, %62, %cst_59 {dimension_numbers = #tpu.dot_dimension_numbers<[1], [0], [0], [1], [0, 0, 1, 1], [], []>} : vector<256x36xbf16>, vector<36x1xbf16>, vector<256x1xf32> -> vector<256x1xf32>
    %c3_60 = arith.constant 3 : index
    %c0_61 = arith.constant 0 : index
    %c0_62 = arith.constant 0 : index
    %64 = vector.load %arg7[%c3_60, %c0_61, %c0_62] : memref<4x1x1xf32, #tpu.memory_space<vmem>>, vector<1x1x1xf32>
    %65 = vector.shape_cast %64 : vector<1x1x1xf32> to vector<1x1xf32>
    %66 = vector.broadcast %65 : vector<1x1xf32> to vector<256x1xf32>
    %67 = arith.addf %63, %66 : vector<256x1xf32>
    %cst_63 = arith.constant 0.000000e+00 : f32
    %68 = vector.broadcast %cst_63 : f32 to vector<256x1xf32>
    %69 = arith.maximumf %67, %68 : vector<256x1xf32>
    %70 = arith.truncf %69 : vector<256x1xf32> to vector<256x1xbf16>
    %c0_64 = arith.constant 0 : index
    %c3_65 = arith.constant 3 : index
    %71 = vector.load %arg11[%c0_64, %c3_65] : memref<256x4xbf16, #tpu.memory_space<vmem>>, vector<256x1xbf16>
    tpu.vector_store %arg11[%c0_64, %c3_65], %70 {strides = array<i32>} : memref<256x4xbf16, #tpu.memory_space<vmem>>, vector<256x1xbf16>,
    %c0_66 = arith.constant 0 : index
    %c0_67 = arith.constant 0 : index
    %72 = vector.load %arg11[%c0_66, %c0_67] : memref<256x4xbf16, #tpu.memory_space<vmem>>, vector<256x4xbf16>
    %c0_68 = arith.constant 0 : index
    %c0_69 = arith.constant 0 : index
    %73 = vector.load %arg8[%c0_68, %c0_69] : memref<4x8xbf16, #tpu.memory_space<vmem>>, vector<4x8xbf16>
    %cst_70 = arith.constant dense<0.000000e+00> : vector<256x8xf32>
    %74 = tpu.matmul %72, %73, %cst_70 {dimension_numbers = #tpu.dot_dimension_numbers<[1], [0], [0], [1], [0, 0, 1, 1], [], []>} : vector<256x4xbf16>, vector<4x8xbf16>, vector<256x8xf32> -> vector<256x8xf32>
    %c0_71 = arith.constant 0 : index
    %c0_72 = arith.constant 0 : index
    %75 = vector.load %arg9[%c0_71, %c0_72] : memref<1x8xf32, #tpu.memory_space<vmem>>, vector<1x8xf32>
    %76 = vector.broadcast %75 : vector<1x8xf32> to vector<256x8xf32>
    %77 = arith.addf %74, %76 : vector<256x8xf32>
    %cst_73 = arith.constant 0.000000e+00 : f32
    %78 = vector.broadcast %cst_73 : f32 to vector<256x8xf32>
    %79 = arith.maximumf %77, %78 : vector<256x8xf32>
    %80 = arith.truncf %79 : vector<256x8xf32> to vector<256x8xbf16>
    %c0_74 = arith.constant 0 : index
    %c0_75 = arith.constant 0 : index
    %c0_76 = arith.constant 0 : index
    %c0_77 = arith.constant 0 : index
    %81 = vector.load %arg10[%c0_74, %c0_75, %c0_76, %c0_77] : memref<1x1x256x8xbf16, #tpu.memory_space<vmem>>, vector<1x1x256x8xbf16>
    %82 = vector.shape_cast %81 : vector<1x1x256x8xbf16> to vector<256x8xbf16>
    %83 = vector.shape_cast %80 : vector<256x8xbf16> to vector<1x1x256x8xbf16>
    tpu.vector_store %arg10[%c0_74, %c0_75, %c0_76, %c0_77], %83 {strides = array<i32>} : memref<1x1x256x8xbf16, #tpu.memory_space<vmem>>, vector<1x1x256x8xbf16>,
    return
  }
  func.func @transform_0(%arg0: i32, %arg1: i32) -> (i32, i32, i32, i32) {
    %c0_i32 = arith.constant 0 : i32
    %c0_i32_0 = arith.constant 0 : i32
    %c0_i32_1 = arith.constant 0 : i32
    return %arg0, %arg1, %c0_i32, %c0_i32_0 : i32, i32, i32, i32
  }
  func.func @transform_1(%arg0: i32, %arg1: i32) -> (i32, i32, i32, i32) {
    %c1_i32 = arith.constant 1 : i32
    %0 = arith.addi %arg1, %c1_i32 : i32
    %c2_i32 = arith.constant 2 : i32
    %1 = arith.muli %0, %c2_i32 : i32
    %c0_i32 = arith.constant 0 : i32
    %c0_i32_0 = arith.constant 0 : i32
    %c0_i32_1 = arith.constant 0 : i32
    return %arg0, %1, %c0_i32, %c0_i32_0 : i32, i32, i32, i32
  }
  func.func @transform_2(%arg0: i32, %arg1: i32) -> (i32, i32, i32, i32) {
    %c0_i32 = arith.constant 0 : i32
    %c0_i32_0 = arith.constant 0 : i32
    %c0_i32_1 = arith.constant 0 : i32
    %c0_i32_2 = arith.constant 0 : i32
    return %arg1, %c0_i32, %c0_i32_0, %c0_i32_1 : i32, i32, i32, i32
  }
  func.func @transform_3(%arg0: i32, %arg1: i32) -> (i32, i32, i32) {
    %c0_i32 = arith.constant 0 : i32
    %c0_i32_0 = arith.constant 0 : i32
    %c0_i32_1 = arith.constant 0 : i32
    %c0_i32_2 = arith.constant 0 : i32
    return %c0_i32, %c0_i32_0, %c0_i32_1 : i32, i32, i32
  }
  func.func @transform_4(%arg0: i32, %arg1: i32) -> (i32, i32, i32) {
    %c0_i32 = arith.constant 0 : i32
    %c0_i32_0 = arith.constant 0 : i32
    %c0_i32_1 = arith.constant 0 : i32
    %c0_i32_2 = arith.constant 0 : i32
    return %c0_i32, %c0_i32_0, %c0_i32_1 : i32, i32, i32
  }
  func.func @transform_5(%arg0: i32, %arg1: i32) -> (i32, i32, i32) {
    %c0_i32 = arith.constant 0 : i32
    %c0_i32_0 = arith.constant 0 : i32
    %c0_i32_1 = arith.constant 0 : i32
    %c0_i32_2 = arith.constant 0 : i32
    return %c0_i32, %c0_i32_0, %c0_i32_1 : i32, i32, i32
  }
  func.func @transform_6(%arg0: i32, %arg1: i32) -> (i32, i32) {
    %c0_i32 = arith.constant 0 : i32
    %c0_i32_0 = arith.constant 0 : i32
    %c0_i32_1 = arith.constant 0 : i32
    return %c0_i32, %c0_i32_0 : i32, i32
  }
  func.func @transform_7(%arg0: i32, %arg1: i32) -> (i32, i32) {
    %c0_i32 = arith.constant 0 : i32
    %c0_i32_0 = arith.constant 0 : i32
    %c0_i32_1 = arith.constant 0 : i32
    return %c0_i32, %c0_i32_0 : i32, i32
  }
  func.func @transform_8(%arg0: i32, %arg1: i32) -> (i32, i32, i32, i32) {
    %c0_i32 = arith.constant 0 : i32
    %c0_i32_0 = arith.constant 0 : i32
    %c0_i32_1 = arith.constant 0 : i32
    return %arg0, %arg1, %c0_i32, %c0_i32_0 : i32, i32, i32, i32
  }
}

</mosaic_0001>

<llo_original>
// kernel: tlconv_forward.1
$region0: #{tlconv_forward.1}
  #allocation0 [shape = 'u32[]', space=smem, size = 0x4, offset = 0x4, fixed_abs, tag = 'smem constant byte address 0x4 - core index']
  #allocation1 [shape = 'u32[144,128]{1,0:T(1,128)}', space=vmem, size = 0x12000, scoped, tag = 'internal scratch']
  #allocation2 [shape = 'bf16[256,4]{1,0:T(16,128)(2,1)}', space=vmem, size = 0x10000, scoped, tag = 'scratch operand']
  %s0 = inlined_call_operand.vmem [shape: bf16[2,24,24,36], index: 0, kind: input, shape index: {}, may-alias: {0,1}]
  %s1 = inlined_call_operand.vmem [shape: bf16[2,24,24,36], index: 1, kind: input, shape index: {}, may-alias: {0,1}]
  %s2 = inlined_call_operand.vmem [shape: bf16[1,16,1,36], index: 2, kind: input, shape index: {}]
  %s3 = inlined_call_operand.vmem [shape: bf16[1,16,36], index: 3, kind: input, shape index: {}]
  %s4 = inlined_call_operand.vmem [shape: bf16[4,36,1], index: 4, kind: input, shape index: {}]
  %s5 = inlined_call_operand.vmem [shape: f32[4,1,1], index: 5, kind: input, shape index: {}]
  %s6 = inlined_call_operand.vmem [shape: bf16[4,8], index: 6, kind: input, shape index: {}]
  %s7 = inlined_call_operand.vmem [shape: f32[1,8], index: 7, kind: input, shape index: {}]
  %s8 = inlined_call_operand.vmem [shape: bf16[2,1,256,8], index: 8, kind: output, shape index: {}]
  %s9 = sld [smem:[#allocation0]]
  $region65: #{tlconv_forward.1} parent=0
    _
  %s11 = ssub.s32 1, %s9
  %s12 = scalar_select 0, %s11, %s9
  loop: start=0, step=1, limit=4
  $region2: #{tlconv_forward.1} parent=0 // loop_pre_header
    _
  $region3: #{tlconv_forward.1} parent=0 // loop_header
    %s14 = sphi 0, %s18
    %p15 = scmp.ge.s32.totalorder %s14, 4
    %s21 = sphi 0, %s33
    %s22 = sphi 0, %s29
    %s23 = sphi 0, %s21
    %s24 = sphi 0, %s22
    %s25 = sphi 0, %s23
    %s26 = sphi 0, %s24
    %s38 = sphi 0, %s40
    %s41 = sphi 0, %s38
    %s42 = sphi 0, %s41
    %s58 = sphi 0, %s42
    %s70 = sphi 0, %s72
    %s73 = sphi 0, %s70
    %s74 = sphi 0, %s73
    %s90 = sphi 0, %s74
    %s96 = sphi 0, %s98
    %s99 = sphi 0, %s96
    %s100 = sphi 0, %s99
    %s116 = sphi 0, %s100
    %s120 = sphi 0, %s120
    %s122 = sphi 0, %s120
    %s123 = sphi 0, %s122
    %s137 = sphi 0, %s123
    %s141 = sphi 0, %s141
    %s143 = sphi 0, %s141
    %s144 = sphi 0, %s143
    %s158 = sphi 0, %s144
    %s162 = sphi 0, %s162
    %s164 = sphi 0, %s162
    %s165 = sphi 0, %s164
    %s179 = sphi 0, %s165
    %s183 = sphi 0, %s183
    %s185 = sphi 0, %s183
    %s186 = sphi 0, %s185
    %s200 = sphi 0, %s186
    %s204 = sphi 0, %s204
    %s206 = sphi 0, %s204
    %s207 = sphi 0, %s206
    %s221 = sphi 0, %s207
    %s229 = sphi 0, %s231
    %s232 = sphi 0, %s229
    %s233 = sphi 0, %s232
    %s249 = sphi 0, %s233
  $region4: #{tlconv_forward.1} parent=0 // loop_header_branch
    %17 = sbr.rel (%p15) target = $region8
  $region5: #{tlconv_forward.1} parent=0 // loop_body
    %s19 = ssub.s32 %s14, 1
    %s20 = ssub.s32 %s14, 2
    %s27 = sadd.s32 1, %s22
    %p28 = scmp.ge.s32.totalorder %s27, 1
    %s29 = scalar_select %p28, 0, %s27
    %s30 = sadd.s32 1, %s21
    %s31 = scalar_select %p28, %s30, %s21
    %p32 = scmp.ge.s32.totalorder %s31, 2
    %s33 = scalar_select %p32, 0, %s31
    %s34 = ssub.s32 %s21, %s33
    %s35 = ssub.s32 %s22, %s29
    %s36 = sor.u32 %s34, %s35
    %p37 = scmp.eq.s32.totalorder %s36, 0
    %s39 = sadd.s32 %s38, 1
    %s40 = scalar_select %p37, %s38, %s39
    %p43 = pneg %p37
    %p44 = scmp.eq.s32.totalorder %s14, 1
    %p45 = por %p43, %p44
    %p46 = scmp.ne.s32.totalorder %s38, %s41
    %p47 = scmp.eq.s32.totalorder %s14, 0
    %p48 = por %p46, %p47
    %p49 = scmp.ne.s32.totalorder %s38, %s41
    %p50 = scmp.eq.s32.totalorder %s19, 1
    %p51 = por %p49, %p50
    %p52 = scmp.ne.s32.totalorder %s41, %s42
    %p53 = scmp.eq.s32.totalorder %s19, 0
    %p54 = por %p52, %p53
    %p55 = scmp.ne.s32.totalorder %s41, %s42
    %p56 = scmp.eq.s32.totalorder %s20, 1
    %p57 = por %p55, %p56
    %p59 = scmp.ne.s32.totalorder %s42, %s58
    %p60 = scmp.eq.s32.totalorder %s20, 0
    %p61 = por %p59, %p60
    %s62 = sadd.s32 %s22, 1
    %s63 = smul.u32 %s62, 2
    %s64 = sadd.s32 %s29, 1
    %s65 = smul.u32 %s64, 2
    %s66 = ssub.s32 %s21, %s33
    %s67 = ssub.s32 %s63, %s65
    %s68 = sor.u32 %s66, %s67
    %p69 = scmp.eq.s32.totalorder %s68, 0
    %s71 = sadd.s32 %s70, 1
    %s72 = scalar_select %p69, %s70, %s71
    %p75 = pneg %p69
    %p76 = scmp.eq.s32.totalorder %s14, 1
    %p77 = por %p75, %p76
    %p78 = scmp.ne.s32.totalorder %s70, %s73
    %p79 = scmp.eq.s32.totalorder %s14, 0
    %p80 = por %p78, %p79
    %p81 = scmp.ne.s32.totalorder %s70, %s73
    %p82 = scmp.eq.s32.totalorder %s19, 1
    %p83 = por %p81, %p82
    %p84 = scmp.ne.s32.totalorder %s73, %s74
    %p85 = scmp.eq.s32.totalorder %s19, 0
    %p86 = por %p84, %p85
    %p87 = scmp.ne.s32.totalorder %s73, %s74
    %p88 = scmp.eq.s32.totalorder %s20, 1
    %p89 = por %p87, %p88
    %p91 = scmp.ne.s32.totalorder %s74, %s90
    %p92 = scmp.eq.s32.totalorder %s20, 0
    %p93 = por %p91, %p92
    %s94 = ssub.s32 %s22, %s29
    %p95 = scmp.eq.s32.totalorder %s94, 0
    %s97 = sadd.s32 %s96, 1
    %s98 = scalar_select %p95, %s96, %s97
    %p101 = pneg %p95
    %p102 = scmp.eq.s32.totalorder %s14, 1
    %p103 = por %p101, %p102
    %p104 = scmp.ne.s32.totalorder %s96, %s99
    %p105 = scmp.eq.s32.totalorder %s14, 0
    %p106 = por %p104, %p105
    %p107 = scmp.ne.s32.totalorder %s96, %s99
    %p108 = scmp.eq.s32.totalorder %s19, 1
    %p109 = por %p107, %p108
    %p110 = scmp.ne.s32.totalorder %s99, %s100
    %p111 = scmp.eq.s32.totalorder %s19, 0
    %p112 = por %p110, %p111
    %p113 = scmp.ne.s32.totalorder %s99, %s100
    %p114 = scmp.eq.s32.totalorder %s20, 1
    %p115 = por %p113, %p114
    %p117 = scmp.ne.s32.totalorder %s100, %s116
    %p118 = scmp.eq.s32.totalorder %s20, 0
    %p119 = por %p117, %p118
    %s121 = sadd.s32 %s120, 1
    %p124 = scmp.eq.s32.totalorder %s14, 1
    %p125 = scmp.ne.s32.totalorder %s120, %s122
    %p126 = scmp.eq.s32.totalorder %s14, 0
    %p127 = por %p125, %p126
    %p128 = scmp.ne.s32.totalorder %s120, %s122
    %p129 = scmp.eq.s32.totalorder %s19, 1
    %p130 = por %p128, %p129
    %p131 = scmp.ne.s32.totalorder %s122, %s123
    %p132 = scmp.eq.s32.totalorder %s19, 0
    %p133 = por %p131, %p132
    %p134 = scmp.ne.s32.totalorder %s122, %s123
    %p135 = scmp.eq.s32.totalorder %s20, 1
    %p136 = por %p134, %p135
    %p138 = scmp.ne.s32.totalorder %s123, %s137
    %p139 = scmp.eq.s32.totalorder %s20, 0
    %p140 = por %p138, %p139
    %s142 = sadd.s32 %s141, 1
    %p145 = scmp.eq.s32.totalorder %s14, 1
    %p146 = scmp.ne.s32.totalorder %s141, %s143
    %p147 = scmp.eq.s32.totalorder %s14, 0
    %p148 = por %p146, %p147
    %p149 = scmp.ne.s32.totalorder %s141, %s143
    %p150 = scmp.eq.s32.totalorder %s19, 1
    %p151 = por %p149, %p150
    %p152 = scmp.ne.s32.totalorder %s143, %s144
    %p153 = scmp.eq.s32.totalorder %s19, 0
    %p154 = por %p152, %p153
    %p155 = scmp.ne.s32.totalorder %s143, %s144
    %p156 = scmp.eq.s32.totalorder %s20, 1
    %p157 = por %p155, %p156
    %p159 = scmp.ne.s32.totalorder %s144, %s158
    %p160 = scmp.eq.s32.totalorder %s20, 0
    %p161 = por %p159, %p160
    %s163 = sadd.s32 %s162, 1
    %p166 = scmp.eq.s32.totalorder %s14, 1
    %p167 = scmp.ne.s32.totalorder %s162, %s164
    %p168 = scmp.eq.s32.totalorder %s14, 0
    %p169 = por %p167, %p168
    %p170 = scmp.ne.s32.totalorder %s162, %s164
    %p171 = scmp.eq.s32.totalorder %s19, 1
    %p172 = por %p170, %p171
    %p173 = scmp.ne.s32.totalorder %s164, %s165
    %p174 = scmp.eq.s32.totalorder %s19, 0
    %p175 = por %p173, %p174
    %p176 = scmp.ne.s32.totalorder %s164, %s165
    %p177 = scmp.eq.s32.totalorder %s20, 1
    %p178 = por %p176, %p177
    %p180 = scmp.ne.s32.totalorder %s165, %s179
    %p181 = scmp.eq.s32.totalorder %s20, 0
    %p182 = por %p180, %p181
    %s184 = sadd.s32 %s183, 1
    %p187 = scmp.eq.s32.totalorder %s14, 1
    %p188 = scmp.ne.s32.totalorder %s183, %s185
    %p189 = scmp.eq.s32.totalorder %s14, 0
    %p190 = por %p188, %p189
    %p191 = scmp.ne.s32.totalorder %s183, %s185
    %p192 = scmp.eq.s32.totalorder %s19, 1
    %p193 = por %p191, %p192
    %p194 = scmp.ne.s32.totalorder %s185, %s186
    %p195 = scmp.eq.s32.totalorder %s19, 0
    %p196 = por %p194, %p195
    %p197 = scmp.ne.s32.totalorder %s185, %s186
    %p198 = scmp.eq.s32.totalorder %s20, 1
    %p199 = por %p197, %p198
    %p201 = scmp.ne.s32.totalorder %s186, %s200
    %p202 = scmp.eq.s32.totalorder %s20, 0
    %p203 = por %p201, %p202
    %s205 = sadd.s32 %s204, 1
    %p208 = scmp.eq.s32.totalorder %s14, 1
    %p209 = scmp.ne.s32.totalorder %s204, %s206
    %p210 = scmp.eq.s32.totalorder %s14, 0
    %p211 = por %p209, %p210
    %p212 = scmp.ne.s32.totalorder %s204, %s206
    %p213 = scmp.eq.s32.totalorder %s19, 1
    %p214 = por %p212, %p213
    %p215 = scmp.ne.s32.totalorder %s206, %s207
    %p216 = scmp.eq.s32.totalorder %s19, 0
    %p217 = por %p215, %p216
    %p218 = scmp.ne.s32.totalorder %s206, %s207
    %p219 = scmp.eq.s32.totalorder %s20, 1
    %p220 = por %p218, %p219
    %p222 = scmp.ne.s32.totalorder %s207, %s221
    %p223 = scmp.eq.s32.totalorder %s20, 0
    %p224 = por %p222, %p223
    %s225 = ssub.s32 %s21, %s33
    %s226 = ssub.s32 %s22, %s29
    %s227 = sor.u32 %s225, %s226
    %p228 = scmp.eq.s32.totalorder %s227, 0
    %s230 = sadd.s32 %s229, 1
    %s231 = scalar_select %p228, %s229, %s230
    %p234 = pneg %p228
    %p235 = scmp.eq.s32.totalorder %s14, 1
    %p236 = por %p234, %p235
    %p237 = scmp.ne.s32.totalorder %s229, %s232
    %p238 = scmp.eq.s32.totalorder %s14, 0
    %p239 = por %p237, %p238
    %p240 = scmp.ne.s32.totalorder %s229, %s232
    %p241 = scmp.eq.s32.totalorder %s19, 1
    %p242 = por %p240, %p241
    %p243 = scmp.ne.s32.totalorder %s232, %s233
    %p244 = scmp.eq.s32.totalorder %s19, 0
    %p245 = por %p243, %p244
    %p246 = scmp.ne.s32.totalorder %s232, %s233
    %p247 = scmp.eq.s32.totalorder %s20, 1
    %p248 = por %p246, %p247
    %p250 = scmp.ne.s32.totalorder %s233, %s249
    %p251 = scmp.eq.s32.totalorder %s20, 0
    %p252 = por %p250, %p251
    %p253 = scmp.le.s32.totalorder 1, %s14
    %p254 = scmp.lt.s32.totalorder %s14, 3
    %p255 = pnand %p253, %p254
    %p256 = pneg %p255
    // Predicated region
    $region9: #{tlconv_forward.1} parent=5 // pred_check
      _
    $region10: #{tlconv_forward.1} parent=5 // pred_check_branch
      %258 = sbr.rel (%p255) target = $region12
    $region11: #{tlconv_forward.1} parent=5 // pred_region
      %s259 = ssub.s32 %s14, 1
      // Predicated region
      $region13: #{tlconv_forward.1} parent=11 // pred_check
        %p260 = pneg %p112
      $region14: #{tlconv_forward.1} parent=11 // pred_check_branch
        %262 = sbr.rel (%p260) target = $region16
      $region15: #{tlconv_forward.1} parent=11 // pred_region
        %p263 = scmp.lt.s32.totalorder %s24, 0
        %s264 = scalar_select %p263, %s24, 0
        %s265 = smul.addr %s264, 16
        %s266 = scalar_lea.vmem %s2, %s265
      $region16: #{tlconv_forward.1} parent=11 // pred_fallthru
        _
      // Predicated region
      $region17: #{tlconv_forward.1} parent=11 // pred_check
        %p267 = pneg %p133
      $region18: #{tlconv_forward.1} parent=11 // pred_check_branch
        %269 = sbr.rel (%p267) target = $region20
      $region19: #{tlconv_forward.1} parent=11 // pred_region
        _
      $region20: #{tlconv_forward.1} parent=11 // pred_fallthru
        _
      // Predicated region
      $region21: #{tlconv_forward.1} parent=11 // pred_check
        %p270 = pneg %p154
      $region22: #{tlconv_forward.1} parent=11 // pred_check_branch
        %272 = sbr.rel (%p270) target = $region24
      $region23: #{tlconv_forward.1} parent=11 // pred_region
        _
      $region24: #{tlconv_forward.1} parent=11 // pred_fallthru
        _
      // Predicated region
      $region25: #{tlconv_forward.1} parent=11 // pred_check
        %p273 = pneg %p175
      $region26: #{tlconv_forward.1} parent=11 // pred_check_branch
        %275 = sbr.rel (%p273) target = $region28
      $region27: #{tlconv_forward.1} parent=11 // pred_region
        _
      $region28: #{tlconv_forward.1} parent=11 // pred_fallthru
        _
      // Predicated region
      $region29: #{tlconv_forward.1} parent=11 // pred_check
        %p276 = pneg %p196
      $region30: #{tlconv_forward.1} parent=11 // pred_check_branch
        %278 = sbr.rel (%p276) target = $region32
      $region31: #{tlconv_forward.1} parent=11 // pred_region
        _
      $region32: #{tlconv_forward.1} parent=11 // pred_fallthru
        _
      // Predicated region
      $region33: #{tlconv_forward.1} parent=11 // pred_check
        %p279 = pneg %p217
      $region34: #{tlconv_forward.1} parent=11 // pred_check_branch
        %281 = sbr.rel (%p279) target = $region36
      $region35: #{tlconv_forward.1} parent=11 // pred_region
        _
      $region36: #{tlconv_forward.1} parent=11 // pred_fallthru
        _
    $region12: #{tlconv_forward.1} parent=5 // pred_fallthru
      _
    %p282 = scmp.lt.s32.totalorder %s14, 2
    // Predicated region
    $region37: #{tlconv_forward.1} parent=5 // pred_check
      %p283 = pneg %p282
    $region38: #{tlconv_forward.1} parent=5 // pred_check_branch
      %285 = sbr.rel (%p283) target = $region40
    $region39: #{tlconv_forward.1} parent=5 // pred_region
      // Predicated region
      $region41: #{tlconv_forward.1} parent=39 // pred_check
        %p286 = pneg %p48
      $region42: #{tlconv_forward.1} parent=39 // pred_check_branch
        %288 = sbr.rel (%p286) target = $region44
      $region43: #{tlconv_forward.1} parent=39 // pred_region
        %s289 = smul.u32 16, %s22
        %s290 = ssub.s32 24, %s289
        %p291 = scmp.lt.s32.totalorder %s290, 16
        %s292 = scalar_select %p291, %s290, 16
        %s293 = smul.u32 64, %s292
        %s294 = smul.u32 %s293, 3
        %p295 = scmp.lt.s32.totalorder %s21, 1
        %s296 = scalar_select %p295, %s21, 1
        %p297 = scmp.lt.s32.totalorder %s289, 23
        %s298 = scalar_select %p297, %s289, 23
        %s299 = smul.addr %s298, 3
        %s300 = smul.addr %s296, 72
        %s301 = sadd.s32 %s299, %s300
        %s302 = smul.addr %s301, 4
        %s303 = scalar_lea.vmem %s0, %s302
        %s304 = smul.u32 16, %s22
        %s305 = ssub.s32 24, %s304
        %p306 = scmp.lt.s32.totalorder %s305, 16
        %s307 = scalar_select %p306, %s305, 16
        %s308 = smul.u32 64, %s307
        %s309 = smul.u32 %s308, 3
      $region44: #{tlconv_forward.1} parent=39 // pred_fallthru
        _
      // Predicated region
      $region45: #{tlconv_forward.1} parent=39 // pred_check
        %p310 = pneg %p80
      $region46: #{tlconv_forward.1} parent=39 // pred_check_branch
        %312 = sbr.rel (%p310) target = $region48
      $region47: #{tlconv_forward.1} parent=39 // pred_region
        %s313 = sadd.s32 %s22, 1
        %s314 = smul.u32 %s313, 2
        %s315 = smul.u32 8, %s314
        %p316 = scmp.lt.s32.totalorder %s21, 1
        %s317 = scalar_select %p316, %s21, 1
        %p318 = scmp.lt.s32.totalorder %s315, 23
        %s319 = scalar_select %p318, %s315, 23
        %s320 = smul.addr %s319, 3
        %s321 = smul.addr %s317, 72
        %s322 = sadd.s32 %s320, %s321
        %s323 = smul.addr %s322, 4
        %s324 = scalar_lea.vmem %s1, %s323
        %s325 = sadd.s32 %s22, 1
        %s326 = smul.u32 %s325, 2
        %s327 = smul.u32 8, %s326
      $region48: #{tlconv_forward.1} parent=39 // pred_fallthru
        _
    $region40: #{tlconv_forward.1} parent=5 // pred_fallthru
      _
    %p328 = scmp.le.s32.totalorder 1, %s14
    %p329 = scmp.lt.s32.totalorder %s14, 3
    %p330 = pnand %p328, %p329
    %p331 = pneg %p330
    // Predicated region
    $region49: #{tlconv_forward.1} parent=5 // pred_check
      _
    $region50: #{tlconv_forward.1} parent=5 // pred_check_branch
      %333 = sbr.rel (%p330) target = $region52
    $region51: #{tlconv_forward.1} parent=5 // pred_region
      %s334 = ssub.s32 %s14, 1
      %s335 = smul.u32 16, %s24
      %s336 = ssub.s32 24, %s335
      %p337 = scmp.lt.s32.totalorder %s336, 16
      %s338 = scalar_select %p337, %s336, 16
      %s339 = smul.u32 64, %s338
      %s340 = smul.u32 %s339, 3
      %p341 = scmp.lt.s32.totalorder %s23, 1
      %s342 = scalar_select %p341, %s23, 1
      %p343 = scmp.lt.s32.totalorder %s335, 23
      %s344 = scalar_select %p343, %s335, 23
      %s345 = smul.addr %s344, 3
      %s346 = smul.addr %s342, 72
      %s347 = sadd.s32 %s345, %s346
      %s348 = smul.addr %s347, 4
      %s349 = scalar_lea.vmem %s0, %s348
      %p350 = pneg %p54
      %p351 = pneg %p51
      %s352 = sadd.s32 %s24, 1
      %s353 = smul.u32 %s352, 2
      %s354 = smul.u32 8, %s353
      %p355 = scmp.lt.s32.totalorder %s23, 1
      %s356 = scalar_select %p355, %s23, 1
      %p357 = scmp.lt.s32.totalorder %s354, 23
      %s358 = scalar_select %p357, %s354, 23
      %s359 = smul.addr %s358, 3
      %s360 = smul.addr %s356, 72
      %s361 = sadd.s32 %s359, %s360
      %s362 = smul.addr %s361, 4
      %s363 = scalar_lea.vmem %s1, %s362
      %p364 = pneg %p86
      %p365 = pneg %p83
      %p366 = scmp.lt.s32.totalorder %s24, 0
      %s367 = scalar_select %p366, %s24, 0
      %s368 = smul.addr %s367, 16
      %s369 = scalar_lea.vmem %s2, %s368
      %p370 = pneg %p112
      %p371 = pneg %p109
      %p372 = pneg %p133
      %p373 = pneg %p130
      %p374 = pneg %p154
      %p375 = pneg %p151
      %p376 = pneg %p175
      %p377 = pneg %p172
      %p378 = pneg %p196
      %p379 = pneg %p193
      %p380 = pneg %p217
      %p381 = pneg %p214
      %p382 = pneg %p245
      %p383 = pneg %p242
      %p384 = scmp.lt.s32.totalorder %s23, 1
      %s385 = scalar_select %p384, %s23, 1
      %p386 = scmp.lt.s32.totalorder %s24, 0
      %s387 = scalar_select %p386, %s24, 0
      %s388 = smul.addr %s387, 32
      %s389 = smul.addr %s385, 32
      %s390 = sadd.s32 %s388, %s389
      %s391 = smul.addr %s390, 4
      %s392 = scalar_lea.vmem %s8, %s391
      %s393 = smul.u32 16, %s24
      %s394 = ssub.s32 24, %s393
      %p395 = scmp.lt.s32.totalorder %s394, 16
      %s396 = scalar_select %p395, %s394, 16
      %s397 = smul.u32 64, %s396
      %s398 = smul.u32 %s397, 3
      %p399 = scmp.lt.s32.totalorder %s23, 1
      %s400 = scalar_select %p399, %s23, 1
      %p401 = scmp.lt.s32.totalorder %s393, 23
      %s402 = scalar_select %p401, %s393, 23
      %s403 = smul.addr %s402, 3
      %s404 = smul.addr %s400, 72
      %s405 = sadd.s32 %s403, %s404
      %s406 = smul.addr %s405, 4
      %s407 = scalar_lea.vmem %s0, %s406
      %s408 = smul.u32 16, %s24
      %s409 = ssub.s32 24, %s408
      %p410 = scmp.lt.s32.totalorder %s409, 16
      %s411 = scalar_select %p410, %s409, 16
      %s412 = smul.u32 64, %s411
      %s413 = smul.u32 %s412, 3
      %s414 = sadd.s32 %s24, 1
      %s415 = smul.u32 %s414, 2
      %s416 = smul.u32 8, %s415
      %p417 = scmp.lt.s32.totalorder %s23, 1
      %s418 = scalar_select %p417, %s23, 1
      %p419 = scmp.lt.s32.totalorder %s416, 23
      %s420 = scalar_select %p419, %s416, 23
      %s421 = smul.addr %s420, 3
      %s422 = smul.addr %s418, 72
      %s423 = sadd.s32 %s421, %s422
      %s424 = smul.addr %s423, 4
      %s425 = scalar_lea.vmem %s1, %s424
      %s426 = sadd.s32 %s24, 1
      %s427 = smul.u32 %s426, 2
      %s428 = smul.u32 8, %s427
      %p429 = scmp.lt.s32.totalorder %s24, 0
      %s430 = scalar_select %p429, %s24, 0
      %s431 = smul.addr %s430, 16
      %s432 = scalar_lea.vmem %s2, %s431
      %p433 = scmp.lt.s32.totalorder %s23, 1
      %s434 = scalar_select %p433, %s23, 1
      %p435 = scmp.lt.s32.totalorder %s24, 0
      %s436 = scalar_select %p435, %s24, 0
      %s437 = smul.addr %s436, 32
      %s438 = smul.addr %s434, 32
      %s439 = sadd.s32 %s437, %s438
      %s440 = smul.addr %s439, 4
      %s441 = scalar_lea.vmem %s8, %s440
      %v443 = vld [vmem:[%s432] sm:$0x1]
      %v444 = vld [vmem:[%s432 + $0x1] sm:$0x1]
      %v445 = vld [vmem:[%s432 + $0x2] sm:$0x1]
      %v446 = vld [vmem:[%s432 + $0x3] sm:$0x1]
      %v447 = vld [vmem:[%s432 + $0x4] sm:$0x1]
      %v448 = vld [vmem:[%s432 + $0x5] sm:$0x1]
      %v449 = vld [vmem:[%s432 + $0x6] sm:$0x1]
      %v450 = vld [vmem:[%s432 + $0x7] sm:$0x1]
      %v451 = vld [vmem:[%s432 + $0x8] sm:$0x1]
      %v452 = vld [vmem:[%s432 + $0x9] sm:$0x1]
      %v453 = vld [vmem:[%s432 + $0xa] sm:$0x1]
      %v454 = vld [vmem:[%s432 + $0xb] sm:$0x1]
      %v455 = vld [vmem:[%s432 + $0xc] sm:$0x1]
      %v456 = vld [vmem:[%s432 + $0xd] sm:$0x1]
      %v457 = vld [vmem:[%s432 + $0xe] sm:$0x1]
      %v458 = vld [vmem:[%s432 + $0xf] sm:$0x1]
      %v459 = vld [vmem:[%s3] sm:$0xf]
      %v460 = vld [vmem:[%s3 + $0x4] sm:$0xf]
      %v462 = vpack.i.b16 %v443, %v443
      %v464 = vlaneseq
      %v465 = vshrl.u32 %v464, 7
      %v466 = vsub.s32 0, %v465
      %v467 = vrot.slane %v462, %v466
      %v469 = vpack.i.b16 %v444, %v444
      %v471 = vlaneseq
      %v472 = vshrl.u32 %v471, 7
      %v473 = vsub.s32 0, %v472
      %v474 = vrot.slane %v469, %v473
      %v476 = vpack.i.b16 %v445, %v445
      %v478 = vlaneseq
      %v479 = vshrl.u32 %v478, 7
      %v480 = vsub.s32 0, %v479
      %v481 = vrot.slane %v476, %v480
      %v483 = vpack.i.b16 %v446, %v446
      %v485 = vlaneseq
      %v486 = vshrl.u32 %v485, 7
      %v487 = vsub.s32 0, %v486
      %v488 = vrot.slane %v483, %v487
      %v490 = vpack.i.b16 %v447, %v447
      %v492 = vlaneseq
      %v493 = vshrl.u32 %v492, 7
      %v494 = vsub.s32 0, %v493
      %v495 = vrot.slane %v490, %v494
      %v497 = vpack.i.b16 %v448, %v448
      %v499 = vlaneseq
      %v500 = vshrl.u32 %v499, 7
      %v501 = vsub.s32 0, %v500
      %v502 = vrot.slane %v497, %v501
      %v504 = vpack.i.b16 %v449, %v449
      %v506 = vlaneseq
      %v507 = vshrl.u32 %v506, 7
      %v508 = vsub.s32 0, %v507
      %v509 = vrot.slane %v504, %v508
      %v511 = vpack.i.b16 %v450, %v450
      %v513 = vlaneseq
      %v514 = vshrl.u32 %v513, 7
      %v515 = vsub.s32 0, %v514
      %v516 = vrot.slane %v511, %v515
      %v518 = vpack.i.b16 %v451, %v451
      %v520 = vlaneseq
      %v521 = vshrl.u32 %v520, 7
      %v522 = vsub.s32 0, %v521
      %v523 = vrot.slane %v518, %v522
      %v525 = vpack.i.b16 %v452, %v452
      %v527 = vlaneseq
      %v528 = vshrl.u32 %v527, 7
      %v529 = vsub.s32 0, %v528
      %v530 = vrot.slane %v525, %v529
      %v532 = vpack.i.b16 %v453, %v453
      %v534 = vlaneseq
      %v535 = vshrl.u32 %v534, 7
      %v536 = vsub.s32 0, %v535
      %v537 = vrot.slane %v532, %v536
      %v539 = vpack.i.b16 %v454, %v454
      %v541 = vlaneseq
      %v542 = vshrl.u32 %v541, 7
      %v543 = vsub.s32 0, %v542
      %v544 = vrot.slane %v539, %v543
      %v546 = vpack.i.b16 %v455, %v455
      %v548 = vlaneseq
      %v549 = vshrl.u32 %v548, 7
      %v550 = vsub.s32 0, %v549
      %v551 = vrot.slane %v546, %v550
      %v553 = vpack.i.b16 %v456, %v456
      %v555 = vlaneseq
      %v556 = vshrl.u32 %v555, 7
      %v557 = vsub.s32 0, %v556
      %v558 = vrot.slane %v553, %v557
      %v560 = vpack.i.b16 %v457, %v457
      %v562 = vlaneseq
      %v563 = vshrl.u32 %v562, 7
      %v564 = vsub.s32 0, %v563
      %v565 = vrot.slane %v560, %v564
      %v567 = vpack.i.b16 %v458, %v458
      %v569 = vlaneseq
      %v570 = vshrl.u32 %v569, 7
      %v571 = vsub.s32 0, %v570
      %v572 = vrot.slane %v567, %v571
      %v575 = vunpack.c.l.b16 %v459
      %v576 = vunpack.c.l.b16 %v460
      %v577 = vpack.c.b16 %v576, %v575
      %v579 = vmul.bf16 %v467, %v577
      %v580 = vmul.bf16 %v474, %v577
      %v581 = vmul.bf16 %v481, %v577
      %v582 = vmul.bf16 %v488, %v577
      %v583 = vmul.bf16 %v495, %v577
      %v584 = vmul.bf16 %v502, %v577
      %v585 = vmul.bf16 %v509, %v577
      %v586 = vmul.bf16 %v516, %v577
      %v587 = vmul.bf16 %v523, %v577
      %v588 = vmul.bf16 %v530, %v577
      %v589 = vmul.bf16 %v537, %v577
      %v590 = vmul.bf16 %v544, %v577
      %v591 = vmul.bf16 %v551, %v577
      %v592 = vmul.bf16 %v558, %v577
      %v593 = vmul.bf16 %v565, %v577
      %v594 = vmul.bf16 %v572, %v577
      %v595 = vld [vmem:[%s407] sm:$0xf]
      %v596 = vld [vmem:[%s407 + $0x4] sm:$0xf]
      %v597 = vld [vmem:[%s407 + $0xc] sm:$0xf]
      %v598 = vld [vmem:[%s407 + $0x10] sm:$0xf]
      %v599 = vld [vmem:[%s407 + $0x18] sm:$0xf]
      %v600 = vld [vmem:[%s407 + $0x1c] sm:$0xf]
      %v601 = vld [vmem:[%s407 + $0x24] sm:$0xf]
      %v602 = vld [vmem:[%s407 + $0x28] sm:$0xf]
      %v603 = vld [vmem:[%s407 + $0x30] sm:$0xf]
      %v604 = vld [vmem:[%s407 + $0x34] sm:$0xf]
      %v605 = vld [vmem:[%s407 + $0x3c] sm:$0xf]
      %v606 = vld [vmem:[%s407 + $0x40] sm:$0xf]
      %v607 = vld [vmem:[%s407 + $0x48] sm:$0xf]
      %v608 = vld [vmem:[%s407 + $0x4c] sm:$0xf]
      %v609 = vld [vmem:[%s407 + $0x54] sm:$0xf]
      %v610 = vld [vmem:[%s407 + $0x58] sm:$0xf]
      %v611 = vld [vmem:[%s407 + $0x60] sm:$0xf]
      %v612 = vld [vmem:[%s407 + $0x64] sm:$0xf]
      %v613 = vld [vmem:[%s407 + $0x6c] sm:$0xf]
      %v614 = vld [vmem:[%s407 + $0x70] sm:$0xf]
      %v615 = vld [vmem:[%s407 + $0x78] sm:$0xf]
      %v616 = vld [vmem:[%s407 + $0x7c] sm:$0xf]
      %v617 = vld [vmem:[%s407 + $0x84] sm:$0xf]
      %v618 = vld [vmem:[%s407 + $0x88] sm:$0xf]
      %v619 = vld [vmem:[%s407 + $0x90] sm:$0xf]
      %v620 = vld [vmem:[%s407 + $0x94] sm:$0xf]
      %v621 = vld [vmem:[%s407 + $0x9c] sm:$0xf]
      %v622 = vld [vmem:[%s407 + $0xa0] sm:$0xf]
      %v623 = vld [vmem:[%s407 + $0xa8] sm:$0xf]
      %v624 = vld [vmem:[%s407 + $0xac] sm:$0xf]
      %v625 = vld [vmem:[%s407 + $0xb4] sm:$0xf]
      %v626 = vld [vmem:[%s407 + $0xb8] sm:$0xf]
      %v643 = vunpack.c.l.b16 %v579
      %v644 = vunpack.c.h.b16 %v579
      %v645 = vunpack.c.l.b16 %v580
      %v646 = vunpack.c.h.b16 %v580
      %v647 = vunpack.c.l.b16 %v581
      %v648 = vunpack.c.h.b16 %v581
      %v649 = vunpack.c.l.b16 %v582
      %v650 = vunpack.c.h.b16 %v582
      %v651 = vunpack.c.l.b16 %v583
      %v652 = vunpack.c.h.b16 %v583
      %v653 = vunpack.c.l.b16 %v584
      %v654 = vunpack.c.h.b16 %v584
      %v655 = vunpack.c.l.b16 %v585
      %v656 = vunpack.c.h.b16 %v585
      %v657 = vunpack.c.l.b16 %v586
      %v658 = vunpack.c.h.b16 %v586
      %v659 = vunpack.c.l.b16 %v587
      %v660 = vunpack.c.h.b16 %v587
      %v661 = vunpack.c.l.b16 %v588
      %v662 = vunpack.c.h.b16 %v588
      %v663 = vunpack.c.l.b16 %v589
      %v664 = vunpack.c.h.b16 %v589
      %v665 = vunpack.c.l.b16 %v590
      %v666 = vunpack.c.h.b16 %v590
      %v667 = vunpack.c.l.b16 %v591
      %v668 = vunpack.c.h.b16 %v591
      %v669 = vunpack.c.l.b16 %v592
      %v670 = vunpack.c.h.b16 %v592
      %v671 = vunpack.c.l.b16 %v593
      %v672 = vunpack.c.h.b16 %v593
      %v673 = vunpack.c.l.b16 %v594
      %v674 = vunpack.c.h.b16 %v594
      %v675 = vpack.c.b16 %v643, %v643
      %v676 = vpack.c.b16 %v644, %v644
      %v677 = vpack.c.b16 %v645, %v645
      %v678 = vpack.c.b16 %v646, %v646
      %v679 = vpack.c.b16 %v647, %v647
      %v680 = vpack.c.b16 %v648, %v648
      %v681 = vpack.c.b16 %v649, %v649
      %v682 = vpack.c.b16 %v650, %v650
      %v683 = vpack.c.b16 %v651, %v651
      %v684 = vpack.c.b16 %v652, %v652
      %v685 = vpack.c.b16 %v653, %v653
      %v686 = vpack.c.b16 %v654, %v654
      %v687 = vpack.c.b16 %v655, %v655
      %v688 = vpack.c.b16 %v656, %v656
      %v689 = vpack.c.b16 %v657, %v657
      %v690 = vpack.c.b16 %v658, %v658
      %v691 = vpack.c.b16 %v659, %v659
      %v692 = vpack.c.b16 %v660, %v660
      %v693 = vpack.c.b16 %v661, %v661
      %v694 = vpack.c.b16 %v662, %v662
      %v695 = vpack.c.b16 %v663, %v663
      %v696 = vpack.c.b16 %v664, %v664
      %v697 = vpack.c.b16 %v665, %v665
      %v698 = vpack.c.b16 %v666, %v666
      %v699 = vpack.c.b16 %v667, %v667
      %v700 = vpack.c.b16 %v668, %v668
      %v701 = vpack.c.b16 %v669, %v669
      %v702 = vpack.c.b16 %v670, %v670
      %v703 = vpack.c.b16 %v671, %v671
      %v704 = vpack.c.b16 %v672, %v672
      %v705 = vpack.c.b16 %v673, %v673
      %v706 = vpack.c.b16 %v674, %v674
      %v739 = vmul.bf16 %v595, %v675
      %v740 = vmul.bf16 %v596, %v676
      %v741 = vmul.bf16 %v597, %v677
      %v742 = vmul.bf16 %v598, %v678
      %v743 = vmul.bf16 %v599, %v679
      %v744 = vmul.bf16 %v600, %v680
      %v745 = vmul.bf16 %v601, %v681
      %v746 = vmul.bf16 %v602, %v682
      %v747 = vmul.bf16 %v603, %v683
      %v748 = vmul.bf16 %v604, %v684
      %v749 = vmul.bf16 %v605, %v685
      %v750 = vmul.bf16 %v606, %v686
      %v751 = vmul.bf16 %v607, %v687
      %v752 = vmul.bf16 %v608, %v688
      %v753 = vmul.bf16 %v609, %v689
      %v754 = vmul.bf16 %v610, %v690
      %v755 = vmul.bf16 %v611, %v691
      %v756 = vmul.bf16 %v612, %v692
      %v757 = vmul.bf16 %v613, %v693
      %v758 = vmul.bf16 %v614, %v694
      %v759 = vmul.bf16 %v615, %v695
      %v760 = vmul.bf16 %v616, %v696
      %v761 = vmul.bf16 %v617, %v697
      %v762 = vmul.bf16 %v618, %v698
      %v763 = vmul.bf16 %v619, %v699
      %v764 = vmul.bf16 %v620, %v700
      %v765 = vmul.bf16 %v621, %v701
      %v766 = vmul.bf16 %v622, %v702
      %v767 = vmul.bf16 %v623, %v703
      %v768 = vmul.bf16 %v624, %v704
      %v769 = vmul.bf16 %v625, %v705
      %v770 = vmul.bf16 %v626, %v706
      %v771 = vld [vmem:[%s4] sm:$0xf]
      %v772 = vld [vmem:[%s4 + $0x4] sm:$0xf]
      %v773 = vld [vmem:[%s4 + $0x8] sm:$0xf]
      %v774 = vld [vmem:[%s4 + $0xc] sm:$0xf]
      %v775 = vld [vmem:[%s4 + $0x10] sm:$0x3]
      %v776 = vld [vmem:[%s5] sm:$0x1]
      %v778 = vlaneseq
      %v779 = vshrl.u32 %v778, 7
      %v780 = vsub.s32 0, %v779
      %v781 = vrot.slane %v776, %v780
      %v815 = vunpack.c.l.b16 %v739
      %v816 = vunpack.c.l.b16 %v740
      %v817 = vunpack.c.l.b16 %v741
      %v818 = vunpack.c.l.b16 %v742
      %v819 = vunpack.c.l.b16 %v743
      %v820 = vunpack.c.l.b16 %v744
      %v821 = vunpack.c.l.b16 %v745
      %v822 = vunpack.c.l.b16 %v746
      %v823 = vunpack.c.l.b16 %v747
      %v824 = vunpack.c.l.b16 %v748
      %v825 = vunpack.c.l.b16 %v749
      %v826 = vunpack.c.l.b16 %v750
      %v827 = vunpack.c.l.b16 %v751
      %v828 = vunpack.c.l.b16 %v752
      %v829 = vunpack.c.l.b16 %v753
      %v830 = vunpack.c.l.b16 %v754
      %v831 = vunpack.c.l.b16 %v755
      %v832 = vunpack.c.l.b16 %v756
      %v833 = vunpack.c.l.b16 %v757
      %v834 = vunpack.c.l.b16 %v758
      %v835 = vunpack.c.l.b16 %v759
      %v836 = vunpack.c.l.b16 %v760
      %v837 = vunpack.c.l.b16 %v761
      %v838 = vunpack.c.l.b16 %v762
      %v839 = vunpack.c.l.b16 %v763
      %v840 = vunpack.c.l.b16 %v764
      %v841 = vunpack.c.l.b16 %v765
      %v842 = vunpack.c.l.b16 %v766
      %v843 = vunpack.c.l.b16 %v767
      %v844 = vunpack.c.l.b16 %v768
      %v845 = vunpack.c.l.b16 %v769
      %v846 = vunpack.c.l.b16 %v770
      %v847 = vpack.c.b16 %v816, %v815
      %v848 = vpack.c.b16 %v818, %v817
      %v849 = vpack.c.b16 %v820, %v819
      %v850 = vpack.c.b16 %v822, %v821
      %v851 = vpack.c.b16 %v824, %v823
      %v852 = vpack.c.b16 %v826, %v825
      %v853 = vpack.c.b16 %v828, %v827
      %v854 = vpack.c.b16 %v830, %v829
      %v855 = vpack.c.b16 %v832, %v831
      %v856 = vpack.c.b16 %v834, %v833
      %v857 = vpack.c.b16 %v836, %v835
      %v858 = vpack.c.b16 %v838, %v837
      %v859 = vpack.c.b16 %v840, %v839
      %v860 = vpack.c.b16 %v842, %v841
      %v861 = vpack.c.b16 %v844, %v843
      %v862 = vpack.c.b16 %v846, %v845
      %v868 = vunpack.c.l.b16 %v771
      %v869 = vunpack.c.l.b16 %v772
      %v870 = vunpack.c.l.b16 %v773
      %v871 = vunpack.c.l.b16 %v774
      %v872 = vunpack.c.l.b16 %v775
      %v873 = vpack.c.b16 %v869, %v868
      %v874 = vpack.c.b16 %v871, %v870
      %v875 = vpack.c.b16 %v872, %v872
      %vm878 = vcmask 293888
      %v880 = vsel %vm878, %v847, 0
      %v883 = vsel %vm878, %v848, 0
      %v886 = vsel %vm878, %v849, 0
      %v889 = vsel %vm878, %v850, 0
      %v892 = vsel %vm878, %v851, 0
      %v895 = vsel %vm878, %v852, 0
      %v898 = vsel %vm878, %v853, 0
      %v901 = vsel %vm878, %v854, 0
      %v904 = vsel %vm878, %v855, 0
      %v907 = vsel %vm878, %v856, 0
      %v910 = vsel %vm878, %v857, 0
      %v913 = vsel %vm878, %v858, 0
      %v916 = vsel %vm878, %v859, 0
      %v919 = vsel %vm878, %v860, 0
      %v922 = vsel %vm878, %v861, 0
      %v925 = vsel %vm878, %v862, 0
      %vm927 = vcmask 1041408
      %v929 = vsel %vm927, %v875, 0
      %931 = vmatprep.subr.bf16.mxu0 0
      %932 = vmatpush1.bf16.msra.mxu0 %v873
      %933 = vmatprep.subr.bf16.mxu0 0
      %934 = vmatpush1.bf16.msra.mxu0 %v874
      %935 = vmatprep.subr.bf16.mxu0 0
      %936 = vmatpush1.bf16.msra.mxu0 %v929
      %937 = vmatprep.subr.bf16.mxu0 0
      %938 = vmatpush1.bf16.msra.mxu0 0
      %939 = vmatprep.subr.bf16.mxu0 0
      %940 = vmatpush1.bf16.msra.mxu0 0
      %941 = vmatprep.subr.bf16.mxu0 0
      %942 = vmatpush1.bf16.msra.mxu0 0
      %943 = vmatprep.subr.bf16.mxu0 0
      %944 = vmatpush1.bf16.msra.mxu0 0
      %945 = vmatprep.subr.bf16.mxu0 0
      %946 = vmatpush1.bf16.msra.mxu0 0
      %947 = vmatprep.subr.bf16.mxu0 0
      %948 = vmatpush1.bf16.msra.mxu0 0
      %949 = vmatprep.subr.bf16.mxu0 0
      %950 = vmatpush1.bf16.msra.mxu0 0
      %951 = vmatprep.subr.bf16.mxu0 0
      %952 = vmatpush1.bf16.msra.mxu0 0
      %953 = vmatprep.subr.bf16.mxu0 0
      %954 = vmatpush1.bf16.msra.mxu0 0
      %955 = vmatprep.subr.bf16.mxu0 0
      %956 = vmatpush1.bf16.msra.mxu0 0
      %957 = vmatprep.subr.bf16.mxu0 0
      %958 = vmatpush1.bf16.msra.mxu0 0
      %959 = vmatprep.subr.bf16.mxu0 0
      %960 = vmatpush1.bf16.msra.mxu0 0
      %961 = vmatprep.subr.bf16.mxu0 0
      %962 = vmatpush1.bf16.msra.mxu0 0
      %963 = vmatprep.mubr.bf16.mxu0 0
      %964 = vmatmul.mubr.bf16.gmra.mrb[0].mxu0 %v880
      %v965 = vpop.f32.mrb[0].mxu0
      %v966 = vadd.f32 %v781, %v965
      %v967 = vpop.f32.mrb[0].mxu0
      %v968 = vpop.f32.mrb[0].mxu0
      %v969 = vadd.f32 %v781, %v968
      %v970 = vpop.f32.mrb[0].mxu0
      %971 = vmatprep.mubr.bf16.mxu0 0
      %972 = vmatmul.mubr.bf16.gmra.mrb[0].mxu0 %v883
      %v973 = vpop.f32.mrb[0].mxu0
      %v974 = vadd.f32 %v781, %v973
      %v975 = vpop.f32.mrb[0].mxu0
      %v976 = vpop.f32.mrb[0].mxu0
      %v977 = vadd.f32 %v781, %v976
      %v978 = vpop.f32.mrb[0].mxu0
      %979 = vmatprep.mubr.bf16.mxu0 0
      %980 = vmatmul.mubr.bf16.gmra.mrb[0].mxu0 %v886
      %v981 = vpop.f32.mrb[0].mxu0
      %v982 = vadd.f32 %v781, %v981
      %v983 = vpop.f32.mrb[0].mxu0
      %v984 = vpop.f32.mrb[0].mxu0
      %v985 = vadd.f32 %v781, %v984
      %v986 = vpop.f32.mrb[0].mxu0
      %987 = vmatprep.mubr.bf16.mxu0 0
      %988 = vmatmul.mubr.bf16.gmra.mrb[0].mxu0 %v889
      %v989 = vpop.f32.mrb[0].mxu0
      %v990 = vadd.f32 %v781, %v989
      %v991 = vpop.f32.mrb[0].mxu0
      %v992 = vpop.f32.mrb[0].mxu0
      %v993 = vadd.f32 %v781, %v992
      %v994 = vpop.f32.mrb[0].mxu0
      %995 = vmatprep.mubr.bf16.mxu0 0
      %996 = vmatmul.mubr.bf16.gmra.mrb[0].mxu0 %v892
      %v997 = vpop.f32.mrb[0].mxu0
      %v998 = vadd.f32 %v781, %v997
      %v999 = vpop.f32.mrb[0].mxu0
      %v1000 = vpop.f32.mrb[0].mxu0
      %v1001 = vadd.f32 %v781, %v1000
      %v1002 = vpop.f32.mrb[0].mxu0
      %1003 = vmatprep.mubr.bf16.mxu0 0
      %1004 = vmatmul.mubr.bf16.gmra.mrb[0].mxu0 %v895
      %v1005 = vpop.f32.mrb[0].mxu0
      %v1006 = vadd.f32 %v781, %v1005
      %v1007 = vpop.f32.mrb[0].mxu0
      %v1008 = vpop.f32.mrb[0].mxu0
      %v1009 = vadd.f32 %v781, %v1008
      %v1010 = vpop.f32.mrb[0].mxu0
      %1011 = vmatprep.mubr.bf16.mxu0 0
      %1012 = vmatmul.mubr.bf16.gmra.mrb[0].mxu0 %v898
      %v1013 = vpop.f32.mrb[0].mxu0
      %v1014 = vadd.f32 %v781, %v1013
      %v1015 = vpop.f32.mrb[0].mxu0
      %v1016 = vpop.f32.mrb[0].mxu0
      %v1017 = vadd.f32 %v781, %v1016
      %v1018 = vpop.f32.mrb[0].mxu0
      %1019 = vmatprep.mubr.bf16.mxu0 0
      %1020 = vmatmul.mubr.bf16.gmra.mrb[0].mxu0 %v901
      %v1021 = vpop.f32.mrb[0].mxu0
      %v1022 = vadd.f32 %v781, %v1021
      %v1023 = vpop.f32.mrb[0].mxu0
      %v1024 = vpop.f32.mrb[0].mxu0
      %v1025 = vadd.f32 %v781, %v1024
      %v1026 = vpop.f32.mrb[0].mxu0
      %1027 = vmatprep.mubr.bf16.mxu0 0
      %1028 = vmatmul.mubr.bf16.gmra.mrb[0].mxu0 %v904
      %v1029 = vpop.f32.mrb[0].mxu0
      %v1030 = vadd.f32 %v781, %v1029
      %v1031 = vpop.f32.mrb[0].mxu0
      %v1032 = vpop.f32.mrb[0].mxu0
      %v1033 = vadd.f32 %v781, %v1032
      %v1034 = vpop.f32.mrb[0].mxu0
      %1035 = vmatprep.mubr.bf16.mxu0 0
      %1036 = vmatmul.mubr.bf16.gmra.mrb[0].mxu0 %v907
      %v1037 = vpop.f32.mrb[0].mxu0
      %v1038 = vadd.f32 %v781, %v1037
      %v1039 = vpop.f32.mrb[0].mxu0
      %v1040 = vpop.f32.mrb[0].mxu0
      %v1041 = vadd.f32 %v781, %v1040
      %v1042 = vpop.f32.mrb[0].mxu0
      %1043 = vmatprep.mubr.bf16.mxu0 0
      %1044 = vmatmul.mubr.bf16.gmra.mrb[0].mxu0 %v910
      %v1045 = vpop.f32.mrb[0].mxu0
      %v1046 = vadd.f32 %v781, %v1045
      %v1047 = vpop.f32.mrb[0].mxu0
      %v1048 = vpop.f32.mrb[0].mxu0
      %v1049 = vadd.f32 %v781, %v1048
      %v1050 = vpop.f32.mrb[0].mxu0
      %1051 = vmatprep.mubr.bf16.mxu0 0
      %1052 = vmatmul.mubr.bf16.gmra.mrb[0].mxu0 %v913
      %v1053 = vpop.f32.mrb[0].mxu0
      %v1054 = vadd.f32 %v781, %v1053
      %v1055 = vpop.f32.mrb[0].mxu0
      %v1056 = vpop.f32.mrb[0].mxu0
      %v1057 = vadd.f32 %v781, %v1056
      %v1058 = vpop.f32.mrb[0].mxu0
      %1059 = vmatprep.mubr.bf16.mxu0 0
      %1060 = vmatmul.mubr.bf16.gmra.mrb[0].mxu0 %v916
      %v1061 = vpop.f32.mrb[0].mxu0
      %v1062 = vadd.f32 %v781, %v1061
      %v1063 = vpop.f32.mrb[0].mxu0
      %v1064 = vpop.f32.mrb[0].mxu0
      %v1065 = vadd.f32 %v781, %v1064
      %v1066 = vpop.f32.mrb[0].mxu0
      %1067 = vmatprep.mubr.bf16.mxu0 0
      %1068 = vmatmul.mubr.bf16.gmra.mrb[0].mxu0 %v919
      %v1069 = vpop.f32.mrb[0].mxu0
      %v1070 = vadd.f32 %v781, %v1069
      %v1071 = vpop.f32.mrb[0].mxu0
      %v1072 = vpop.f32.mrb[0].mxu0
      %v1073 = vadd.f32 %v781, %v1072
      %v1074 = vpop.f32.mrb[0].mxu0
      %1075 = vmatprep.mubr.bf16.mxu0 0
      %1076 = vmatmul.mubr.bf16.gmra.mrb[0].mxu0 %v922
      %v1077 = vpop.f32.mrb[0].mxu0
      %v1078 = vadd.f32 %v781, %v1077
      %v1079 = vpop.f32.mrb[0].mxu0
      %v1080 = vpop.f32.mrb[0].mxu0
      %v1081 = vadd.f32 %v781, %v1080
      %v1082 = vpop.f32.mrb[0].mxu0
      %1083 = vmatprep.mubr.bf16.mxu0 0
      %1084 = vmatmul.mubr.bf16.gmra.mrb[0].mxu0 %v925
      %v1085 = vpop.f32.mrb[0].mxu0
      %v1086 = vadd.f32 %v781, %v1085
      %v1087 = vpop.f32.mrb[0].mxu0
      %v1088 = vpop.f32.mrb[0].mxu0
      %v1089 = vadd.f32 %v781, %v1088
      %v1090 = vpop.f32.mrb[0].mxu0
      %1091 = vdwg.mxu0
      %v1092 = vmax.f32 %v966, 0.0
      %v1093 = vmax.f32 %v969, 0.0
      %v1094 = vmax.f32 %v974, 0.0
      %v1095 = vmax.f32 %v977, 0.0
      %v1096 = vmax.f32 %v982, 0.0
      %v1097 = vmax.f32 %v985, 0.0
      %v1098 = vmax.f32 %v990, 0.0
      %v1099 = vmax.f32 %v993, 0.0
      %v1100 = vmax.f32 %v998, 0.0
      %v1101 = vmax.f32 %v1001, 0.0
      %v1102 = vmax.f32 %v1006, 0.0
      %v1103 = vmax.f32 %v1009, 0.0
      %v1104 = vmax.f32 %v1014, 0.0
      %v1105 = vmax.f32 %v1017, 0.0
      %v1106 = vmax.f32 %v1022, 0.0
      %v1107 = vmax.f32 %v1025, 0.0
      %v1108 = vmax.f32 %v1030, 0.0
      %v1109 = vmax.f32 %v1033, 0.0
      %v1110 = vmax.f32 %v1038, 0.0
      %v1111 = vmax.f32 %v1041, 0.0
      %v1112 = vmax.f32 %v1046, 0.0
      %v1113 = vmax.f32 %v1049, 0.0
      %v1114 = vmax.f32 %v1054, 0.0
      %v1115 = vmax.f32 %v1057, 0.0
      %v1116 = vmax.f32 %v1062, 0.0
      %v1117 = vmax.f32 %v1065, 0.0
      %v1118 = vmax.f32 %v1070, 0.0
      %v1119 = vmax.f32 %v1073, 0.0
      %v1120 = vmax.f32 %v1078, 0.0
      %v1121 = vmax.f32 %v1081, 0.0
      %v1122 = vmax.f32 %v1086, 0.0
      %v1123 = vmax.f32 %v1089, 0.0
      %v1124 = vpack.c.bf16 %v1093, %v1092
      %v1125 = vpack.c.bf16 %v1095, %v1094
      %v1126 = vpack.c.bf16 %v1097, %v1096
      %v1127 = vpack.c.bf16 %v1099, %v1098
      %v1128 = vpack.c.bf16 %v1101, %v1100
      %v1129 = vpack.c.bf16 %v1103, %v1102
      %v1130 = vpack.c.bf16 %v1105, %v1104
      %v1131 = vpack.c.bf16 %v1107, %v1106
      %v1132 = vpack.c.bf16 %v1109, %v1108
      %v1133 = vpack.c.bf16 %v1111, %v1110
      %v1134 = vpack.c.bf16 %v1113, %v1112
      %v1135 = vpack.c.bf16 %v1115, %v1114
      %v1136 = vpack.c.bf16 %v1117, %v1116
      %v1137 = vpack.c.bf16 %v1119, %v1118
      %v1138 = vpack.c.bf16 %v1121, %v1120
      %v1139 = vpack.c.bf16 %v1123, %v1122
      %vm1140 = vcmask 7168
      %1141 = vst.msk [vmem:[#allocation2] sm:$0xff] %vm1140, %v1124
      %1142 = vst.msk [vmem:[#allocation2 + $0x8] sm:$0xff] %vm1140, %v1125
      %1143 = vst.msk [vmem:[#allocation2 + $0x10] sm:$0xff] %vm1140, %v1126
      %1144 = vst.msk [vmem:[#allocation2 + $0x18] sm:$0xff] %vm1140, %v1127
      %1145 = vst.msk [vmem:[#allocation2 + $0x20] sm:$0xff] %vm1140, %v1128
      %1146 = vst.msk [vmem:[#allocation2 + $0x28] sm:$0xff] %vm1140, %v1129
      %1147 = vst.msk [vmem:[#allocation2 + $0x30] sm:$0xff] %vm1140, %v1130
      %1148 = vst.msk [vmem:[#allocation2 + $0x38] sm:$0xff] %vm1140, %v1131
      %1149 = vst.msk [vmem:[#allocation2 + $0x40] sm:$0xff] %vm1140, %v1132
      %1150 = vst.msk [vmem:[#allocation2 + $0x48] sm:$0xff] %vm1140, %v1133
      %1151 = vst.msk [vmem:[#allocation2 + $0x50] sm:$0xff] %vm1140, %v1134
      %1152 = vst.msk [vmem:[#allocation2 + $0x58] sm:$0xff] %vm1140, %v1135
      %1153 = vst.msk [vmem:[#allocation2 + $0x60] sm:$0xff] %vm1140, %v1136
      %1154 = vst.msk [vmem:[#allocation2 + $0x68] sm:$0xff] %vm1140, %v1137
      %1155 = vst.msk [vmem:[#allocation2 + $0x70] sm:$0xff] %vm1140, %v1138
      %1156 = vst.msk [vmem:[#allocation2 + $0x78] sm:$0xff] %vm1140, %v1139
      %s1157 = scalar_lea.vmem %s407, 12
      %v1158 = vld [vmem:[%s1157] sm:$0xf]
      %v1159 = vld [vmem:[%s1157 + $0x4] sm:$0xf]
      %v1160 = vld [vmem:[%s1157 + $0xc] sm:$0xf]
      %v1161 = vld [vmem:[%s1157 + $0x10] sm:$0xf]
      %v1162 = vld [vmem:[%s1157 + $0x18] sm:$0xf]
      %v1163 = vld [vmem:[%s1157 + $0x1c] sm:$0xf]
      %v1164 = vld [vmem:[%s1157 + $0x24] sm:$0xf]
      %v1165 = vld [vmem:[%s1157 + $0x28] sm:$0xf]
      %v1166 = vld [vmem:[%s1157 + $0x30] sm:$0xf]
      %v1167 = vld [vmem:[%s1157 + $0x34] sm:$0xf]
      %v1168 = vld [vmem:[%s1157 + $0x3c] sm:$0xf]
      %v1169 = vld [vmem:[%s1157 + $0x40] sm:$0xf]
      %v1170 = vld [vmem:[%s1157 + $0x48] sm:$0xf]
      %v1171 = vld [vmem:[%s1157 + $0x4c] sm:$0xf]
      %v1172 = vld [vmem:[%s1157 + $0x54] sm:$0xf]
      %v1173 = vld [vmem:[%s1157 + $0x58] sm:$0xf]
      %v1174 = vld [vmem:[%s1157 + $0x60] sm:$0xf]
      %v1175 = vld [vmem:[%s1157 + $0x64] sm:$0xf]
      %v1176 = vld [vmem:[%s1157 + $0x6c] sm:$0xf]
      %v1177 = vld [vmem:[%s1157 + $0x70] sm:$0xf]
      %v1178 = vld [vmem:[%s1157 + $0x78] sm:$0xf]
      %v1179 = vld [vmem:[%s1157 + $0x7c] sm:$0xf]
      %v1180 = vld [vmem:[%s1157 + $0x84] sm:$0xf]
      %v1181 = vld [vmem:[%s1157 + $0x88] sm:$0xf]
      %v1182 = vld [vmem:[%s1157 + $0x90] sm:$0xf]
      %v1183 = vld [vmem:[%s1157 + $0x94] sm:$0xf]
      %v1184 = vld [vmem:[%s1157 + $0x9c] sm:$0xf]
      %v1185 = vld [vmem:[%s1157 + $0xa0] sm:$0xf]
      %v1186 = vld [vmem:[%s1157 + $0xa8] sm:$0xf]
      %v1187 = vld [vmem:[%s1157 + $0xac] sm:$0xf]
      %v1188 = vld [vmem:[%s425] sm:$0xf]
      %v1189 = vld [vmem:[%s425 + $0x4] sm:$0xf]
      %v1190 = vmul.bf16 %v1158, %v675
      %v1191 = vmul.bf16 %v1159, %v676
      %v1192 = vmul.bf16 %v1160, %v677
      %v1193 = vmul.bf16 %v1161, %v678
      %v1194 = vmul.bf16 %v1162, %v679
      %v1195 = vmul.bf16 %v1163, %v680
      %v1196 = vmul.bf16 %v1164, %v681
      %v1197 = vmul.bf16 %v1165, %v682
      %v1198 = vmul.bf16 %v1166, %v683
      %v1199 = vmul.bf16 %v1167, %v684
      %v1200 = vmul.bf16 %v1168, %v685
      %v1201 = vmul.bf16 %v1169, %v686
      %v1202 = vmul.bf16 %v1170, %v687
      %v1203 = vmul.bf16 %v1171, %v688
      %v1204 = vmul.bf16 %v1172, %v689
      %v1205 = vmul.bf16 %v1173, %v690
      %v1206 = vmul.bf16 %v1174, %v691
      %v1207 = vmul.bf16 %v1175, %v692
      %v1208 = vmul.bf16 %v1176, %v693
      %v1209 = vmul.bf16 %v1177, %v694
      %v1210 = vmul.bf16 %v1178, %v695
      %v1211 = vmul.bf16 %v1179, %v696
      %v1212 = vmul.bf16 %v1180, %v697
      %v1213 = vmul.bf16 %v1181, %v698
      %v1214 = vmul.bf16 %v1182, %v699
      %v1215 = vmul.bf16 %v1183, %v700
      %v1216 = vmul.bf16 %v1184, %v701
      %v1217 = vmul.bf16 %v1185, %v702
      %v1218 = vmul.bf16 %v1186, %v703
      %v1219 = vmul.bf16 %v1187, %v704
      %v1220 = vmul.bf16 %v1188, %v705
      %v1221 = vmul.bf16 %v1189, %v706
      %s1222 = scalar_lea.vmem %s4, 20
      %v1223 = vld [vmem:[%s1222] sm:$0xf]
      %v1224 = vld [vmem:[%s1222 + $0x4] sm:$0xf]
      %v1225 = vld [vmem:[%s1222 + $0x8] sm:$0xf]
      %v1226 = vld [vmem:[%s1222 + $0xc] sm:$0xf]
      %v1227 = vld [vmem:[%s1222 + $0x10] sm:$0x3]
      %s1228 = scalar_lea.vmem %s5, 1
      %v1229 = vld [vmem:[%s1228] sm:$0x1]
      %v1231 = vlaneseq
      %v1232 = vshrl.u32 %v1231, 7
      %v1233 = vsub.s32 0, %v1232
      %v1234 = vrot.slane %v1229, %v1233
      %v1268 = vunpack.c.l.b16 %v1190
      %v1269 = vunpack.c.l.b16 %v1191
      %v1270 = vunpack.c.l.b16 %v1192
      %v1271 = vunpack.c.l.b16 %v1193
      %v1272 = vunpack.c.l.b16 %v1194
      %v1273 = vunpack.c.l.b16 %v1195
      %v1274 = vunpack.c.l.b16 %v1196
      %v1275 = vunpack.c.l.b16 %v1197
      %v1276 = vunpack.c.l.b16 %v1198
      %v1277 = vunpack.c.l.b16 %v1199
      %v1278 = vunpack.c.l.b16 %v1200
      %v1279 = vunpack.c.l.b16 %v1201
      %v1280 = vunpack.c.l.b16 %v1202
      %v1281 = vunpack.c.l.b16 %v1203
      %v1282 = vunpack.c.l.b16 %v1204
      %v1283 = vunpack.c.l.b16 %v1205
      %v1284 = vunpack.c.l.b16 %v1206
      %v1285 = vunpack.c.l.b16 %v1207
      %v1286 = vunpack.c.l.b16 %v1208
      %v1287 = vunpack.c.l.b16 %v1209
      %v1288 = vunpack.c.l.b16 %v1210
      %v1289 = vunpack.c.l.b16 %v1211
      %v1290 = vunpack.c.l.b16 %v1212
      %v1291 = vunpack.c.l.b16 %v1213
      %v1292 = vunpack.c.l.b16 %v1214
      %v1293 = vunpack.c.l.b16 %v1215
      %v1294 = vunpack.c.l.b16 %v1216
      %v1295 = vunpack.c.l.b16 %v1217
      %v1296 = vunpack.c.l.b16 %v1218
      %v1297 = vunpack.c.l.b16 %v1219
      %v1298 = vunpack.c.l.b16 %v1220
      %v1299 = vunpack.c.l.b16 %v1221
      %v1300 = vpack.c.b16 %v1269, %v1268
      %v1301 = vpack.c.b16 %v1271, %v1270
      %v1302 = vpack.c.b16 %v1273, %v1272
      %v1303 = vpack.c.b16 %v1275, %v1274
      %v1304 = vpack.c.b16 %v1277, %v1276
      %v1305 = vpack.c.b16 %v1279, %v1278
      %v1306 = vpack.c.b16 %v1281, %v1280
      %v1307 = vpack.c.b16 %v1283, %v1282
      %v1308 = vpack.c.b16 %v1285, %v1284
      %v1309 = vpack.c.b16 %v1287, %v1286
      %v1310 = vpack.c.b16 %v1289, %v1288
      %v1311 = vpack.c.b16 %v1291, %v1290
      %v1312 = vpack.c.b16 %v1293, %v1292
      %v1313 = vpack.c.b16 %v1295, %v1294
      %v1314 = vpack.c.b16 %v1297, %v1296
      %v1315 = vpack.c.b16 %v1299, %v1298
      %v1321 = vunpack.c.l.b16 %v1223
      %v1322 = vunpack.c.l.b16 %v1224
      %v1323 = vunpack.c.l.b16 %v1225
      %v1324 = vunpack.c.l.b16 %v1226
      %v1325 = vunpack.c.l.b16 %v1227
      %v1326 = vpack.c.b16 %v1322, %v1321
      %v1327 = vpack.c.b16 %v1324, %v1323
      %v1328 = vpack.c.b16 %v1325, %v1325
      %v1332 = vsel %vm878, %v1300, 0
      %v1335 = vsel %vm878, %v1301, 0
      %v1338 = vsel %vm878, %v1302, 0
      %v1341 = vsel %vm878, %v1303, 0
      %v1344 = vsel %vm878, %v1304, 0
      %v1347 = vsel %vm878, %v1305, 0
      %v1350 = vsel %vm878, %v1306, 0
      %v1353 = vsel %vm878, %v1307, 0
      %v1356 = vsel %vm878, %v1308, 0
      %v1359 = vsel %vm878, %v1309, 0
      %v1362 = vsel %vm878, %v1310, 0
      %v1365 = vsel %vm878, %v1311, 0
      %v1368 = vsel %vm878, %v1312, 0
      %v1371 = vsel %vm878, %v1313, 0
      %v1374 = vsel %vm878, %v1314, 0
      %v1377 = vsel %vm878, %v1315, 0
      %v1380 = vsel %vm927, %v1328, 0
      %1382 = vmatprep.subr.bf16.mxu0 0
      %1383 = vmatpush1.bf16.msra.mxu0 %v1326
      %1384 = vmatprep.subr.bf16.mxu0 0
      %1385 = vmatpush1.bf16.msra.mxu0 %v1327
      %1386 = vmatprep.subr.bf16.mxu0 0
      %1387 = vmatpush1.bf16.msra.mxu0 %v1380
      %1388 = vmatprep.subr.bf16.mxu0 0
      %1389 = vmatpush1.bf16.msra.mxu0 0
      %1390 = vmatprep.subr.bf16.mxu0 0
      %1391 = vmatpush1.bf16.msra.mxu0 0
      %1392 = vmatprep.subr.bf16.mxu0 0
      %1393 = vmatpush1.bf16.msra.mxu0 0
      %1394 = vmatprep.subr.bf16.mxu0 0
      %1395 = vmatpush1.bf16.msra.mxu0 0
      %1396 = vmatprep.subr.bf16.mxu0 0
      %1397 = vmatpush1.bf16.msra.mxu0 0
      %1398 = vmatprep.subr.bf16.mxu0 0
      %1399 = vmatpush1.bf16.msra.mxu0 0
      %1400 = vmatprep.subr.bf16.mxu0 0
      %1401 = vmatpush1.bf16.msra.mxu0 0
      %1402 = vmatprep.subr.bf16.mxu0 0
      %1403 = vmatpush1.bf16.msra.mxu0 0
      %1404 = vmatprep.subr.bf16.mxu0 0
      %1405 = vmatpush1.bf16.msra.mxu0 0
      %1406 = vmatprep.subr.bf16.mxu0 0
      %1407 = vmatpush1.bf16.msra.mxu0 0
      %1408 = vmatprep.subr.bf16.mxu0 0
      %1409 = vmatpush1.bf16.msra.mxu0 0
      %1410 = vmatprep.subr.bf16.mxu0 0
      %1411 = vmatpush1.bf16.msra.mxu0 0
      %1412 = vmatprep.subr.bf16.mxu0 0
      %1413 = vmatpush1.bf16.msra.mxu0 0
      %1414 = vmatprep.mubr.bf16.mxu0 0
      %1415 = vmatmul.mubr.bf16.gmra.mrb[0].mxu0 %v1332
      %v1416 = vpop.f32.mrb[0].mxu0
      %v1417 = vadd.f32 %v1234, %v1416
      %v1418 = vpop.f32.mrb[0].mxu0
      %v1419 = vpop.f32.mrb[0].mxu0
      %v1420 = vadd.f32 %v1234, %v1419
      %v1421 = vpop.f32.mrb[0].mxu0
      %1422 = vmatprep.mubr.bf16.mxu0 0
      %1423 = vmatmul.mubr.bf16.gmra.mrb[0].mxu0 %v1335
      %v1424 = vpop.f32.mrb[0].mxu0
      %v1425 = vadd.f32 %v1234, %v1424
      %v1426 = vpop.f32.mrb[0].mxu0
      %v1427 = vpop.f32.mrb[0].mxu0
      %v1428 = vadd.f32 %v1234, %v1427
      %v1429 = vpop.f32.mrb[0].mxu0
      %1430 = vmatprep.mubr.bf16.mxu0 0
      %1431 = vmatmul.mubr.bf16.gmra.mrb[0].mxu0 %v1338
      %v1432 = vpop.f32.mrb[0].mxu0
      %v1433 = vadd.f32 %v1234, %v1432
      %v1434 = vpop.f32.mrb[0].mxu0
      %v1435 = vpop.f32.mrb[0].mxu0
      %v1436 = vadd.f32 %v1234, %v1435
      %v1437 = vpop.f32.mrb[0].mxu0
      %1438 = vmatprep.mubr.bf16.mxu0 0
      %1439 = vmatmul.mubr.bf16.gmra.mrb[0].mxu0 %v1341
      %v1440 = vpop.f32.mrb[0].mxu0
      %v1441 = vadd.f32 %v1234, %v1440
      %v1442 = vpop.f32.mrb[0].mxu0
      %v1443 = vpop.f32.mrb[0].mxu0
      %v1444 = vadd.f32 %v1234, %v1443
      %v1445 = vpop.f32.mrb[0].mxu0
      %1446 = vmatprep.mubr.bf16.mxu0 0
      %1447 = vmatmul.mubr.bf16.gmra.mrb[0].mxu0 %v1344
      %v1448 = vpop.f32.mrb[0].mxu0
      %v1449 = vadd.f32 %v1234, %v1448
      %v1450 = vpop.f32.mrb[0].mxu0
      %v1451 = vpop.f32.mrb[0].mxu0
      %v1452 = vadd.f32 %v1234, %v1451
      %v1453 = vpop.f32.mrb[0].mxu0
      %1454 = vmatprep.mubr.bf16.mxu0 0
      %1455 = vmatmul.mubr.bf16.gmra.mrb[0].mxu0 %v1347
      %v1456 = vpop.f32.mrb[0].mxu0
      %v1457 = vadd.f32 %v1234, %v1456
      %v1458 = vpop.f32.mrb[0].mxu0
      %v1459 = vpop.f32.mrb[0].mxu0
      %v1460 = vadd.f32 %v1234, %v1459
      %v1461 = vpop.f32.mrb[0].mxu0
      %1462 = vmatprep.mubr.bf16.mxu0 0
      %1463 = vmatmul.mubr.bf16.gmra.mrb[0].mxu0 %v1350
      %v1464 = vpop.f32.mrb[0].mxu0
      %v1465 = vadd.f32 %v1234, %v1464
      %v1466 = vpop.f32.mrb[0].mxu0
      %v1467 = vpop.f32.mrb[0].mxu0
      %v1468 = vadd.f32 %v1234, %v1467
      %v1469 = vpop.f32.mrb[0].mxu0
      %1470 = vmatprep.mubr.bf16.mxu0 0
      %1471 = vmatmul.mubr.bf16.gmra.mrb[0].mxu0 %v1353
      %v1472 = vpop.f32.mrb[0].mxu0
      %v1473 = vadd.f32 %v1234, %v1472
      %v1474 = vpop.f32.mrb[0].mxu0
      %v1475 = vpop.f32.mrb[0].mxu0
      %v1476 = vadd.f32 %v1234, %v1475
      %v1477 = vpop.f32.mrb[0].mxu0
      %1478 = vmatprep.mubr.bf16.mxu0 0
      %1479 = vmatmul.mubr.bf16.gmra.mrb[0].mxu0 %v1356
      %v1480 = vpop.f32.mrb[0].mxu0
      %v1481 = vadd.f32 %v1234, %v1480
      %v1482 = vpop.f32.mrb[0].mxu0
      %v1483 = vpop.f32.mrb[0].mxu0
      %v1484 = vadd.f32 %v1234, %v1483
      %v1485 = vpop.f32.mrb[0].mxu0
      %1486 = vmatprep.mubr.bf16.mxu0 0
      %1487 = vmatmul.mubr.bf16.gmra.mrb[0].mxu0 %v1359
      %v1488 = vpop.f32.mrb[0].mxu0
      %v1489 = vadd.f32 %v1234, %v1488
      %v1490 = vpop.f32.mrb[0].mxu0
      %v1491 = vpop.f32.mrb[0].mxu0
      %v1492 = vadd.f32 %v1234, %v1491
      %v1493 = vpop.f32.mrb[0].mxu0
      %1494 = vmatprep.mubr.bf16.mxu0 0
      %1495 = vmatmul.mubr.bf16.gmra.mrb[0].mxu0 %v1362
      %v1496 = vpop.f32.mrb[0].mxu0
      %v1497 = vadd.f32 %v1234, %v1496
      %v1498 = vpop.f32.mrb[0].mxu0
      %v1499 = vpop.f32.mrb[0].mxu0
      %v1500 = vadd.f32 %v1234, %v1499
      %v1501 = vpop.f32.mrb[0].mxu0
      %1502 = vmatprep.mubr.bf16.mxu0 0
      %1503 = vmatmul.mubr.bf16.gmra.mrb[0].mxu0 %v1365
      %v1504 = vpop.f32.mrb[0].mxu0
      %v1505 = vadd.f32 %v1234, %v1504
      %v1506 = vpop.f32.mrb[0].mxu0
      %v1507 = vpop.f32.mrb[0].mxu0
      %v1508 = vadd.f32 %v1234, %v1507
      %v1509 = vpop.f32.mrb[0].mxu0
      %1510 = vmatprep.mubr.bf16.mxu0 0
      %1511 = vmatmul.mubr.bf16.gmra.mrb[0].mxu0 %v1368
      %v1512 = vpop.f32.mrb[0].mxu0
      %v1513 = vadd.f32 %v1234, %v1512
      %v1514 = vpop.f32.mrb[0].mxu0
      %v1515 = vpop.f32.mrb[0].mxu0
      %v1516 = vadd.f32 %v1234, %v1515
      %v1517 = vpop.f32.mrb[0].mxu0
      %1518 = vmatprep.mubr.bf16.mxu0 0
      %1519 = vmatmul.mubr.bf16.gmra.mrb[0].mxu0 %v1371
      %v1520 = vpop.f32.mrb[0].mxu0
      %v1521 = vadd.f32 %v1234, %v1520
      %v1522 = vpop.f32.mrb[0].mxu0
      %v1523 = vpop.f32.mrb[0].mxu0
      %v1524 = vadd.f32 %v1234, %v1523
      %v1525 = vpop.f32.mrb[0].mxu0
      %1526 = vmatprep.mubr.bf16.mxu0 0
      %1527 = vmatmul.mubr.bf16.gmra.mrb[0].mxu0 %v1374
      %v1528 = vpop.f32.mrb[0].mxu0
      %v1529 = vadd.f32 %v1234, %v1528
      %v1530 = vpop.f32.mrb[0].mxu0
      %v1531 = vpop.f32.mrb[0].mxu0
      %v1532 = vadd.f32 %v1234, %v1531
      %v1533 = vpop.f32.mrb[0].mxu0
      %1534 = vmatprep.mubr.bf16.mxu0 0
      %1535 = vmatmul.mubr.bf16.gmra.mrb[0].mxu0 %v1377
      %v1536 = vpop.f32.mrb[0].mxu0
      %v1537 = vadd.f32 %v1234, %v1536
      %v1538 = vpop.f32.mrb[0].mxu0
      %v1539 = vpop.f32.mrb[0].mxu0
      %v1540 = vadd.f32 %v1234, %v1539
      %v1541 = vpop.f32.mrb[0].mxu0
      %1542 = vdwg.mxu0
      %v1543 = vmax.f32 %v1417, 0.0
      %v1544 = vmax.f32 %v1420, 0.0
      %v1545 = vmax.f32 %v1425, 0.0
      %v1546 = vmax.f32 %v1428, 0.0
      %v1547 = vmax.f32 %v1433, 0.0
      %v1548 = vmax.f32 %v1436, 0.0
      %v1549 = vmax.f32 %v1441, 0.0
      %v1550 = vmax.f32 %v1444, 0.0
      %v1551 = vmax.f32 %v1449, 0.0
      %v1552 = vmax.f32 %v1452, 0.0
      %v1553 = vmax.f32 %v1457, 0.0
      %v1554 = vmax.f32 %v1460, 0.0
      %v1555 = vmax.f32 %v1465, 0.0
      %v1556 = vmax.f32 %v1468, 0.0
      %v1557 = vmax.f32 %v1473, 0.0
      %v1558 = vmax.f32 %v1476, 0.0
      %v1559 = vmax.f32 %v1481, 0.0
      %v1560 = vmax.f32 %v1484, 0.0
      %v1561 = vmax.f32 %v1489, 0.0
      %v1562 = vmax.f32 %v1492, 0.0
      %v1563 = vmax.f32 %v1497, 0.0
      %v1564 = vmax.f32 %v1500, 0.0
      %v1565 = vmax.f32 %v1505, 0.0
      %v1566 = vmax.f32 %v1508, 0.0
      %v1567 = vmax.f32 %v1513, 0.0
      %v1568 = vmax.f32 %v1516, 0.0
      %v1569 = vmax.f32 %v1521, 0.0
      %v1570 = vmax.f32 %v1524, 0.0
      %v1571 = vmax.f32 %v1529, 0.0
      %v1572 = vmax.f32 %v1532, 0.0
      %v1573 = vmax.f32 %v1537, 0.0
      %v1574 = vmax.f32 %v1540, 0.0
      %v1575 = vpack.c.bf16 %v1544, %v1543
      %v1576 = vpack.c.bf16 %v1546, %v1545
      %v1577 = vpack.c.bf16 %v1548, %v1547
      %v1578 = vpack.c.bf16 %v1550, %v1549
      %v1579 = vpack.c.bf16 %v1552, %v1551
      %v1580 = vpack.c.bf16 %v1554, %v1553
      %v1581 = vpack.c.bf16 %v1556, %v1555
      %v1582 = vpack.c.bf16 %v1558, %v1557
      %v1583 = vpack.c.bf16 %v1560, %v1559
      %v1584 = vpack.c.bf16 %v1562, %v1561
      %v1585 = vpack.c.bf16 %v1564, %v1563
      %v1586 = vpack.c.bf16 %v1566, %v1565
      %v1587 = vpack.c.bf16 %v1568, %v1567
      %v1588 = vpack.c.bf16 %v1570, %v1569
      %v1589 = vpack.c.bf16 %v1572, %v1571
      %v1590 = vpack.c.bf16 %v1574, %v1573
      %1607 = vrot.lane.b32.xlu0 %v1575, 1
      %v1608 = vpop.permute.xlu0 %1607
      %1609 = vrot.lane.b32.xlu0 %v1576, 1
      %v1610 = vpop.permute.xlu0 %1609
      %1611 = vrot.lane.b32.xlu0 %v1577, 1
      %v1612 = vpop.permute.xlu0 %1611
      %1613 = vrot.lane.b32.xlu0 %v1578, 1
      %v1614 = vpop.permute.xlu0 %1613
      %1615 = vrot.lane.b32.xlu0 %v1579, 1
      %v1616 = vpop.permute.xlu0 %1615
      %1617 = vrot.lane.b32.xlu0 %v1580, 1
      %v1618 = vpop.permute.xlu0 %1617
      %1619 = vrot.lane.b32.xlu0 %v1581, 1
      %v1620 = vpop.permute.xlu0 %1619
      %1621 = vrot.lane.b32.xlu0 %v1582, 1
      %v1622 = vpop.permute.xlu0 %1621
      %1623 = vrot.lane.b32.xlu0 %v1583, 1
      %v1624 = vpop.permute.xlu0 %1623
      %1625 = vrot.lane.b32.xlu0 %v1584, 1
      %v1626 = vpop.permute.xlu0 %1625
      %1627 = vrot.lane.b32.xlu0 %v1585, 1
      %v1628 = vpop.permute.xlu0 %1627
      %1629 = vrot.lane.b32.xlu0 %v1586, 1
      %v1630 = vpop.permute.xlu0 %1629
      %1631 = vrot.lane.b32.xlu0 %v1587, 1
      %v1632 = vpop.permute.xlu0 %1631
      %1633 = vrot.lane.b32.xlu0 %v1588, 1
      %v1634 = vpop.permute.xlu0 %1633
      %1635 = vrot.lane.b32.xlu0 %v1589, 1
      %v1636 = vpop.permute.xlu0 %1635
      %1637 = vrot.lane.b32.xlu0 %v1590, 1
      %v1638 = vpop.permute.xlu0 %1637
      %vm1655 = vcmask 15368
      %1656 = vst.msk [vmem:[#allocation2] sm:$0xff] %vm1655, %v1608
      %1657 = vst.msk [vmem:[#allocation2 + $0x8] sm:$0xff] %vm1655, %v1610
      %1658 = vst.msk [vmem:[#allocation2 + $0x10] sm:$0xff] %vm1655, %v1612
      %1659 = vst.msk [vmem:[#allocation2 + $0x18] sm:$0xff] %vm1655, %v1614
      %1660 = vst.msk [vmem:[#allocation2 + $0x20] sm:$0xff] %vm1655, %v1616
      %1661 = vst.msk [vmem:[#allocation2 + $0x28] sm:$0xff] %vm1655, %v1618
      %1662 = vst.msk [vmem:[#allocation2 + $0x30] sm:$0xff] %vm1655, %v1620
      %1663 = vst.msk [vmem:[#allocation2 + $0x38] sm:$0xff] %vm1655, %v1622
      %1664 = vst.msk [vmem:[#allocation2 + $0x40] sm:$0xff] %vm1655, %v1624
      %1665 = vst.msk [vmem:[#allocation2 + $0x48] sm:$0xff] %vm1655, %v1626
      %1666 = vst.msk [vmem:[#allocation2 + $0x50] sm:$0xff] %vm1655, %v1628
      %1667 = vst.msk [vmem:[#allocation2 + $0x58] sm:$0xff] %vm1655, %v1630
      %1668 = vst.msk [vmem:[#allocation2 + $0x60] sm:$0xff] %vm1655, %v1632
      %1669 = vst.msk [vmem:[#allocation2 + $0x68] sm:$0xff] %vm1655, %v1634
      %1670 = vst.msk [vmem:[#allocation2 + $0x70] sm:$0xff] %vm1655, %v1636
      %1671 = vst.msk [vmem:[#allocation2 + $0x78] sm:$0xff] %vm1655, %v1638
      %v1672 = vld [vmem:[%s407] sm:$0xf]
      %v1673 = vld [vmem:[%s407 + $0x4] sm:$0xf]
      %v1674 = vld [vmem:[%s407 + $0x8] sm:$0x1]
      %v1675 = vld [vmem:[%s407 + $0xc] sm:$0xf]
      %v1676 = vld [vmem:[%s407 + $0x10] sm:$0xf]
      %v1677 = vld [vmem:[%s407 + $0x14] sm:$0x1]
      %v1678 = vld [vmem:[%s407 + $0x18] sm:$0xf]
      %v1679 = vld [vmem:[%s407 + $0x1c] sm:$0xf]
      %v1680 = vld [vmem:[%s407 + $0x20] sm:$0x1]
      %v1681 = vld [vmem:[%s407 + $0x24] sm:$0xf]
      %v1682 = vld [vmem:[%s407 + $0x28] sm:$0xf]
      %v1683 = vld [vmem:[%s407 + $0x2c] sm:$0x1]
      %v1684 = vld [vmem:[%s407 + $0x30] sm:$0xf]
      %v1685 = vld [vmem:[%s407 + $0x34] sm:$0xf]
      %v1686 = vld [vmem:[%s407 + $0x38] sm:$0x1]
      %v1687 = vld [vmem:[%s407 + $0x3c] sm:$0xf]
      %v1688 = vld [vmem:[%s407 + $0x40] sm:$0xf]
      %v1689 = vld [vmem:[%s407 + $0x44] sm:$0x1]
      %v1690 = vld [vmem:[%s407 + $0x48] sm:$0xf]
      %v1691 = vld [vmem:[%s407 + $0x4c] sm:$0xf]
      %v1692 = vld [vmem:[%s407 + $0x50] sm:$0x1]
      %v1693 = vld [vmem:[%s407 + $0x54] sm:$0xf]
      %v1694 = vld [vmem:[%s407 + $0x58] sm:$0xf]
      %v1695 = vld [vmem:[%s407 + $0x5c] sm:$0x1]
      %v1696 = vld [vmem:[%s407 + $0x60] sm:$0xf]
      %v1697 = vld [vmem:[%s407 + $0x64] sm:$0xf]
      %v1698 = vld [vmem:[%s407 + $0x68] sm:$0x1]
      %v1699 = vld [vmem:[%s407 + $0x6c] sm:$0xf]
      %v1700 = vld [vmem:[%s407 + $0x70] sm:$0xf]
      %v1701 = vld [vmem:[%s407 + $0x74] sm:$0x1]
      %v1702 = vld [vmem:[%s407 + $0x78] sm:$0xf]
      %v1703 = vld [vmem:[%s407 + $0x7c] sm:$0xf]
      %v1704 = vld [vmem:[%s407 + $0x80] sm:$0x1]
      %v1705 = vld [vmem:[%s407 + $0x84] sm:$0xf]
      %v1706 = vld [vmem:[%s407 + $0x88] sm:$0xf]
      %v1707 = vld [vmem:[%s407 + $0x8c] sm:$0x1]
      %v1708 = vld [vmem:[%s407 + $0x90] sm:$0xf]
      %v1709 = vld [vmem:[%s407 + $0x94] sm:$0xf]
      %v1710 = vld [vmem:[%s407 + $0x98] sm:$0x1]
      %v1711 = vld [vmem:[%s407 + $0x9c] sm:$0xf]
      %v1712 = vld [vmem:[%s407 + $0xa0] sm:$0xf]
      %v1713 = vld [vmem:[%s407 + $0xa4] sm:$0x1]
      %v1714 = vld [vmem:[%s407 + $0xa8] sm:$0xf]
      %v1715 = vld [vmem:[%s407 + $0xac] sm:$0xf]
      %v1716 = vld [vmem:[%s407 + $0xb0] sm:$0x1]
      %v1717 = vld [vmem:[%s407 + $0xb4] sm:$0xf]
      %v1718 = vld [vmem:[%s407 + $0xb8] sm:$0xf]
      %v1719 = vld [vmem:[%s407 + $0xbc] sm:$0x1]
      %vm1720 = vsmask.f32 256
      %vm1721 = vsmask.f32 4368
      %vm1722 = vmor %vm1720, %vm1721
      %v1724 = vshrl.u32 %v675, 16
      %v1726 = vrot.slane %v1724, 7
      %v1727 = vshll.u32 %v675, 16
      %v1729 = vor.u32 %v1726, %v1727
      %v1730 = vrot.slane %v1726, 4
      %v1732 = vshrl.u32 %v676, 16
      %v1734 = vrot.slane %v1732, 7
      %v1735 = vshll.u32 %v676, 16
      %v1737 = vor.u32 %v1734, %v1735
      %v1738 = vsel %vm1722, %v1730, %v1737
      %v1739 = vrot.slane %v1734, 4
      %v1741 = vshrl.u32 %v677, 16
      %v1743 = vrot.slane %v1741, 7
      %v1744 = vshll.u32 %v677, 16
      %v1746 = vor.u32 %v1743, %v1744
      %v1747 = vrot.slane %v1743, 4
      %v1749 = vshrl.u32 %v678, 16
      %v1751 = vrot.slane %v1749, 7
      %v1752 = vshll.u32 %v678, 16
      %v1754 = vor.u32 %v1751, %v1752
      %v1755 = vsel %vm1722, %v1747, %v1754
      %v1756 = vrot.slane %v1751, 4
      %v1758 = vshrl.u32 %v679, 16
      %v1760 = vrot.slane %v1758, 7
      %v1761 = vshll.u32 %v679, 16
      %v1763 = vor.u32 %v1760, %v1761
      %v1764 = vrot.slane %v1760, 4
      %v1766 = vshrl.u32 %v680, 16
      %v1768 = vrot.slane %v1766, 7
      %v1769 = vshll.u32 %v680, 16
      %v1771 = vor.u32 %v1768, %v1769
      %v1772 = vsel %vm1722, %v1764, %v1771
      %v1773 = vrot.slane %v1768, 4
      %v1775 = vshrl.u32 %v681, 16
      %v1777 = vrot.slane %v1775, 7
      %v1778 = vshll.u32 %v681, 16
      %v1780 = vor.u32 %v1777, %v1778
      %v1781 = vrot.slane %v1777, 4
      %v1783 = vshrl.u32 %v682, 16
      %v1785 = vrot.slane %v1783, 7
      %v1786 = vshll.u32 %v682, 16
      %v1788 = vor.u32 %v1785, %v1786
      %v1789 = vsel %vm1722, %v1781, %v1788
      %v1790 = vrot.slane %v1785, 4
      %v1792 = vshrl.u32 %v683, 16
      %v1794 = vrot.slane %v1792, 7
      %v1795 = vshll.u32 %v683, 16
      %v1797 = vor.u32 %v1794, %v1795
      %v1798 = vrot.slane %v1794, 4
      %v1800 = vshrl.u32 %v684, 16
      %v1802 = vrot.slane %v1800, 7
      %v1803 = vshll.u32 %v684, 16
      %v1805 = vor.u32 %v1802, %v1803
      %v1806 = vsel %vm1722, %v1798, %v1805
      %v1807 = vrot.slane %v1802, 4
      %v1809 = vshrl.u32 %v685, 16
      %v1811 = vrot.slane %v1809, 7
      %v1812 = vshll.u32 %v685, 16
      %v1814 = vor.u32 %v1811, %v1812
      %v1815 = vrot.slane %v1811, 4
      %v1817 = vshrl.u32 %v686, 16
      %v1819 = vrot.slane %v1817, 7
      %v1820 = vshll.u32 %v686, 16
      %v1822 = vor.u32 %v1819, %v1820
      %v1823 = vsel %vm1722, %v1815, %v1822
      %v1824 = vrot.slane %v1819, 4
      %v1826 = vshrl.u32 %v687, 16
      %v1828 = vrot.slane %v1826, 7
      %v1829 = vshll.u32 %v687, 16
      %v1831 = vor.u32 %v1828, %v1829
      %v1832 = vrot.slane %v1828, 4
      %v1834 = vshrl.u32 %v688, 16
      %v1836 = vrot.slane %v1834, 7
      %v1837 = vshll.u32 %v688, 16
      %v1839 = vor.u32 %v1836, %v1837
      %v1840 = vsel %vm1722, %v1832, %v1839
      %v1841 = vrot.slane %v1836, 4
      %v1843 = vshrl.u32 %v689, 16
      %v1845 = vrot.slane %v1843, 7
      %v1846 = vshll.u32 %v689, 16
      %v1848 = vor.u32 %v1845, %v1846
      %v1849 = vrot.slane %v1845, 4
      %v1851 = vshrl.u32 %v690, 16
      %v1853 = vrot.slane %v1851, 7
      %v1854 = vshll.u32 %v690, 16
      %v1856 = vor.u32 %v1853, %v1854
      %v1857 = vsel %vm1722, %v1849, %v1856
      %v1858 = vrot.slane %v1853, 4
      %v1860 = vshrl.u32 %v691, 16
      %v1862 = vrot.slane %v1860, 7
      %v1863 = vshll.u32 %v691, 16
      %v1865 = vor.u32 %v1862, %v1863
      %v1866 = vrot.slane %v1862, 4
      %v1868 = vshrl.u32 %v692, 16
      %v1870 = vrot.slane %v1868, 7
      %v1871 = vshll.u32 %v692, 16
      %v1873 = vor.u32 %v1870, %v1871
      %v1874 = vsel %vm1722, %v1866, %v1873
      %v1875 = vrot.slane %v1870, 4
      %v1877 = vshrl.u32 %v693, 16
      %v1879 = vrot.slane %v1877, 7
      %v1880 = vshll.u32 %v693, 16
      %v1882 = vor.u32 %v1879, %v1880
      %v1883 = vrot.slane %v1879, 4
      %v1885 = vshrl.u32 %v694, 16
      %v1887 = vrot.slane %v1885, 7
      %v1888 = vshll.u32 %v694, 16
      %v1890 = vor.u32 %v1887, %v1888
      %v1891 = vsel %vm1722, %v1883, %v1890
      %v1892 = vrot.slane %v1887, 4
      %v1894 = vshrl.u32 %v695, 16
      %v1896 = vrot.slane %v1894, 7
      %v1897 = vshll.u32 %v695, 16
      %v1899 = vor.u32 %v1896, %v1897
      %v1900 = vrot.slane %v1896, 4
      %v1902 = vshrl.u32 %v696, 16
      %v1904 = vrot.slane %v1902, 7
      %v1905 = vshll.u32 %v696, 16
      %v1907 = vor.u32 %v1904, %v1905
      %v1908 = vsel %vm1722, %v1900, %v1907
      %v1909 = vrot.slane %v1904, 4
      %v1911 = vshrl.u32 %v697, 16
      %v1913 = vrot.slane %v1911, 7
      %v1914 = vshll.u32 %v697, 16
      %v1916 = vor.u32 %v1913, %v1914
      %v1917 = vrot.slane %v1913, 4
      %v1919 = vshrl.u32 %v698, 16
      %v1921 = vrot.slane %v1919, 7
      %v1922 = vshll.u32 %v698, 16
      %v1924 = vor.u32 %v1921, %v1922
      %v1925 = vsel %vm1722, %v1917, %v1924
      %v1926 = vrot.slane %v1921, 4
      %v1928 = vshrl.u32 %v699, 16
      %v1930 = vrot.slane %v1928, 7
      %v1931 = vshll.u32 %v699, 16
      %v1933 = vor.u32 %v1930, %v1931
      %v1934 = vrot.slane %v1930, 4
      %v1936 = vshrl.u32 %v700, 16
      %v1938 = vrot.slane %v1936, 7
      %v1939 = vshll.u32 %v700, 16
      %v1941 = vor.u32 %v1938, %v1939
      %v1942 = vsel %vm1722, %v1934, %v1941
      %v1943 = vrot.slane %v1938, 4
      %v1945 = vshrl.u32 %v701, 16
      %v1947 = vrot.slane %v1945, 7
      %v1948 = vshll.u32 %v701, 16
      %v1950 = vor.u32 %v1947, %v1948
      %v1951 = vrot.slane %v1947, 4
      %v1953 = vshrl.u32 %v702, 16
      %v1955 = vrot.slane %v1953, 7
      %v1956 = vshll.u32 %v702, 16
      %v1958 = vor.u32 %v1955, %v1956
      %v1959 = vsel %vm1722, %v1951, %v1958
      %v1960 = vrot.slane %v1955, 4
      %v1962 = vshrl.u32 %v703, 16
      %v1964 = vrot.slane %v1962, 7
      %v1965 = vshll.u32 %v703, 16
      %v1967 = vor.u32 %v1964, %v1965
      %v1968 = vrot.slane %v1964, 4
      %v1970 = vshrl.u32 %v704, 16
      %v1972 = vrot.slane %v1970, 7
      %v1973 = vshll.u32 %v704, 16
      %v1975 = vor.u32 %v1972, %v1973
      %v1976 = vsel %vm1722, %v1968, %v1975
      %v1977 = vrot.slane %v1972, 4
      %v1979 = vshrl.u32 %v705, 16
      %v1981 = vrot.slane %v1979, 7
      %v1982 = vshll.u32 %v705, 16
      %v1984 = vor.u32 %v1981, %v1982
      %v1985 = vrot.slane %v1981, 4
      %v1987 = vshrl.u32 %v706, 16
      %v1989 = vrot.slane %v1987, 7
      %v1990 = vshll.u32 %v706, 16
      %v1992 = vor.u32 %v1989, %v1990
      %v1993 = vsel %vm1722, %v1985, %v1992
      %v1994 = vrot.slane %v1989, 4
      %v2043 = vmul.bf16 %v1672, %v1729
      %v2044 = vmul.bf16 %v1673, %v1738
      %v2045 = vmul.bf16 %v1674, %v1739
      %v2046 = vmul.bf16 %v1675, %v1746
      %v2047 = vmul.bf16 %v1676, %v1755
      %v2048 = vmul.bf16 %v1677, %v1756
      %v2049 = vmul.bf16 %v1678, %v1763
      %v2050 = vmul.bf16 %v1679, %v1772
      %v2051 = vmul.bf16 %v1680, %v1773
      %v2052 = vmul.bf16 %v1681, %v1780
      %v2053 = vmul.bf16 %v1682, %v1789
      %v2054 = vmul.bf16 %v1683, %v1790
      %v2055 = vmul.bf16 %v1684, %v1797
      %v2056 = vmul.bf16 %v1685, %v1806
      %v2057 = vmul.bf16 %v1686, %v1807
      %v2058 = vmul.bf16 %v1687, %v1814
      %v2059 = vmul.bf16 %v1688, %v1823
      %v2060 = vmul.bf16 %v1689, %v1824
      %v2061 = vmul.bf16 %v1690, %v1831
      %v2062 = vmul.bf16 %v1691, %v1840
      %v2063 = vmul.bf16 %v1692, %v1841
      %v2064 = vmul.bf16 %v1693, %v1848
      %v2065 = vmul.bf16 %v1694, %v1857
      %v2066 = vmul.bf16 %v1695, %v1858
      %v2067 = vmul.bf16 %v1696, %v1865
      %v2068 = vmul.bf16 %v1697, %v1874
      %v2069 = vmul.bf16 %v1698, %v1875
      %v2070 = vmul.bf16 %v1699, %v1882
      %v2071 = vmul.bf16 %v1700, %v1891
      %v2072 = vmul.bf16 %v1701, %v1892
      %v2073 = vmul.bf16 %v1702, %v1899
      %v2074 = vmul.bf16 %v1703, %v1908
      %v2075 = vmul.bf16 %v1704, %v1909
      %v2076 = vmul.bf16 %v1705, %v1916
      %v2077 = vmul.bf16 %v1706, %v1925
      %v2078 = vmul.bf16 %v1707, %v1926
      %v2079 = vmul.bf16 %v1708, %v1933
      %v2080 = vmul.bf16 %v1709, %v1942
      %v2081 = vmul.bf16 %v1710, %v1943
      %v2082 = vmul.bf16 %v1711, %v1950
      %v2083 = vmul.bf16 %v1712, %v1959
      %v2084 = vmul.bf16 %v1713, %v1960
      %v2085 = vmul.bf16 %v1714, %v1967
      %v2086 = vmul.bf16 %v1715, %v1976
      %v2087 = vmul.bf16 %v1716, %v1977
      %v2088 = vmul.bf16 %v1717, %v1984
      %v2089 = vmul.bf16 %v1718, %v1993
      %v2090 = vmul.bf16 %v1719, %v1994
      %vm2091 = vsmask.f32 3328
      %vm2092 = vsmask.f32 7440
      %vm2093 = vmor %vm2091, %vm2092
      %v2095 = vshrl.u32 %v2043, 16
      %v2097 = vrot.slane %v2095, 4
      %v2098 = vshll.u32 %v2043, 16
      %v2100 = vrot.slane %v2098, 5
      %v2101 = vor.u32 %v2097, %v2100
      %v2102 = vrot.slane %v2101, 4
      %v2104 = vshll.u32 %v2044, 16
      %v2106 = vrot.slane %v2104, 5
      %v2107 = vsel %vm2093, %v2102, %v2106
      %v2108 = vshrl.u32 %v2044, 16
      %v2110 = vrot.slane %v2108, 4
      %v2111 = vor.u32 %v2110, %v2106
      %v2112 = vrot.slane %v2111, 4
      %v2114 = vshll.u32 %v2045, 16
      %v2116 = vrot.slane %v2114, 5
      %v2117 = vsel %vm2093, %v2112, %v2116
      %v2119 = vshrl.u32 %v2046, 16
      %v2121 = vrot.slane %v2119, 4
      %v2122 = vshll.u32 %v2046, 16
      %v2124 = vrot.slane %v2122, 5
      %v2125 = vor.u32 %v2121, %v2124
      %v2126 = vrot.slane %v2125, 4
      %v2128 = vshll.u32 %v2047, 16
      %v2130 = vrot.slane %v2128, 5
      %v2131 = vsel %vm2093, %v2126, %v2130
      %v2132 = vshrl.u32 %v2047, 16
      %v2134 = vrot.slane %v2132, 4
      %v2135 = vor.u32 %v2134, %v2130
      %v2136 = vrot.slane %v2135, 4
      %v2138 = vshll.u32 %v2048, 16
      %v2140 = vrot.slane %v2138, 5
      %v2141 = vsel %vm2093, %v2136, %v2140
      %v2143 = vshrl.u32 %v2049, 16
      %v2145 = vrot.slane %v2143, 4
      %v2146 = vshll.u32 %v2049, 16
      %v2148 = vrot.slane %v2146, 5
      %v2149 = vor.u32 %v2145, %v2148
      %v2150 = vrot.slane %v2149, 4
      %v2152 = vshll.u32 %v2050, 16
      %v2154 = vrot.slane %v2152, 5
      %v2155 = vsel %vm2093, %v2150, %v2154
      %v2156 = vshrl.u32 %v2050, 16
      %v2158 = vrot.slane %v2156, 4
      %v2159 = vor.u32 %v2158, %v2154
      %v2160 = vrot.slane %v2159, 4
      %v2162 = vshll.u32 %v2051, 16
      %v2164 = vrot.slane %v2162, 5
      %v2165 = vsel %vm2093, %v2160, %v2164
      %v2167 = vshrl.u32 %v2052, 16
      %v2169 = vrot.slane %v2167, 4
      %v2170 = vshll.u32 %v2052, 16
      %v2172 = vrot.slane %v2170, 5
      %v2173 = vor.u32 %v2169, %v2172
      %v2174 = vrot.slane %v2173, 4
      %v2176 = vshll.u32 %v2053, 16
      %v2178 = vrot.slane %v2176, 5
      %v2179 = vsel %vm2093, %v2174, %v2178
      %v2180 = vshrl.u32 %v2053, 16
      %v2182 = vrot.slane %v2180, 4
      %v2183 = vor.u32 %v2182, %v2178
      %v2184 = vrot.slane %v2183, 4
      %v2186 = vshll.u32 %v2054, 16
      %v2188 = vrot.slane %v2186, 5
      %v2189 = vsel %vm2093, %v2184, %v2188
      %v2191 = vshrl.u32 %v2055, 16
      %v2193 = vrot.slane %v2191, 4
      %v2194 = vshll.u32 %v2055, 16
      %v2196 = vrot.slane %v2194, 5
      %v2197 = vor.u32 %v2193, %v2196
      %v2198 = vrot.slane %v2197, 4
      %v2200 = vshll.u32 %v2056, 16
      %v2202 = vrot.slane %v2200, 5
      %v2203 = vsel %vm2093, %v2198, %v2202
      %v2204 = vshrl.u32 %v2056, 16
      %v2206 = vrot.slane %v2204, 4
      %v2207 = vor.u32 %v2206, %v2202
      %v2208 = vrot.slane %v2207, 4
      %v2210 = vshll.u32 %v2057, 16
      %v2212 = vrot.slane %v2210, 5
      %v2213 = vsel %vm2093, %v2208, %v2212
      %v2215 = vshrl.u32 %v2058, 16
      %v2217 = vrot.slane %v2215, 4
      %v2218 = vshll.u32 %v2058, 16
      %v2220 = vrot.slane %v2218, 5
      %v2221 = vor.u32 %v2217, %v2220
      %v2222 = vrot.slane %v2221, 4
      %v2224 = vshll.u32 %v2059, 16
      %v2226 = vrot.slane %v2224, 5
      %v2227 = vsel %vm2093, %v2222, %v2226
      %v2228 = vshrl.u32 %v2059, 16
      %v2230 = vrot.slane %v2228, 4
      %v2231 = vor.u32 %v2230, %v2226
      %v2232 = vrot.slane %v2231, 4
      %v2234 = vshll.u32 %v2060, 16
      %v2236 = vrot.slane %v2234, 5
      %v2237 = vsel %vm2093, %v2232, %v2236
      %v2239 = vshrl.u32 %v2061, 16
      %v2241 = vrot.slane %v2239, 4
      %v2242 = vshll.u32 %v2061, 16
      %v2244 = vrot.slane %v2242, 5
      %v2245 = vor.u32 %v2241, %v2244
      %v2246 = vrot.slane %v2245, 4
      %v2248 = vshll.u32 %v2062, 16
      %v2250 = vrot.slane %v2248, 5
      %v2251 = vsel %vm2093, %v2246, %v2250
      %v2252 = vshrl.u32 %v2062, 16
      %v2254 = vrot.slane %v2252, 4
      %v2255 = vor.u32 %v2254, %v2250
      %v2256 = vrot.slane %v2255, 4
      %v2258 = vshll.u32 %v2063, 16
      %v2260 = vrot.slane %v2258, 5
      %v2261 = vsel %vm2093, %v2256, %v2260
      %v2263 = vshrl.u32 %v2064, 16
      %v2265 = vrot.slane %v2263, 4
      %v2266 = vshll.u32 %v2064, 16
      %v2268 = vrot.slane %v2266, 5
      %v2269 = vor.u32 %v2265, %v2268
      %v2270 = vrot.slane %v2269, 4
      %v2272 = vshll.u32 %v2065, 16
      %v2274 = vrot.slane %v2272, 5
      %v2275 = vsel %vm2093, %v2270, %v2274
      %v2276 = vshrl.u32 %v2065, 16
      %v2278 = vrot.slane %v2276, 4
      %v2279 = vor.u32 %v2278, %v2274
      %v2280 = vrot.slane %v2279, 4
      %v2282 = vshll.u32 %v2066, 16
      %v2284 = vrot.slane %v2282, 5
      %v2285 = vsel %vm2093, %v2280, %v2284
      %v2287 = vshrl.u32 %v2067, 16
      %v2289 = vrot.slane %v2287, 4
      %v2290 = vshll.u32 %v2067, 16
      %v2292 = vrot.slane %v2290, 5
      %v2293 = vor.u32 %v2289, %v2292
      %v2294 = vrot.slane %v2293, 4
      %v2296 = vshll.u32 %v2068, 16
      %v2298 = vrot.slane %v2296, 5
      %v2299 = vsel %vm2093, %v2294, %v2298
      %v2300 = vshrl.u32 %v2068, 16
      %v2302 = vrot.slane %v2300, 4
      %v2303 = vor.u32 %v2302, %v2298
      %v2304 = vrot.slane %v2303, 4
      %v2306 = vshll.u32 %v2069, 16
      %v2308 = vrot.slane %v2306, 5
      %v2309 = vsel %vm2093, %v2304, %v2308
      %v2311 = vshrl.u32 %v2070, 16
      %v2313 = vrot.slane %v2311, 4
      %v2314 = vshll.u32 %v2070, 16
      %v2316 = vrot.slane %v2314, 5
      %v2317 = vor.u32 %v2313, %v2316
      %v2318 = vrot.slane %v2317, 4
      %v2320 = vshll.u32 %v2071, 16
      %v2322 = vrot.slane %v2320, 5
      %v2323 = vsel %vm2093, %v2318, %v2322
      %v2324 = vshrl.u32 %v2071, 16
      %v2326 = vrot.slane %v2324, 4
      %v2327 = vor.u32 %v2326, %v2322
      %v2328 = vrot.slane %v2327, 4
      %v2330 = vshll.u32 %v2072, 16
      %v2332 = vrot.slane %v2330, 5
      %v2333 = vsel %vm2093, %v2328, %v2332
      %v2335 = vshrl.u32 %v2073, 16
      %v2337 = vrot.slane %v2335, 4
      %v2338 = vshll.u32 %v2073, 16
      %v2340 = vrot.slane %v2338, 5
      %v2341 = vor.u32 %v2337, %v2340
      %v2342 = vrot.slane %v2341, 4
      %v2344 = vshll.u32 %v2074, 16
      %v2346 = vrot.slane %v2344, 5
      %v2347 = vsel %vm2093, %v2342, %v2346
      %v2348 = vshrl.u32 %v2074, 16
      %v2350 = vrot.slane %v2348, 4
      %v2351 = vor.u32 %v2350, %v2346
      %v2352 = vrot.slane %v2351, 4
      %v2354 = vshll.u32 %v2075, 16
      %v2356 = vrot.slane %v2354, 5
      %v2357 = vsel %vm2093, %v2352, %v2356
      %v2359 = vshrl.u32 %v2076, 16
      %v2361 = vrot.slane %v2359, 4
      %v2362 = vshll.u32 %v2076, 16
      %v2364 = vrot.slane %v2362, 5
      %v2365 = vor.u32 %v2361, %v2364
      %v2366 = vrot.slane %v2365, 4
      %v2368 = vshll.u32 %v2077, 16
      %v2370 = vrot.slane %v2368, 5
      %v2371 = vsel %vm2093, %v2366, %v2370
      %v2372 = vshrl.u32 %v2077, 16
      %v2374 = vrot.slane %v2372, 4
      %v2375 = vor.u32 %v2374, %v2370
      %v2376 = vrot.slane %v2375, 4
      %v2378 = vshll.u32 %v2078, 16
      %v2380 = vrot.slane %v2378, 5
      %v2381 = vsel %vm2093, %v2376, %v2380
      %v2383 = vshrl.u32 %v2079, 16
      %v2385 = vrot.slane %v2383, 4
      %v2386 = vshll.u32 %v2079, 16
      %v2388 = vrot.slane %v2386, 5
      %v2389 = vor.u32 %v2385, %v2388
      %v2390 = vrot.slane %v2389, 4
      %v2392 = vshll.u32 %v2080, 16
      %v2394 = vrot.slane %v2392, 5
      %v2395 = vsel %vm2093, %v2390, %v2394
      %v2396 = vshrl.u32 %v2080, 16
      %v2398 = vrot.slane %v2396, 4
      %v2399 = vor.u32 %v2398, %v2394
      %v2400 = vrot.slane %v2399, 4
      %v2402 = vshll.u32 %v2081, 16
      %v2404 = vrot.slane %v2402, 5
      %v2405 = vsel %vm2093, %v2400, %v2404
      %v2407 = vshrl.u32 %v2082, 16
      %v2409 = vrot.slane %v2407, 4
      %v2410 = vshll.u32 %v2082, 16
      %v2412 = vrot.slane %v2410, 5
      %v2413 = vor.u32 %v2409, %v2412
      %v2414 = vrot.slane %v2413, 4
      %v2416 = vshll.u32 %v2083, 16
      %v2418 = vrot.slane %v2416, 5
      %v2419 = vsel %vm2093, %v2414, %v2418
      %v2420 = vshrl.u32 %v2083, 16
      %v2422 = vrot.slane %v2420, 4
      %v2423 = vor.u32 %v2422, %v2418
      %v2424 = vrot.slane %v2423, 4
      %v2426 = vshll.u32 %v2084, 16
      %v2428 = vrot.slane %v2426, 5
      %v2429 = vsel %vm2093, %v2424, %v2428
      %v2431 = vshrl.u32 %v2085, 16
      %v2433 = vrot.slane %v2431, 4
      %v2434 = vshll.u32 %v2085, 16
      %v2436 = vrot.slane %v2434, 5
      %v2437 = vor.u32 %v2433, %v2436
      %v2438 = vrot.slane %v2437, 4
      %v2440 = vshll.u32 %v2086, 16
      %v2442 = vrot.slane %v2440, 5
      %v2443 = vsel %vm2093, %v2438, %v2442
      %v2444 = vshrl.u32 %v2086, 16
      %v2446 = vrot.slane %v2444, 4
      %v2447 = vor.u32 %v2446, %v2442
      %v2448 = vrot.slane %v2447, 4
      %v2450 = vshll.u32 %v2087, 16
      %v2452 = vrot.slane %v2450, 5
      %v2453 = vsel %vm2093, %v2448, %v2452
      %v2455 = vshrl.u32 %v2088, 16
      %v2457 = vrot.slane %v2455, 4
      %v2458 = vshll.u32 %v2088, 16
      %v2460 = vrot.slane %v2458, 5
      %v2461 = vor.u32 %v2457, %v2460
      %v2462 = vrot.slane %v2461, 4
      %v2464 = vshll.u32 %v2089, 16
      %v2466 = vrot.slane %v2464, 5
      %v2467 = vsel %vm2093, %v2462, %v2466
      %v2468 = vshrl.u32 %v2089, 16
      %v2470 = vrot.slane %v2468, 4
      %v2471 = vor.u32 %v2470, %v2466
      %v2472 = vrot.slane %v2471, 4
      %v2474 = vshll.u32 %v2090, 16
      %v2476 = vrot.slane %v2474, 5
      %v2477 = vsel %vm2093, %v2472, %v2476
      %s2478 = scalar_lea.vmem %s4, 40
      %v2479 = vld [vmem:[%s2478] sm:$0xf]
      %v2480 = vld [vmem:[%s2478 + $0x4] sm:$0xf]
      %v2481 = vld [vmem:[%s2478 + $0x8] sm:$0xf]
      %v2482 = vld [vmem:[%s2478 + $0xc] sm:$0xf]
      %v2483 = vld [vmem:[%s2478 + $0x10] sm:$0x3]
      %s2484 = scalar_lea.vmem %s5, 2
      %v2485 = vld [vmem:[%s2484] sm:$0x1]
      %v2487 = vlaneseq
      %v2488 = vshrl.u32 %v2487, 7
      %v2489 = vsub.s32 0, %v2488
      %v2490 = vrot.slane %v2485, %v2489
      %v2492 = vunpack.c.l.b16 %v2107
      %v2493 = vunpack.c.l.b16 %v2117
      %v2494 = vunpack.c.l.b16 %v2131
      %v2495 = vunpack.c.l.b16 %v2141
      %v2496 = vunpack.c.l.b16 %v2155
      %v2497 = vunpack.c.l.b16 %v2165
      %v2498 = vunpack.c.l.b16 %v2179
      %v2499 = vunpack.c.l.b16 %v2189
      %v2500 = vunpack.c.l.b16 %v2203
      %v2501 = vunpack.c.l.b16 %v2213
      %v2502 = vunpack.c.l.b16 %v2227
      %v2503 = vunpack.c.l.b16 %v2237
      %v2504 = vunpack.c.l.b16 %v2251
      %v2505 = vunpack.c.l.b16 %v2261
      %v2506 = vunpack.c.l.b16 %v2275
      %v2507 = vunpack.c.l.b16 %v2285
      %v2508 = vunpack.c.l.b16 %v2299
      %v2509 = vunpack.c.l.b16 %v2309
      %v2510 = vunpack.c.l.b16 %v2323
      %v2511 = vunpack.c.l.b16 %v2333
      %v2512 = vunpack.c.l.b16 %v2347
      %v2513 = vunpack.c.l.b16 %v2357
      %v2514 = vunpack.c.l.b16 %v2371
      %v2515 = vunpack.c.l.b16 %v2381
      %v2516 = vunpack.c.l.b16 %v2395
      %v2517 = vunpack.c.l.b16 %v2405
      %v2518 = vunpack.c.l.b16 %v2419
      %v2519 = vunpack.c.l.b16 %v2429
      %v2520 = vunpack.c.l.b16 %v2443
      %v2521 = vunpack.c.l.b16 %v2453
      %v2522 = vunpack.c.l.b16 %v2467
      %v2523 = vunpack.c.l.b16 %v2477
      %v2524 = vpack.c.b16 %v2493, %v2492
      %v2525 = vpack.c.b16 %v2495, %v2494
      %v2526 = vpack.c.b16 %v2497, %v2496
      %v2527 = vpack.c.b16 %v2499, %v2498
      %v2528 = vpack.c.b16 %v2501, %v2500
      %v2529 = vpack.c.b16 %v2503, %v2502
      %v2530 = vpack.c.b16 %v2505, %v2504
      %v2531 = vpack.c.b16 %v2507, %v2506
      %v2532 = vpack.c.b16 %v2509, %v2508
      %v2533 = vpack.c.b16 %v2511, %v2510
      %v2534 = vpack.c.b16 %v2513, %v2512
      %v2535 = vpack.c.b16 %v2515, %v2514
      %v2536 = vpack.c.b16 %v2517, %v2516
      %v2537 = vpack.c.b16 %v2519, %v2518
      %v2538 = vpack.c.b16 %v2521, %v2520
      %v2539 = vpack.c.b16 %v2523, %v2522
      %v2545 = vunpack.c.l.b16 %v2479
      %v2546 = vunpack.c.l.b16 %v2480
      %v2547 = vunpack.c.l.b16 %v2481
      %v2548 = vunpack.c.l.b16 %v2482
      %v2549 = vunpack.c.l.b16 %v2483
      %v2550 = vpack.c.b16 %v2546, %v2545
      %v2551 = vpack.c.b16 %v2548, %v2547
      %v2552 = vpack.c.b16 %v2549, %v2549
      %v2556 = vsel %vm878, %v2524, 0
      %v2559 = vsel %vm878, %v2525, 0
      %v2562 = vsel %vm878, %v2526, 0
      %v2565 = vsel %vm878, %v2527, 0
      %v2568 = vsel %vm878, %v2528, 0
      %v2571 = vsel %vm878, %v2529, 0
      %v2574 = vsel %vm878, %v2530, 0
      %v2577 = vsel %vm878, %v2531, 0
      %v2580 = vsel %vm878, %v2532, 0
      %v2583 = vsel %vm878, %v2533, 0
      %v2586 = vsel %vm878, %v2534, 0
      %v2589 = vsel %vm878, %v2535, 0
      %v2592 = vsel %vm878, %v2536, 0
      %v2595 = vsel %vm878, %v2537, 0
      %v2598 = vsel %vm878, %v2538, 0
      %v2601 = vsel %vm878, %v2539, 0
      %v2604 = vsel %vm927, %v2552, 0
      %2606 = vmatprep.subr.bf16.mxu0 0
      %2607 = vmatpush1.bf16.msra.mxu0 %v2550
      %2608 = vmatprep.subr.bf16.mxu0 0
      %2609 = vmatpush1.bf16.msra.mxu0 %v2551
      %2610 = vmatprep.subr.bf16.mxu0 0
      %2611 = vmatpush1.bf16.msra.mxu0 %v2604
      %2612 = vmatprep.subr.bf16.mxu0 0
      %2613 = vmatpush1.bf16.msra.mxu0 0
      %2614 = vmatprep.subr.bf16.mxu0 0
      %2615 = vmatpush1.bf16.msra.mxu0 0
      %2616 = vmatprep.subr.bf16.mxu0 0
      %2617 = vmatpush1.bf16.msra.mxu0 0
      %2618 = vmatprep.subr.bf16.mxu0 0
      %2619 = vmatpush1.bf16.msra.mxu0 0
      %2620 = vmatprep.subr.bf16.mxu0 0
      %2621 = vmatpush1.bf16.msra.mxu0 0
      %2622 = vmatprep.subr.bf16.mxu0 0
      %2623 = vmatpush1.bf16.msra.mxu0 0
      %2624 = vmatprep.subr.bf16.mxu0 0
      %2625 = vmatpush1.bf16.msra.mxu0 0
      %2626 = vmatprep.subr.bf16.mxu0 0
      %2627 = vmatpush1.bf16.msra.mxu0 0
      %2628 = vmatprep.subr.bf16.mxu0 0
      %2629 = vmatpush1.bf16.msra.mxu0 0
      %2630 = vmatprep.subr.bf16.mxu0 0
      %2631 = vmatpush1.bf16.msra.mxu0 0
      %2632 = vmatprep.subr.bf16.mxu0 0
      %2633 = vmatpush1.bf16.msra.mxu0 0
      %2634 = vmatprep.subr.bf16.mxu0 0
      %2635 = vmatpush1.bf16.msra.mxu0 0
      %2636 = vmatprep.subr.bf16.mxu0 0
      %2637 = vmatpush1.bf16.msra.mxu0 0
      %2638 = vmatprep.mubr.bf16.mxu0 0
      %2639 = vmatmul.mubr.bf16.gmra.mrb[0].mxu0 %v2556
      %v2640 = vpop.f32.mrb[0].mxu0
      %v2641 = vadd.f32 %v2490, %v2640
      %v2642 = vpop.f32.mrb[0].mxu0
      %v2643 = vpop.f32.mrb[0].mxu0
      %v2644 = vadd.f32 %v2490, %v2643
      %v2645 = vpop.f32.mrb[0].mxu0
      %2646 = vmatprep.mubr.bf16.mxu0 0
      %2647 = vmatmul.mubr.bf16.gmra.mrb[0].mxu0 %v2559
      %v2648 = vpop.f32.mrb[0].mxu0
      %v2649 = vadd.f32 %v2490, %v2648
      %v2650 = vpop.f32.mrb[0].mxu0
      %v2651 = vpop.f32.mrb[0].mxu0
      %v2652 = vadd.f32 %v2490, %v2651
      %v2653 = vpop.f32.mrb[0].mxu0
      %2654 = vmatprep.mubr.bf16.mxu0 0
      %2655 = vmatmul.mubr.bf16.gmra.mrb[0].mxu0 %v2562
      %v2656 = vpop.f32.mrb[0].mxu0
      %v2657 = vadd.f32 %v2490, %v2656
      %v2658 = vpop.f32.mrb[0].mxu0
      %v2659 = vpop.f32.mrb[0].mxu0
      %v2660 = vadd.f32 %v2490, %v2659
      %v2661 = vpop.f32.mrb[0].mxu0
      %2662 = vmatprep.mubr.bf16.mxu0 0
      %2663 = vmatmul.mubr.bf16.gmra.mrb[0].mxu0 %v2565
      %v2664 = vpop.f32.mrb[0].mxu0
      %v2665 = vadd.f32 %v2490, %v2664
      %v2666 = vpop.f32.mrb[0].mxu0
      %v2667 = vpop.f32.mrb[0].mxu0
      %v2668 = vadd.f32 %v2490, %v2667
      %v2669 = vpop.f32.mrb[0].mxu0
      %2670 = vmatprep.mubr.bf16.mxu0 0
      %2671 = vmatmul.mubr.bf16.gmra.mrb[0].mxu0 %v2568
      %v2672 = vpop.f32.mrb[0].mxu0
      %v2673 = vadd.f32 %v2490, %v2672
      %v2674 = vpop.f32.mrb[0].mxu0
      %v2675 = vpop.f32.mrb[0].mxu0
      %v2676 = vadd.f32 %v2490, %v2675
      %v2677 = vpop.f32.mrb[0].mxu0
      %2678 = vmatprep.mubr.bf16.mxu0 0
      %2679 = vmatmul.mubr.bf16.gmra.mrb[0].mxu0 %v2571
      %v2680 = vpop.f32.mrb[0].mxu0
      %v2681 = vadd.f32 %v2490, %v2680
      %v2682 = vpop.f32.mrb[0].mxu0
      %v2683 = vpop.f32.mrb[0].mxu0
      %v2684 = vadd.f32 %v2490, %v2683
      %v2685 = vpop.f32.mrb[0].mxu0
      %2686 = vmatprep.mubr.bf16.mxu0 0
      %2687 = vmatmul.mubr.bf16.gmra.mrb[0].mxu0 %v2574
      %v2688 = vpop.f32.mrb[0].mxu0
      %v2689 = vadd.f32 %v2490, %v2688
      %v2690 = vpop.f32.mrb[0].mxu0
      %v2691 = vpop.f32.mrb[0].mxu0
      %v2692 = vadd.f32 %v2490, %v2691
      %v2693 = vpop.f32.mrb[0].mxu0
      %2694 = vmatprep.mubr.bf16.mxu0 0
      %2695 = vmatmul.mubr.bf16.gmra.mrb[0].mxu0 %v2577
      %v2696 = vpop.f32.mrb[0].mxu0
      %v2697 = vadd.f32 %v2490, %v2696
      %v2698 = vpop.f32.mrb[0].mxu0
      %v2699 = vpop.f32.mrb[0].mxu0
      %v2700 = vadd.f32 %v2490, %v2699
      %v2701 = vpop.f32.mrb[0].mxu0
      %2702 = vmatprep.mubr.bf16.mxu0 0
      %2703 = vmatmul.mubr.bf16.gmra.mrb[0].mxu0 %v2580
      %v2704 = vpop.f32.mrb[0].mxu0
      %v2705 = vadd.f32 %v2490, %v2704
      %v2706 = vpop.f32.mrb[0].mxu0
      %v2707 = vpop.f32.mrb[0].mxu0
      %v2708 = vadd.f32 %v2490, %v2707
      %v2709 = vpop.f32.mrb[0].mxu0
      %2710 = vmatprep.mubr.bf16.mxu0 0
      %2711 = vmatmul.mubr.bf16.gmra.mrb[0].mxu0 %v2583
      %v2712 = vpop.f32.mrb[0].mxu0
      %v2713 = vadd.f32 %v2490, %v2712
      %v2714 = vpop.f32.mrb[0].mxu0
      %v2715 = vpop.f32.mrb[0].mxu0
      %v2716 = vadd.f32 %v2490, %v2715
      %v2717 = vpop.f32.mrb[0].mxu0
      %2718 = vmatprep.mubr.bf16.mxu0 0
      %2719 = vmatmul.mubr.bf16.gmra.mrb[0].mxu0 %v2586
      %v2720 = vpop.f32.mrb[0].mxu0
      %v2721 = vadd.f32 %v2490, %v2720
      %v2722 = vpop.f32.mrb[0].mxu0
      %v2723 = vpop.f32.mrb[0].mxu0
      %v2724 = vadd.f32 %v2490, %v2723
      %v2725 = vpop.f32.mrb[0].mxu0
      %2726 = vmatprep.mubr.bf16.mxu0 0
      %2727 = vmatmul.mubr.bf16.gmra.mrb[0].mxu0 %v2589
      %v2728 = vpop.f32.mrb[0].mxu0
      %v2729 = vadd.f32 %v2490, %v2728
      %v2730 = vpop.f32.mrb[0].mxu0
      %v2731 = vpop.f32.mrb[0].mxu0
      %v2732 = vadd.f32 %v2490, %v2731
      %v2733 = vpop.f32.mrb[0].mxu0
      %2734 = vmatprep.mubr.bf16.mxu0 0
      %2735 = vmatmul.mubr.bf16.gmra.mrb[0].mxu0 %v2592
      %v2736 = vpop.f32.mrb[0].mxu0
      %v2737 = vadd.f32 %v2490, %v2736
      %v2738 = vpop.f32.mrb[0].mxu0
      %v2739 = vpop.f32.mrb[0].mxu0
      %v2740 = vadd.f32 %v2490, %v2739
      %v2741 = vpop.f32.mrb[0].mxu0
      %2742 = vmatprep.mubr.bf16.mxu0 0
      %2743 = vmatmul.mubr.bf16.gmra.mrb[0].mxu0 %v2595
      %v2744 = vpop.f32.mrb[0].mxu0
      %v2745 = vadd.f32 %v2490, %v2744
      %v2746 = vpop.f32.mrb[0].mxu0
      %v2747 = vpop.f32.mrb[0].mxu0
      %v2748 = vadd.f32 %v2490, %v2747
      %v2749 = vpop.f32.mrb[0].mxu0
      %2750 = vmatprep.mubr.bf16.mxu0 0
      %2751 = vmatmul.mubr.bf16.gmra.mrb[0].mxu0 %v2598
      %v2752 = vpop.f32.mrb[0].mxu0
      %v2753 = vadd.f32 %v2490, %v2752
      %v2754 = vpop.f32.mrb[0].mxu0
      %v2755 = vpop.f32.mrb[0].mxu0
      %v2756 = vadd.f32 %v2490, %v2755
      %v2757 = vpop.f32.mrb[0].mxu0
      %2758 = vmatprep.mubr.bf16.mxu0 0
      %2759 = vmatmul.mubr.bf16.gmra.mrb[0].mxu0 %v2601
      %v2760 = vpop.f32.mrb[0].mxu0
      %v2761 = vadd.f32 %v2490, %v2760
      %v2762 = vpop.f32.mrb[0].mxu0
      %v2763 = vpop.f32.mrb[0].mxu0
      %v2764 = vadd.f32 %v2490, %v2763
      %v2765 = vpop.f32.mrb[0].mxu0
      %2766 = vdwg.mxu0
      %v2767 = vmax.f32 %v2641, 0.0
      %v2768 = vmax.f32 %v2644, 0.0
      %v2769 = vmax.f32 %v2649, 0.0
      %v2770 = vmax.f32 %v2652, 0.0
      %v2771 = vmax.f32 %v2657, 0.0
      %v2772 = vmax.f32 %v2660, 0.0
      %v2773 = vmax.f32 %v2665, 0.0
      %v2774 = vmax.f32 %v2668, 0.0
      %v2775 = vmax.f32 %v2673, 0.0
      %v2776 = vmax.f32 %v2676, 0.0
      %v2777 = vmax.f32 %v2681, 0.0
      %v2778 = vmax.f32 %v2684, 0.0
      %v2779 = vmax.f32 %v2689, 0.0
      %v2780 = vmax.f32 %v2692, 0.0
      %v2781 = vmax.f32 %v2697, 0.0
      %v2782 = vmax.f32 %v2700, 0.0
      %v2783 = vmax.f32 %v2705, 0.0
      %v2784 = vmax.f32 %v2708, 0.0
      %v2785 = vmax.f32 %v2713, 0.0
      %v2786 = vmax.f32 %v2716, 0.0
      %v2787 = vmax.f32 %v2721, 0.0
      %v2788 = vmax.f32 %v2724, 0.0
      %v2789 = vmax.f32 %v2729, 0.0
      %v2790 = vmax.f32 %v2732, 0.0
      %v2791 = vmax.f32 %v2737, 0.0
      %v2792 = vmax.f32 %v2740, 0.0
      %v2793 = vmax.f32 %v2745, 0.0
      %v2794 = vmax.f32 %v2748, 0.0
      %v2795 = vmax.f32 %v2753, 0.0
      %v2796 = vmax.f32 %v2756, 0.0
      %v2797 = vmax.f32 %v2761, 0.0
      %v2798 = vmax.f32 %v2764, 0.0
      %v2799 = vpack.c.bf16 %v2768, %v2767
      %v2800 = vpack.c.bf16 %v2770, %v2769
      %v2801 = vpack.c.bf16 %v2772, %v2771
      %v2802 = vpack.c.bf16 %v2774, %v2773
      %v2803 = vpack.c.bf16 %v2776, %v2775
      %v2804 = vpack.c.bf16 %v2778, %v2777
      %v2805 = vpack.c.bf16 %v2780, %v2779
      %v2806 = vpack.c.bf16 %v2782, %v2781
      %v2807 = vpack.c.bf16 %v2784, %v2783
      %v2808 = vpack.c.bf16 %v2786, %v2785
      %v2809 = vpack.c.bf16 %v2788, %v2787
      %v2810 = vpack.c.bf16 %v2790, %v2789
      %v2811 = vpack.c.bf16 %v2792, %v2791
      %v2812 = vpack.c.bf16 %v2794, %v2793
      %v2813 = vpack.c.bf16 %v2796, %v2795
      %v2814 = vpack.c.bf16 %v2798, %v2797
      %2831 = vrot.lane.b32.xlu0 %v2799, 2
      %v2832 = vpop.permute.xlu0 %2831
      %2833 = vrot.lane.b32.xlu0 %v2800, 2
      %v2834 = vpop.permute.xlu0 %2833
      %2835 = vrot.lane.b32.xlu0 %v2801, 2
      %v2836 = vpop.permute.xlu0 %2835
      %2837 = vrot.lane.b32.xlu0 %v2802, 2
      %v2838 = vpop.permute.xlu0 %2837
      %2839 = vrot.lane.b32.xlu0 %v2803, 2
      %v2840 = vpop.permute.xlu0 %2839
      %2841 = vrot.lane.b32.xlu0 %v2804, 2
      %v2842 = vpop.permute.xlu0 %2841
      %2843 = vrot.lane.b32.xlu0 %v2805, 2
      %v2844 = vpop.permute.xlu0 %2843
      %2845 = vrot.lane.b32.xlu0 %v2806, 2
      %v2846 = vpop.permute.xlu0 %2845
      %2847 = vrot.lane.b32.xlu0 %v2807, 2
      %v2848 = vpop.permute.xlu0 %2847
      %2849 = vrot.lane.b32.xlu0 %v2808, 2
      %v2850 = vpop.permute.xlu0 %2849
      %2851 = vrot.lane.b32.xlu0 %v2809, 2
      %v2852 = vpop.permute.xlu0 %2851
      %2853 = vrot.lane.b32.xlu0 %v2810, 2
      %v2854 = vpop.permute.xlu0 %2853
      %2855 = vrot.lane.b32.xlu0 %v2811, 2
      %v2856 = vpop.permute.xlu0 %2855
      %2857 = vrot.lane.b32.xlu0 %v2812, 2
      %v2858 = vpop.permute.xlu0 %2857
      %2859 = vrot.lane.b32.xlu0 %v2813, 2
      %v2860 = vpop.permute.xlu0 %2859
      %2861 = vrot.lane.b32.xlu0 %v2814, 2
      %v2862 = vpop.permute.xlu0 %2861
      %vm2879 = vcmask 23568
      %2880 = vst.msk [vmem:[#allocation2] sm:$0xff] %vm2879, %v2832
      %2881 = vst.msk [vmem:[#allocation2 + $0x8] sm:$0xff] %vm2879, %v2834
      %2882 = vst.msk [vmem:[#allocation2 + $0x10] sm:$0xff] %vm2879, %v2836
      %2883 = vst.msk [vmem:[#allocation2 + $0x18] sm:$0xff] %vm2879, %v2838
      %2884 = vst.msk [vmem:[#allocation2 + $0x20] sm:$0xff] %vm2879, %v2840
      %2885 = vst.msk [vmem:[#allocation2 + $0x28] sm:$0xff] %vm2879, %v2842
      %2886 = vst.msk [vmem:[#allocation2 + $0x30] sm:$0xff] %vm2879, %v2844
      %2887 = vst.msk [vmem:[#allocation2 + $0x38] sm:$0xff] %vm2879, %v2846
      %2888 = vst.msk [vmem:[#allocation2 + $0x40] sm:$0xff] %vm2879, %v2848
      %2889 = vst.msk [vmem:[#allocation2 + $0x48] sm:$0xff] %vm2879, %v2850
      %2890 = vst.msk [vmem:[#allocation2 + $0x50] sm:$0xff] %vm2879, %v2852
      %2891 = vst.msk [vmem:[#allocation2 + $0x58] sm:$0xff] %vm2879, %v2854
      %2892 = vst.msk [vmem:[#allocation2 + $0x60] sm:$0xff] %vm2879, %v2856
      %2893 = vst.msk [vmem:[#allocation2 + $0x68] sm:$0xff] %vm2879, %v2858
      %2894 = vst.msk [vmem:[#allocation2 + $0x70] sm:$0xff] %vm2879, %v2860
      %2895 = vst.msk [vmem:[#allocation2 + $0x78] sm:$0xff] %vm2879, %v2862
      %v2896 = vld [vmem:[%s1157] sm:$0xf]
      %v2897 = vld [vmem:[%s1157 + $0x4] sm:$0xf]
      %v2898 = vld [vmem:[%s1157 + $0x8] sm:$0x1]
      %v2899 = vld [vmem:[%s1157 + $0xc] sm:$0xf]
      %v2900 = vld [vmem:[%s1157 + $0x10] sm:$0xf]
      %v2901 = vld [vmem:[%s1157 + $0x14] sm:$0x1]
      %v2902 = vld [vmem:[%s1157 + $0x18] sm:$0xf]
      %v2903 = vld [vmem:[%s1157 + $0x1c] sm:$0xf]
      %v2904 = vld [vmem:[%s1157 + $0x20] sm:$0x1]
      %v2905 = vld [vmem:[%s1157 + $0x24] sm:$0xf]
      %v2906 = vld [vmem:[%s1157 + $0x28] sm:$0xf]
      %v2907 = vld [vmem:[%s1157 + $0x2c] sm:$0x1]
      %v2908 = vld [vmem:[%s1157 + $0x30] sm:$0xf]
      %v2909 = vld [vmem:[%s1157 + $0x34] sm:$0xf]
      %v2910 = vld [vmem:[%s1157 + $0x38] sm:$0x1]
      %v2911 = vld [vmem:[%s1157 + $0x3c] sm:$0xf]
      %v2912 = vld [vmem:[%s1157 + $0x40] sm:$0xf]
      %v2913 = vld [vmem:[%s1157 + $0x44] sm:$0x1]
      %v2914 = vld [vmem:[%s1157 + $0x48] sm:$0xf]
      %v2915 = vld [vmem:[%s1157 + $0x4c] sm:$0xf]
      %v2916 = vld [vmem:[%s1157 + $0x50] sm:$0x1]
      %v2917 = vld [vmem:[%s1157 + $0x54] sm:$0xf]
      %v2918 = vld [vmem:[%s1157 + $0x58] sm:$0xf]
      %v2919 = vld [vmem:[%s1157 + $0x5c] sm:$0x1]
      %v2920 = vld [vmem:[%s1157 + $0x60] sm:$0xf]
      %v2921 = vld [vmem:[%s1157 + $0x64] sm:$0xf]
      %v2922 = vld [vmem:[%s1157 + $0x68] sm:$0x1]
      %v2923 = vld [vmem:[%s1157 + $0x6c] sm:$0xf]
      %v2924 = vld [vmem:[%s1157 + $0x70] sm:$0xf]
      %v2925 = vld [vmem:[%s1157 + $0x74] sm:$0x1]
      %v2926 = vld [vmem:[%s1157 + $0x78] sm:$0xf]
      %v2927 = vld [vmem:[%s1157 + $0x7c] sm:$0xf]
      %v2928 = vld [vmem:[%s1157 + $0x80] sm:$0x1]
      %v2929 = vld [vmem:[%s1157 + $0x84] sm:$0xf]
      %v2930 = vld [vmem:[%s1157 + $0x88] sm:$0xf]
      %v2931 = vld [vmem:[%s1157 + $0x8c] sm:$0x1]
      %v2932 = vld [vmem:[%s1157 + $0x90] sm:$0xf]
      %v2933 = vld [vmem:[%s1157 + $0x94] sm:$0xf]
      %v2934 = vld [vmem:[%s1157 + $0x98] sm:$0x1]
      %v2935 = vld [vmem:[%s1157 + $0x9c] sm:$0xf]
      %v2936 = vld [vmem:[%s1157 + $0xa0] sm:$0xf]
      %v2937 = vld [vmem:[%s1157 + $0xa4] sm:$0x1]
      %v2938 = vld [vmem:[%s1157 + $0xa8] sm:$0xf]
      %v2939 = vld [vmem:[%s1157 + $0xac] sm:$0xf]
      %v2940 = vld [vmem:[%s1157 + $0xb0] sm:$0x1]
      %v2941 = vld [vmem:[%s425] sm:$0xf]
      %v2942 = vld [vmem:[%s425 + $0x4] sm:$0xf]
      %v2943 = vld [vmem:[%s425 + $0x8] sm:$0x1]
      %v2944 = vmul.bf16 %v2896, %v1729
      %v2945 = vmul.bf16 %v2897, %v1738
      %v2946 = vmul.bf16 %v2898, %v1739
      %v2947 = vmul.bf16 %v2899, %v1746
      %v2948 = vmul.bf16 %v2900, %v1755
      %v2949 = vmul.bf16 %v2901, %v1756
      %v2950 = vmul.bf16 %v2902, %v1763
      %v2951 = vmul.bf16 %v2903, %v1772
      %v2952 = vmul.bf16 %v2904, %v1773
      %v2953 = vmul.bf16 %v2905, %v1780
      %v2954 = vmul.bf16 %v2906, %v1789
      %v2955 = vmul.bf16 %v2907, %v1790
      %v2956 = vmul.bf16 %v2908, %v1797
      %v2957 = vmul.bf16 %v2909, %v1806
      %v2958 = vmul.bf16 %v2910, %v1807
      %v2959 = vmul.bf16 %v2911, %v1814
      %v2960 = vmul.bf16 %v2912, %v1823
      %v2961 = vmul.bf16 %v2913, %v1824
      %v2962 = vmul.bf16 %v2914, %v1831
      %v2963 = vmul.bf16 %v2915, %v1840
      %v2964 = vmul.bf16 %v2916, %v1841
      %v2965 = vmul.bf16 %v2917, %v1848
      %v2966 = vmul.bf16 %v2918, %v1857
      %v2967 = vmul.bf16 %v2919, %v1858
      %v2968 = vmul.bf16 %v2920, %v1865
      %v2969 = vmul.bf16 %v2921, %v1874
      %v2970 = vmul.bf16 %v2922, %v1875
      %v2971 = vmul.bf16 %v2923, %v1882
      %v2972 = vmul.bf16 %v2924, %v1891
      %v2973 = vmul.bf16 %v2925, %v1892
      %v2974 = vmul.bf16 %v2926, %v1899
      %v2975 = vmul.bf16 %v2927, %v1908
      %v2976 = vmul.bf16 %v2928, %v1909
      %v2977 = vmul.bf16 %v2929, %v1916
      %v2978 = vmul.bf16 %v2930, %v1925
      %v2979 = vmul.bf16 %v2931, %v1926
      %v2980 = vmul.bf16 %v2932, %v1933
      %v2981 = vmul.bf16 %v2933, %v1942
      %v2982 = vmul.bf16 %v2934, %v1943
      %v2983 = vmul.bf16 %v2935, %v1950
      %v2984 = vmul.bf16 %v2936, %v1959
      %v2985 = vmul.bf16 %v2937, %v1960
      %v2986 = vmul.bf16 %v2938, %v1967
      %v2987 = vmul.bf16 %v2939, %v1976
      %v2988 = vmul.bf16 %v2940, %v1977
      %v2989 = vmul.bf16 %v2941, %v1984
      %v2990 = vmul.bf16 %v2942, %v1993
      %v2991 = vmul.bf16 %v2943, %v1994
      %v2993 = vshrl.u32 %v2944, 16
      %v2995 = vrot.slane %v2993, 4
      %v2996 = vshll.u32 %v2944, 16
      %v2998 = vrot.slane %v2996, 5
      %v2999 = vor.u32 %v2995, %v2998
      %v3000 = vrot.slane %v2999, 4
      %v3002 = vshll.u32 %v2945, 16
      %v3004 = vrot.slane %v3002, 5
      %v3005 = vsel %vm2093, %v3000, %v3004
      %v3006 = vshrl.u32 %v2945, 16
      %v3008 = vrot.slane %v3006, 4
      %v3009 = vor.u32 %v3008, %v3004
      %v3010 = vrot.slane %v3009, 4
      %v3012 = vshll.u32 %v2946, 16
      %v3014 = vrot.slane %v3012, 5
      %v3015 = vsel %vm2093, %v3010, %v3014
      %v3017 = vshrl.u32 %v2947, 16
      %v3019 = vrot.slane %v3017, 4
      %v3020 = vshll.u32 %v2947, 16
      %v3022 = vrot.slane %v3020, 5
      %v3023 = vor.u32 %v3019, %v3022
      %v3024 = vrot.slane %v3023, 4
      %v3026 = vshll.u32 %v2948, 16
      %v3028 = vrot.slane %v3026, 5
      %v3029 = vsel %vm2093, %v3024, %v3028
      %v3030 = vshrl.u32 %v2948, 16
      %v3032 = vrot.slane %v3030, 4
      %v3033 = vor.u32 %v3032, %v3028
      %v3034 = vrot.slane %v3033, 4
      %v3036 = vshll.u32 %v2949, 16
      %v3038 = vrot.slane %v3036, 5
      %v3039 = vsel %vm2093, %v3034, %v3038
      %v3041 = vshrl.u32 %v2950, 16
      %v3043 = vrot.slane %v3041, 4
      %v3044 = vshll.u32 %v2950, 16
      %v3046 = vrot.slane %v3044, 5
      %v3047 = vor.u32 %v3043, %v3046
      %v3048 = vrot.slane %v3047, 4
      %v3050 = vshll.u32 %v2951, 16
      %v3052 = vrot.slane %v3050, 5
      %v3053 = vsel %vm2093, %v3048, %v3052
      %v3054 = vshrl.u32 %v2951, 16
      %v3056 = vrot.slane %v3054, 4
      %v3057 = vor.u32 %v3056, %v3052
      %v3058 = vrot.slane %v3057, 4
      %v3060 = vshll.u32 %v2952, 16
      %v3062 = vrot.slane %v3060, 5
      %v3063 = vsel %vm2093, %v3058, %v3062
      %v3065 = vshrl.u32 %v2953, 16
      %v3067 = vrot.slane %v3065, 4
      %v3068 = vshll.u32 %v2953, 16
      %v3070 = vrot.slane %v3068, 5
      %v3071 = vor.u32 %v3067, %v3070
      %v3072 = vrot.slane %v3071, 4
      %v3074 = vshll.u32 %v2954, 16
      %v3076 = vrot.slane %v3074, 5
      %v3077 = vsel %vm2093, %v3072, %v3076
      %v3078 = vshrl.u32 %v2954, 16
      %v3080 = vrot.slane %v3078, 4
      %v3081 = vor.u32 %v3080, %v3076
      %v3082 = vrot.slane %v3081, 4
      %v3084 = vshll.u32 %v2955, 16
      %v3086 = vrot.slane %v3084, 5
      %v3087 = vsel %vm2093, %v3082, %v3086
      %v3089 = vshrl.u32 %v2956, 16
      %v3091 = vrot.slane %v3089, 4
      %v3092 = vshll.u32 %v2956, 16
      %v3094 = vrot.slane %v3092, 5
      %v3095 = vor.u32 %v3091, %v3094
      %v3096 = vrot.slane %v3095, 4
      %v3098 = vshll.u32 %v2957, 16
      %v3100 = vrot.slane %v3098, 5
      %v3101 = vsel %vm2093, %v3096, %v3100
      %v3102 = vshrl.u32 %v2957, 16
      %v3104 = vrot.slane %v3102, 4
      %v3105 = vor.u32 %v3104, %v3100
      %v3106 = vrot.slane %v3105, 4
      %v3108 = vshll.u32 %v2958, 16
      %v3110 = vrot.slane %v3108, 5
      %v3111 = vsel %vm2093, %v3106, %v3110
      %v3113 = vshrl.u32 %v2959, 16
      %v3115 = vrot.slane %v3113, 4
      %v3116 = vshll.u32 %v2959, 16
      %v3118 = vrot.slane %v3116, 5
      %v3119 = vor.u32 %v3115, %v3118
      %v3120 = vrot.slane %v3119, 4
      %v3122 = vshll.u32 %v2960, 16
      %v3124 = vrot.slane %v3122, 5
      %v3125 = vsel %vm2093, %v3120, %v3124
      %v3126 = vshrl.u32 %v2960, 16
      %v3128 = vrot.slane %v3126, 4
      %v3129 = vor.u32 %v3128, %v3124
      %v3130 = vrot.slane %v3129, 4
      %v3132 = vshll.u32 %v2961, 16
      %v3134 = vrot.slane %v3132, 5
      %v3135 = vsel %vm2093, %v3130, %v3134
      %v3137 = vshrl.u32 %v2962, 16
      %v3139 = vrot.slane %v3137, 4
      %v3140 = vshll.u32 %v2962, 16
      %v3142 = vrot.slane %v3140, 5
      %v3143 = vor.u32 %v3139, %v3142
      %v3144 = vrot.slane %v3143, 4
      %v3146 = vshll.u32 %v2963, 16
      %v3148 = vrot.slane %v3146, 5
      %v3149 = vsel %vm2093, %v3144, %v3148
      %v3150 = vshrl.u32 %v2963, 16
      %v3152 = vrot.slane %v3150, 4
      %v3153 = vor.u32 %v3152, %v3148
      %v3154 = vrot.slane %v3153, 4
      %v3156 = vshll.u32 %v2964, 16
      %v3158 = vrot.slane %v3156, 5
      %v3159 = vsel %vm2093, %v3154, %v3158
      %v3161 = vshrl.u32 %v2965, 16
      %v3163 = vrot.slane %v3161, 4
      %v3164 = vshll.u32 %v2965, 16
      %v3166 = vrot.slane %v3164, 5
      %v3167 = vor.u32 %v3163, %v3166
      %v3168 = vrot.slane %v3167, 4
      %v3170 = vshll.u32 %v2966, 16
      %v3172 = vrot.slane %v3170, 5
      %v3173 = vsel %vm2093, %v3168, %v3172
      %v3174 = vshrl.u32 %v2966, 16
      %v3176 = vrot.slane %v3174, 4
      %v3177 = vor.u32 %v3176, %v3172
      %v3178 = vrot.slane %v3177, 4
      %v3180 = vshll.u32 %v2967, 16
      %v3182 = vrot.slane %v3180, 5
      %v3183 = vsel %vm2093, %v3178, %v3182
      %v3185 = vshrl.u32 %v2968, 16
      %v3187 = vrot.slane %v3185, 4
      %v3188 = vshll.u32 %v2968, 16
      %v3190 = vrot.slane %v3188, 5
      %v3191 = vor.u32 %v3187, %v3190
      %v3192 = vrot.slane %v3191, 4
      %v3194 = vshll.u32 %v2969, 16
      %v3196 = vrot.slane %v3194, 5
      %v3197 = vsel %vm2093, %v3192, %v3196
      %v3198 = vshrl.u32 %v2969, 16
      %v3200 = vrot.slane %v3198, 4
      %v3201 = vor.u32 %v3200, %v3196
      %v3202 = vrot.slane %v3201, 4
      %v3204 = vshll.u32 %v2970, 16
      %v3206 = vrot.slane %v3204, 5
      %v3207 = vsel %vm2093, %v3202, %v3206
      %v3209 = vshrl.u32 %v2971, 16
      %v3211 = vrot.slane %v3209, 4
      %v3212 = vshll.u32 %v2971, 16
      %v3214 = vrot.slane %v3212, 5
      %v3215 = vor.u32 %v3211, %v3214
      %v3216 = vrot.slane %v3215, 4
      %v3218 = vshll.u32 %v2972, 16
      %v3220 = vrot.slane %v3218, 5
      %v3221 = vsel %vm2093, %v3216, %v3220
      %v3222 = vshrl.u32 %v2972, 16
      %v3224 = vrot.slane %v3222, 4
      %v3225 = vor.u32 %v3224, %v3220
      %v3226 = vrot.slane %v3225, 4
      %v3228 = vshll.u32 %v2973, 16
      %v3230 = vrot.slane %v3228, 5
      %v3231 = vsel %vm2093, %v3226, %v3230
      %v3233 = vshrl.u32 %v2974, 16
      %v3235 = vrot.slane %v3233, 4
      %v3236 = vshll.u32 %v2974, 16
      %v3238 = vrot.slane %v3236, 5
      %v3239 = vor.u32 %v3235, %v3238
      %v3240 = vrot.slane %v3239, 4
      %v3242 = vshll.u32 %v2975, 16
      %v3244 = vrot.slane %v3242, 5
      %v3245 = vsel %vm2093, %v3240, %v3244
      %v3246 = vshrl.u32 %v2975, 16
      %v3248 = vrot.slane %v3246, 4
      %v3249 = vor.u32 %v3248, %v3244
      %v3250 = vrot.slane %v3249, 4
      %v3252 = vshll.u32 %v2976, 16
      %v3254 = vrot.slane %v3252, 5
      %v3255 = vsel %vm2093, %v3250, %v3254
      %v3257 = vshrl.u32 %v2977, 16
      %v3259 = vrot.slane %v3257, 4
      %v3260 = vshll.u32 %v2977, 16
      %v3262 = vrot.slane %v3260, 5
      %v3263 = vor.u32 %v3259, %v3262
      %v3264 = vrot.slane %v3263, 4
      %v3266 = vshll.u32 %v2978, 16
      %v3268 = vrot.slane %v3266, 5
      %v3269 = vsel %vm2093, %v3264, %v3268
      %v3270 = vshrl.u32 %v2978, 16
      %v3272 = vrot.slane %v3270, 4
      %v3273 = vor.u32 %v3272, %v3268
      %v3274 = vrot.slane %v3273, 4
      %v3276 = vshll.u32 %v2979, 16
      %v3278 = vrot.slane %v3276, 5
      %v3279 = vsel %vm2093, %v3274, %v3278
      %v3281 = vshrl.u32 %v2980, 16
      %v3283 = vrot.slane %v3281, 4
      %v3284 = vshll.u32 %v2980, 16
      %v3286 = vrot.slane %v3284, 5
      %v3287 = vor.u32 %v3283, %v3286
      %v3288 = vrot.slane %v3287, 4
      %v3290 = vshll.u32 %v2981, 16
      %v3292 = vrot.slane %v3290, 5
      %v3293 = vsel %vm2093, %v3288, %v3292
      %v3294 = vshrl.u32 %v2981, 16
      %v3296 = vrot.slane %v3294, 4
      %v3297 = vor.u32 %v3296, %v3292
      %v3298 = vrot.slane %v3297, 4
      %v3300 = vshll.u32 %v2982, 16
      %v3302 = vrot.slane %v3300, 5
      %v3303 = vsel %vm2093, %v3298, %v3302
      %v3305 = vshrl.u32 %v2983, 16
      %v3307 = vrot.slane %v3305, 4
      %v3308 = vshll.u32 %v2983, 16
      %v3310 = vrot.slane %v3308, 5
      %v3311 = vor.u32 %v3307, %v3310
      %v3312 = vrot.slane %v3311, 4
      %v3314 = vshll.u32 %v2984, 16
      %v3316 = vrot.slane %v3314, 5
      %v3317 = vsel %vm2093, %v3312, %v3316
      %v3318 = vshrl.u32 %v2984, 16
      %v3320 = vrot.slane %v3318, 4
      %v3321 = vor.u32 %v3320, %v3316
      %v3322 = vrot.slane %v3321, 4
      %v3324 = vshll.u32 %v2985, 16
      %v3326 = vrot.slane %v3324, 5
      %v3327 = vsel %vm2093, %v3322, %v3326
      %v3329 = vshrl.u32 %v2986, 16
      %v3331 = vrot.slane %v3329, 4
      %v3332 = vshll.u32 %v2986, 16
      %v3334 = vrot.slane %v3332, 5
      %v3335 = vor.u32 %v3331, %v3334
      %v3336 = vrot.slane %v3335, 4
      %v3338 = vshll.u32 %v2987, 16
      %v3340 = vrot.slane %v3338, 5
      %v3341 = vsel %vm2093, %v3336, %v3340
      %v3342 = vshrl.u32 %v2987, 16
      %v3344 = vrot.slane %v3342, 4
      %v3345 = vor.u32 %v3344, %v3340
      %v3346 = vrot.slane %v3345, 4
      %v3348 = vshll.u32 %v2988, 16
      %v3350 = vrot.slane %v3348, 5
      %v3351 = vsel %vm2093, %v3346, %v3350
      %v3353 = vshrl.u32 %v2989, 16
      %v3355 = vrot.slane %v3353, 4
      %v3356 = vshll.u32 %v2989, 16
      %v3358 = vrot.slane %v3356, 5
      %v3359 = vor.u32 %v3355, %v3358
      %v3360 = vrot.slane %v3359, 4
      %v3362 = vshll.u32 %v2990, 16
      %v3364 = vrot.slane %v3362, 5
      %v3365 = vsel %vm2093, %v3360, %v3364
      %v3366 = vshrl.u32 %v2990, 16
      %v3368 = vrot.slane %v3366, 4
      %v3369 = vor.u32 %v3368, %v3364
      %v3370 = vrot.slane %v3369, 4
      %v3372 = vshll.u32 %v2991, 16
      %v3374 = vrot.slane %v3372, 5
      %v3375 = vsel %vm2093, %v3370, %v3374
      %s3376 = scalar_lea.vmem %s4, 60
      %v3377 = vld [vmem:[%s3376] sm:$0xf]
      %v3378 = vld [vmem:[%s3376 + $0x4] sm:$0xf]
      %v3379 = vld [vmem:[%s3376 + $0x8] sm:$0xf]
      %v3380 = vld [vmem:[%s3376 + $0xc] sm:$0xf]
      %v3381 = vld [vmem:[%s3376 + $0x10] sm:$0x3]
      %s3382 = scalar_lea.vmem %s5, 3
      %v3383 = vld [vmem:[%s3382] sm:$0x1]
      %v3385 = vlaneseq
      %v3386 = vshrl.u32 %v3385, 7
      %v3387 = vsub.s32 0, %v3386
      %v3388 = vrot.slane %v3383, %v3387
      %v3390 = vunpack.c.l.b16 %v3005
      %v3391 = vunpack.c.l.b16 %v3015
      %v3392 = vunpack.c.l.b16 %v3029
      %v3393 = vunpack.c.l.b16 %v3039
      %v3394 = vunpack.c.l.b16 %v3053
      %v3395 = vunpack.c.l.b16 %v3063
      %v3396 = vunpack.c.l.b16 %v3077
      %v3397 = vunpack.c.l.b16 %v3087
      %v3398 = vunpack.c.l.b16 %v3101
      %v3399 = vunpack.c.l.b16 %v3111
      %v3400 = vunpack.c.l.b16 %v3125
      %v3401 = vunpack.c.l.b16 %v3135
      %v3402 = vunpack.c.l.b16 %v3149
      %v3403 = vunpack.c.l.b16 %v3159
      %v3404 = vunpack.c.l.b16 %v3173
      %v3405 = vunpack.c.l.b16 %v3183
      %v3406 = vunpack.c.l.b16 %v3197
      %v3407 = vunpack.c.l.b16 %v3207
      %v3408 = vunpack.c.l.b16 %v3221
      %v3409 = vunpack.c.l.b16 %v3231
      %v3410 = vunpack.c.l.b16 %v3245
      %v3411 = vunpack.c.l.b16 %v3255
      %v3412 = vunpack.c.l.b16 %v3269
      %v3413 = vunpack.c.l.b16 %v3279
      %v3414 = vunpack.c.l.b16 %v3293
      %v3415 = vunpack.c.l.b16 %v3303
      %v3416 = vunpack.c.l.b16 %v3317
      %v3417 = vunpack.c.l.b16 %v3327
      %v3418 = vunpack.c.l.b16 %v3341
      %v3419 = vunpack.c.l.b16 %v3351
      %v3420 = vunpack.c.l.b16 %v3365
      %v3421 = vunpack.c.l.b16 %v3375
      %v3422 = vpack.c.b16 %v3391, %v3390
      %v3423 = vpack.c.b16 %v3393, %v3392
      %v3424 = vpack.c.b16 %v3395, %v3394
      %v3425 = vpack.c.b16 %v3397, %v3396
      %v3426 = vpack.c.b16 %v3399, %v3398
      %v3427 = vpack.c.b16 %v3401, %v3400
      %v3428 = vpack.c.b16 %v3403, %v3402
      %v3429 = vpack.c.b16 %v3405, %v3404
      %v3430 = vpack.c.b16 %v3407, %v3406
      %v3431 = vpack.c.b16 %v3409, %v3408
      %v3432 = vpack.c.b16 %v3411, %v3410
      %v3433 = vpack.c.b16 %v3413, %v3412
      %v3434 = vpack.c.b16 %v3415, %v3414
      %v3435 = vpack.c.b16 %v3417, %v3416
      %v3436 = vpack.c.b16 %v3419, %v3418
      %v3437 = vpack.c.b16 %v3421, %v3420
      %v3443 = vunpack.c.l.b16 %v3377
      %v3444 = vunpack.c.l.b16 %v3378
      %v3445 = vunpack.c.l.b16 %v3379
      %v3446 = vunpack.c.l.b16 %v3380
      %v3447 = vunpack.c.l.b16 %v3381
      %v3448 = vpack.c.b16 %v3444, %v3443
      %v3449 = vpack.c.b16 %v3446, %v3445
      %v3450 = vpack.c.b16 %v3447, %v3447
      %v3454 = vsel %vm878, %v3422, 0
      %v3457 = vsel %vm878, %v3423, 0
      %v3460 = vsel %vm878, %v3424, 0
      %v3463 = vsel %vm878, %v3425, 0
      %v3466 = vsel %vm878, %v3426, 0
      %v3469 = vsel %vm878, %v3427, 0
      %v3472 = vsel %vm878, %v3428, 0
      %v3475 = vsel %vm878, %v3429, 0
      %v3478 = vsel %vm878, %v3430, 0
      %v3481 = vsel %vm878, %v3431, 0
      %v3484 = vsel %vm878, %v3432, 0
      %v3487 = vsel %vm878, %v3433, 0
      %v3490 = vsel %vm878, %v3434, 0
      %v3493 = vsel %vm878, %v3435, 0
      %v3496 = vsel %vm878, %v3436, 0
      %v3499 = vsel %vm878, %v3437, 0
      %v3502 = vsel %vm927, %v3450, 0
      %3504 = vmatprep.subr.bf16.mxu0 0
      %3505 = vmatpush1.bf16.msra.mxu0 %v3448
      %3506 = vmatprep.subr.bf16.mxu0 0
      %3507 = vmatpush1.bf16.msra.mxu0 %v3449
      %3508 = vmatprep.subr.bf16.mxu0 0
      %3509 = vmatpush1.bf16.msra.mxu0 %v3502
      %3510 = vmatprep.subr.bf16.mxu0 0
      %3511 = vmatpush1.bf16.msra.mxu0 0
      %3512 = vmatprep.subr.bf16.mxu0 0
      %3513 = vmatpush1.bf16.msra.mxu0 0
      %3514 = vmatprep.subr.bf16.mxu0 0
      %3515 = vmatpush1.bf16.msra.mxu0 0
      %3516 = vmatprep.subr.bf16.mxu0 0
      %3517 = vmatpush1.bf16.msra.mxu0 0
      %3518 = vmatprep.subr.bf16.mxu0 0
      %3519 = vmatpush1.bf16.msra.mxu0 0
      %3520 = vmatprep.subr.bf16.mxu0 0
      %3521 = vmatpush1.bf16.msra.mxu0 0
      %3522 = vmatprep.subr.bf16.mxu0 0
      %3523 = vmatpush1.bf16.msra.mxu0 0
      %3524 = vmatprep.subr.bf16.mxu0 0
      %3525 = vmatpush1.bf16.msra.mxu0 0
      %3526 = vmatprep.subr.bf16.mxu0 0
      %3527 = vmatpush1.bf16.msra.mxu0 0
      %3528 = vmatprep.subr.bf16.mxu0 0
      %3529 = vmatpush1.bf16.msra.mxu0 0
      %3530 = vmatprep.subr.bf16.mxu0 0
      %3531 = vmatpush1.bf16.msra.mxu0 0
      %3532 = vmatprep.subr.bf16.mxu0 0
      %3533 = vmatpush1.bf16.msra.mxu0 0
      %3534 = vmatprep.subr.bf16.mxu0 0
      %3535 = vmatpush1.bf16.msra.mxu0 0
      %3536 = vmatprep.mubr.bf16.mxu0 0
      %3537 = vmatmul.mubr.bf16.gmra.mrb[0].mxu0 %v3454
      %v3538 = vpop.f32.mrb[0].mxu0
      %v3539 = vadd.f32 %v3388, %v3538
      %v3540 = vpop.f32.mrb[0].mxu0
      %v3541 = vpop.f32.mrb[0].mxu0
      %v3542 = vadd.f32 %v3388, %v3541
      %v3543 = vpop.f32.mrb[0].mxu0
      %3544 = vmatprep.mubr.bf16.mxu0 0
      %3545 = vmatmul.mubr.bf16.gmra.mrb[0].mxu0 %v3457
      %v3546 = vpop.f32.mrb[0].mxu0
      %v3547 = vadd.f32 %v3388, %v3546
      %v3548 = vpop.f32.mrb[0].mxu0
      %v3549 = vpop.f32.mrb[0].mxu0
      %v3550 = vadd.f32 %v3388, %v3549
      %v3551 = vpop.f32.mrb[0].mxu0
      %3552 = vmatprep.mubr.bf16.mxu0 0
      %3553 = vmatmul.mubr.bf16.gmra.mrb[0].mxu0 %v3460
      %v3554 = vpop.f32.mrb[0].mxu0
      %v3555 = vadd.f32 %v3388, %v3554
      %v3556 = vpop.f32.mrb[0].mxu0
      %v3557 = vpop.f32.mrb[0].mxu0
      %v3558 = vadd.f32 %v3388, %v3557
      %v3559 = vpop.f32.mrb[0].mxu0
      %3560 = vmatprep.mubr.bf16.mxu0 0
      %3561 = vmatmul.mubr.bf16.gmra.mrb[0].mxu0 %v3463
      %v3562 = vpop.f32.mrb[0].mxu0
      %v3563 = vadd.f32 %v3388, %v3562
      %v3564 = vpop.f32.mrb[0].mxu0
      %v3565 = vpop.f32.mrb[0].mxu0
      %v3566 = vadd.f32 %v3388, %v3565
      %v3567 = vpop.f32.mrb[0].mxu0
      %3568 = vmatprep.mubr.bf16.mxu0 0
      %3569 = vmatmul.mubr.bf16.gmra.mrb[0].mxu0 %v3466
      %v3570 = vpop.f32.mrb[0].mxu0
      %v3571 = vadd.f32 %v3388, %v3570
      %v3572 = vpop.f32.mrb[0].mxu0
      %v3573 = vpop.f32.mrb[0].mxu0
      %v3574 = vadd.f32 %v3388, %v3573
      %v3575 = vpop.f32.mrb[0].mxu0
      %3576 = vmatprep.mubr.bf16.mxu0 0
      %3577 = vmatmul.mubr.bf16.gmra.mrb[0].mxu0 %v3469
      %v3578 = vpop.f32.mrb[0].mxu0
      %v3579 = vadd.f32 %v3388, %v3578
      %v3580 = vpop.f32.mrb[0].mxu0
      %v3581 = vpop.f32.mrb[0].mxu0
      %v3582 = vadd.f32 %v3388, %v3581
      %v3583 = vpop.f32.mrb[0].mxu0
      %3584 = vmatprep.mubr.bf16.mxu0 0
      %3585 = vmatmul.mubr.bf16.gmra.mrb[0].mxu0 %v3472
      %v3586 = vpop.f32.mrb[0].mxu0
      %v3587 = vadd.f32 %v3388, %v3586
      %v3588 = vpop.f32.mrb[0].mxu0
      %v3589 = vpop.f32.mrb[0].mxu0
      %v3590 = vadd.f32 %v3388, %v3589
      %v3591 = vpop.f32.mrb[0].mxu0
      %3592 = vmatprep.mubr.bf16.mxu0 0
      %3593 = vmatmul.mubr.bf16.gmra.mrb[0].mxu0 %v3475
      %v3594 = vpop.f32.mrb[0].mxu0
      %v3595 = vadd.f32 %v3388, %v3594
      %v3596 = vpop.f32.mrb[0].mxu0
      %v3597 = vpop.f32.mrb[0].mxu0
      %v3598 = vadd.f32 %v3388, %v3597
      %v3599 = vpop.f32.mrb[0].mxu0
      %3600 = vmatprep.mubr.bf16.mxu0 0
      %3601 = vmatmul.mubr.bf16.gmra.mrb[0].mxu0 %v3478
      %v3602 = vpop.f32.mrb[0].mxu0
      %v3603 = vadd.f32 %v3388, %v3602
      %v3604 = vpop.f32.mrb[0].mxu0
      %v3605 = vpop.f32.mrb[0].mxu0
      %v3606 = vadd.f32 %v3388, %v3605
      %v3607 = vpop.f32.mrb[0].mxu0
      %3608 = vmatprep.mubr.bf16.mxu0 0
      %3609 = vmatmul.mubr.bf16.gmra.mrb[0].mxu0 %v3481
      %v3610 = vpop.f32.mrb[0].mxu0
      %v3611 = vadd.f32 %v3388, %v3610
      %v3612 = vpop.f32.mrb[0].mxu0
      %v3613 = vpop.f32.mrb[0].mxu0
      %v3614 = vadd.f32 %v3388, %v3613
      %v3615 = vpop.f32.mrb[0].mxu0
      %3616 = vmatprep.mubr.bf16.mxu0 0
      %3617 = vmatmul.mubr.bf16.gmra.mrb[0].mxu0 %v3484
      %v3618 = vpop.f32.mrb[0].mxu0
      %v3619 = vadd.f32 %v3388, %v3618
      %v3620 = vpop.f32.mrb[0].mxu0
      %v3621 = vpop.f32.mrb[0].mxu0
      %v3622 = vadd.f32 %v3388, %v3621
      %v3623 = vpop.f32.mrb[0].mxu0
      %3624 = vmatprep.mubr.bf16.mxu0 0
      %3625 = vmatmul.mubr.bf16.gmra.mrb[0].mxu0 %v3487
      %v3626 = vpop.f32.mrb[0].mxu0
      %v3627 = vadd.f32 %v3388, %v3626
      %v3628 = vpop.f32.mrb[0].mxu0
      %v3629 = vpop.f32.mrb[0].mxu0
      %v3630 = vadd.f32 %v3388, %v3629
      %v3631 = vpop.f32.mrb[0].mxu0
      %3632 = vmatprep.mubr.bf16.mxu0 0
      %3633 = vmatmul.mubr.bf16.gmra.mrb[0].mxu0 %v3490
      %v3634 = vpop.f32.mrb[0].mxu0
      %v3635 = vadd.f32 %v3388, %v3634
      %v3636 = vpop.f32.mrb[0].mxu0
      %v3637 = vpop.f32.mrb[0].mxu0
      %v3638 = vadd.f32 %v3388, %v3637
      %v3639 = vpop.f32.mrb[0].mxu0
      %3640 = vmatprep.mubr.bf16.mxu0 0
      %3641 = vmatmul.mubr.bf16.gmra.mrb[0].mxu0 %v3493
      %v3642 = vpop.f32.mrb[0].mxu0
      %v3643 = vadd.f32 %v3388, %v3642
      %v3644 = vpop.f32.mrb[0].mxu0
      %v3645 = vpop.f32.mrb[0].mxu0
      %v3646 = vadd.f32 %v3388, %v3645
      %v3647 = vpop.f32.mrb[0].mxu0
      %3648 = vmatprep.mubr.bf16.mxu0 0
      %3649 = vmatmul.mubr.bf16.gmra.mrb[0].mxu0 %v3496
      %v3650 = vpop.f32.mrb[0].mxu0
      %v3651 = vadd.f32 %v3388, %v3650
      %v3652 = vpop.f32.mrb[0].mxu0
      %v3653 = vpop.f32.mrb[0].mxu0
      %v3654 = vadd.f32 %v3388, %v3653
      %v3655 = vpop.f32.mrb[0].mxu0
      %3656 = vmatprep.mubr.bf16.mxu0 0
      %3657 = vmatmul.mubr.bf16.gmra.mrb[0].mxu0 %v3499
      %v3658 = vpop.f32.mrb[0].mxu0
      %v3659 = vadd.f32 %v3388, %v3658
      %v3660 = vpop.f32.mrb[0].mxu0
      %v3661 = vpop.f32.mrb[0].mxu0
      %v3662 = vadd.f32 %v3388, %v3661
      %v3663 = vpop.f32.mrb[0].mxu0
      %3664 = vdwg.mxu0
      %v3665 = vmax.f32 %v3539, 0.0
      %v3666 = vmax.f32 %v3542, 0.0
      %v3667 = vmax.f32 %v3547, 0.0
      %v3668 = vmax.f32 %v3550, 0.0
      %v3669 = vmax.f32 %v3555, 0.0
      %v3670 = vmax.f32 %v3558, 0.0
      %v3671 = vmax.f32 %v3563, 0.0
      %v3672 = vmax.f32 %v3566, 0.0
      %v3673 = vmax.f32 %v3571, 0.0
      %v3674 = vmax.f32 %v3574, 0.0
      %v3675 = vmax.f32 %v3579, 0.0
      %v3676 = vmax.f32 %v3582, 0.0
      %v3677 = vmax.f32 %v3587, 0.0
      %v3678 = vmax.f32 %v3590, 0.0
      %v3679 = vmax.f32 %v3595, 0.0
      %v3680 = vmax.f32 %v3598, 0.0
      %v3681 = vmax.f32 %v3603, 0.0
      %v3682 = vmax.f32 %v3606, 0.0
      %v3683 = vmax.f32 %v3611, 0.0
      %v3684 = vmax.f32 %v3614, 0.0
      %v3685 = vmax.f32 %v3619, 0.0
      %v3686 = vmax.f32 %v3622, 0.0
      %v3687 = vmax.f32 %v3627, 0.0
      %v3688 = vmax.f32 %v3630, 0.0
      %v3689 = vmax.f32 %v3635, 0.0
      %v3690 = vmax.f32 %v3638, 0.0
      %v3691 = vmax.f32 %v3643, 0.0
      %v3692 = vmax.f32 %v3646, 0.0
      %v3693 = vmax.f32 %v3651, 0.0
      %v3694 = vmax.f32 %v3654, 0.0
      %v3695 = vmax.f32 %v3659, 0.0
      %v3696 = vmax.f32 %v3662, 0.0
      %v3697 = vpack.c.bf16 %v3666, %v3665
      %v3698 = vpack.c.bf16 %v3668, %v3667
      %v3699 = vpack.c.bf16 %v3670, %v3669
      %v3700 = vpack.c.bf16 %v3672, %v3671
      %v3701 = vpack.c.bf16 %v3674, %v3673
      %v3702 = vpack.c.bf16 %v3676, %v3675
      %v3703 = vpack.c.bf16 %v3678, %v3677
      %v3704 = vpack.c.bf16 %v3680, %v3679
      %v3705 = vpack.c.bf16 %v3682, %v3681
      %v3706 = vpack.c.bf16 %v3684, %v3683
      %v3707 = vpack.c.bf16 %v3686, %v3685
      %v3708 = vpack.c.bf16 %v3688, %v3687
      %v3709 = vpack.c.bf16 %v3690, %v3689
      %v3710 = vpack.c.bf16 %v3692, %v3691
      %v3711 = vpack.c.bf16 %v3694, %v3693
      %v3712 = vpack.c.bf16 %v3696, %v3695
      %3729 = vrot.lane.b32.xlu0 %v3697, 3
      %v3730 = vpop.permute.xlu0 %3729
      %3731 = vrot.lane.b32.xlu0 %v3698, 3
      %v3732 = vpop.permute.xlu0 %3731
      %3733 = vrot.lane.b32.xlu0 %v3699, 3
      %v3734 = vpop.permute.xlu0 %3733
      %3735 = vrot.lane.b32.xlu0 %v3700, 3
      %v3736 = vpop.permute.xlu0 %3735
      %3737 = vrot.lane.b32.xlu0 %v3701, 3
      %v3738 = vpop.permute.xlu0 %3737
      %3739 = vrot.lane.b32.xlu0 %v3702, 3
      %v3740 = vpop.permute.xlu0 %3739
      %3741 = vrot.lane.b32.xlu0 %v3703, 3
      %v3742 = vpop.permute.xlu0 %3741
      %3743 = vrot.lane.b32.xlu0 %v3704, 3
      %v3744 = vpop.permute.xlu0 %3743
      %3745 = vrot.lane.b32.xlu0 %v3705, 3
      %v3746 = vpop.permute.xlu0 %3745
      %3747 = vrot.lane.b32.xlu0 %v3706, 3
      %v3748 = vpop.permute.xlu0 %3747
      %3749 = vrot.lane.b32.xlu0 %v3707, 3
      %v3750 = vpop.permute.xlu0 %3749
      %3751 = vrot.lane.b32.xlu0 %v3708, 3
      %v3752 = vpop.permute.xlu0 %3751
      %3753 = vrot.lane.b32.xlu0 %v3709, 3
      %v3754 = vpop.permute.xlu0 %3753
      %3755 = vrot.lane.b32.xlu0 %v3710, 3
      %v3756 = vpop.permute.xlu0 %3755
      %3757 = vrot.lane.b32.xlu0 %v3711, 3
      %v3758 = vpop.permute.xlu0 %3757
      %3759 = vrot.lane.b32.xlu0 %v3712, 3
      %v3760 = vpop.permute.xlu0 %3759
      %vm3777 = vcmask 31768
      %3778 = vst.msk [vmem:[#allocation2] sm:$0xff] %vm3777, %v3730
      %3779 = vst.msk [vmem:[#allocation2 + $0x8] sm:$0xff] %vm3777, %v3732
      %3780 = vst.msk [vmem:[#allocation2 + $0x10] sm:$0xff] %vm3777, %v3734
      %3781 = vst.msk [vmem:[#allocation2 + $0x18] sm:$0xff] %vm3777, %v3736
      %3782 = vst.msk [vmem:[#allocation2 + $0x20] sm:$0xff] %vm3777, %v3738
      %3783 = vst.msk [vmem:[#allocation2 + $0x28] sm:$0xff] %vm3777, %v3740
      %3784 = vst.msk [vmem:[#allocation2 + $0x30] sm:$0xff] %vm3777, %v3742
      %3785 = vst.msk [vmem:[#allocation2 + $0x38] sm:$0xff] %vm3777, %v3744
      %3786 = vst.msk [vmem:[#allocation2 + $0x40] sm:$0xff] %vm3777, %v3746
      %3787 = vst.msk [vmem:[#allocation2 + $0x48] sm:$0xff] %vm3777, %v3748
      %3788 = vst.msk [vmem:[#allocation2 + $0x50] sm:$0xff] %vm3777, %v3750
      %3789 = vst.msk [vmem:[#allocation2 + $0x58] sm:$0xff] %vm3777, %v3752
      %3790 = vst.msk [vmem:[#allocation2 + $0x60] sm:$0xff] %vm3777, %v3754
      %3791 = vst.msk [vmem:[#allocation2 + $0x68] sm:$0xff] %vm3777, %v3756
      %3792 = vst.msk [vmem:[#allocation2 + $0x70] sm:$0xff] %vm3777, %v3758
      %3793 = vst.msk [vmem:[#allocation2 + $0x78] sm:$0xff] %vm3777, %v3760
      %v3794 = vld [vmem:[#allocation2] sm:$0xff]
      %v3795 = vld [vmem:[#allocation2 + $0x8] sm:$0xff]
      %v3796 = vld [vmem:[#allocation2 + $0x10] sm:$0xff]
      %v3797 = vld [vmem:[#allocation2 + $0x18] sm:$0xff]
      %v3798 = vld [vmem:[#allocation2 + $0x20] sm:$0xff]
      %v3799 = vld [vmem:[#allocation2 + $0x28] sm:$0xff]
      %v3800 = vld [vmem:[#allocation2 + $0x30] sm:$0xff]
      %v3801 = vld [vmem:[#allocation2 + $0x38] sm:$0xff]
      %v3802 = vld [vmem:[#allocation2 + $0x40] sm:$0xff]
      %v3803 = vld [vmem:[#allocation2 + $0x48] sm:$0xff]
      %v3804 = vld [vmem:[#allocation2 + $0x50] sm:$0xff]
      %v3805 = vld [vmem:[#allocation2 + $0x58] sm:$0xff]
      %v3806 = vld [vmem:[#allocation2 + $0x60] sm:$0xff]
      %v3807 = vld [vmem:[#allocation2 + $0x68] sm:$0xff]
      %v3808 = vld [vmem:[#allocation2 + $0x70] sm:$0xff]
      %v3809 = vld [vmem:[#allocation2 + $0x78] sm:$0xff]
      %v3810 = vld [vmem:[%s6] sm:$0x3]
      %v3811 = vld [vmem:[%s7] sm:$0x1]
      %v3813 = vlaneseq
      %v3814 = vshrl.u32 %v3813, 7
      %v3815 = vsub.s32 0, %v3814
      %v3816 = vrot.slane %v3811, %v3815
      %vm3818 = vcmask 31744
      %v3820 = vsel %vm3818, %v3794, 0
      %v3823 = vsel %vm3818, %v3795, 0
      %v3826 = vsel %vm3818, %v3796, 0
      %v3829 = vsel %vm3818, %v3797, 0
      %v3832 = vsel %vm3818, %v3798, 0
      %v3835 = vsel %vm3818, %v3799, 0
      %v3838 = vsel %vm3818, %v3800, 0
      %v3841 = vsel %vm3818, %v3801, 0
      %v3844 = vsel %vm3818, %v3802, 0
      %v3847 = vsel %vm3818, %v3803, 0
      %v3850 = vsel %vm3818, %v3804, 0
      %v3853 = vsel %vm3818, %v3805, 0
      %v3856 = vsel %vm3818, %v3806, 0
      %v3859 = vsel %vm3818, %v3807, 0
      %v3862 = vsel %vm3818, %v3808, 0
      %v3865 = vsel %vm3818, %v3809, 0
      %v3868 = vsel %vm927, %v3810, 0
      %3870 = vmatprep.subr.bf16.mxu0 0
      %3871 = vmatpush1.bf16.msra.mxu0 %v3868
      %3872 = vmatprep.subr.bf16.mxu0 0
      %3873 = vmatpush1.bf16.msra.mxu0 0
      %3874 = vmatprep.subr.bf16.mxu0 0
      %3875 = vmatpush1.bf16.msra.mxu0 0
      %3876 = vmatprep.subr.bf16.mxu0 0
      %3877 = vmatpush1.bf16.msra.mxu0 0
      %3878 = vmatprep.subr.bf16.mxu0 0
      %3879 = vmatpush1.bf16.msra.mxu0 0
      %3880 = vmatprep.subr.bf16.mxu0 0
      %3881 = vmatpush1.bf16.msra.mxu0 0
      %3882 = vmatprep.subr.bf16.mxu0 0
      %3883 = vmatpush1.bf16.msra.mxu0 0
      %3884 = vmatprep.subr.bf16.mxu0 0
      %3885 = vmatpush1.bf16.msra.mxu0 0
      %3886 = vmatprep.subr.bf16.mxu0 0
      %3887 = vmatpush1.bf16.msra.mxu0 0
      %3888 = vmatprep.subr.bf16.mxu0 0
      %3889 = vmatpush1.bf16.msra.mxu0 0
      %3890 = vmatprep.subr.bf16.mxu0 0
      %3891 = vmatpush1.bf16.msra.mxu0 0
      %3892 = vmatprep.subr.bf16.mxu0 0
      %3893 = vmatpush1.bf16.msra.mxu0 0
      %3894 = vmatprep.subr.bf16.mxu0 0
      %3895 = vmatpush1.bf16.msra.mxu0 0
      %3896 = vmatprep.subr.bf16.mxu0 0
      %3897 = vmatpush1.bf16.msra.mxu0 0
      %3898 = vmatprep.subr.bf16.mxu0 0
      %3899 = vmatpush1.bf16.msra.mxu0 0
      %3900 = vmatprep.subr.bf16.mxu0 0
      %3901 = vmatpush1.bf16.msra.mxu0 0
      %3902 = vmatprep.mubr.bf16.mxu0 0
      %3903 = vmatmul.mubr.bf16.gmra.mrb[0].mxu0 %v3820
      %v3904 = vpop.f32.mrb[0].mxu0
      %v3905 = vadd.f32 %v3816, %v3904
      %v3906 = vpop.f32.mrb[0].mxu0
      %v3907 = vpop.f32.mrb[0].mxu0
      %v3908 = vadd.f32 %v3816, %v3907
      %v3909 = vpop.f32.mrb[0].mxu0
      %3910 = vmatprep.mubr.bf16.mxu0 0
      %3911 = vmatmul.mubr.bf16.gmra.mrb[0].mxu0 %v3823
      %v3912 = vpop.f32.mrb[0].mxu0
      %v3913 = vadd.f32 %v3816, %v3912
      %v3914 = vpop.f32.mrb[0].mxu0
      %v3915 = vpop.f32.mrb[0].mxu0
      %v3916 = vadd.f32 %v3816, %v3915
      %v3917 = vpop.f32.mrb[0].mxu0
      %3918 = vmatprep.mubr.bf16.mxu0 0
      %3919 = vmatmul.mubr.bf16.gmra.mrb[0].mxu0 %v3826
      %v3920 = vpop.f32.mrb[0].mxu0
      %v3921 = vadd.f32 %v3816, %v3920
      %v3922 = vpop.f32.mrb[0].mxu0
      %v3923 = vpop.f32.mrb[0].mxu0
      %v3924 = vadd.f32 %v3816, %v3923
      %v3925 = vpop.f32.mrb[0].mxu0
      %3926 = vmatprep.mubr.bf16.mxu0 0
      %3927 = vmatmul.mubr.bf16.gmra.mrb[0].mxu0 %v3829
      %v3928 = vpop.f32.mrb[0].mxu0
      %v3929 = vadd.f32 %v3816, %v3928
      %v3930 = vpop.f32.mrb[0].mxu0
      %v3931 = vpop.f32.mrb[0].mxu0
      %v3932 = vadd.f32 %v3816, %v3931
      %v3933 = vpop.f32.mrb[0].mxu0
      %3934 = vmatprep.mubr.bf16.mxu0 0
      %3935 = vmatmul.mubr.bf16.gmra.mrb[0].mxu0 %v3832
      %v3936 = vpop.f32.mrb[0].mxu0
      %v3937 = vadd.f32 %v3816, %v3936
      %v3938 = vpop.f32.mrb[0].mxu0
      %v3939 = vpop.f32.mrb[0].mxu0
      %v3940 = vadd.f32 %v3816, %v3939
      %v3941 = vpop.f32.mrb[0].mxu0
      %3942 = vmatprep.mubr.bf16.mxu0 0
      %3943 = vmatmul.mubr.bf16.gmra.mrb[0].mxu0 %v3835
      %v3944 = vpop.f32.mrb[0].mxu0
      %v3945 = vadd.f32 %v3816, %v3944
      %v3946 = vpop.f32.mrb[0].mxu0
      %v3947 = vpop.f32.mrb[0].mxu0
      %v3948 = vadd.f32 %v3816, %v3947
      %v3949 = vpop.f32.mrb[0].mxu0
      %3950 = vmatprep.mubr.bf16.mxu0 0
      %3951 = vmatmul.mubr.bf16.gmra.mrb[0].mxu0 %v3838
      %v3952 = vpop.f32.mrb[0].mxu0
      %v3953 = vadd.f32 %v3816, %v3952
      %v3954 = vpop.f32.mrb[0].mxu0
      %v3955 = vpop.f32.mrb[0].mxu0
      %v3956 = vadd.f32 %v3816, %v3955
      %v3957 = vpop.f32.mrb[0].mxu0
      %3958 = vmatprep.mubr.bf16.mxu0 0
      %3959 = vmatmul.mubr.bf16.gmra.mrb[0].mxu0 %v3841
      %v3960 = vpop.f32.mrb[0].mxu0
      %v3961 = vadd.f32 %v3816, %v3960
      %v3962 = vpop.f32.mrb[0].mxu0
      %v3963 = vpop.f32.mrb[0].mxu0
      %v3964 = vadd.f32 %v3816, %v3963
      %v3965 = vpop.f32.mrb[0].mxu0
      %3966 = vmatprep.mubr.bf16.mxu0 0
      %3967 = vmatmul.mubr.bf16.gmra.mrb[0].mxu0 %v3844
      %v3968 = vpop.f32.mrb[0].mxu0
      %v3969 = vadd.f32 %v3816, %v3968
      %v3970 = vpop.f32.mrb[0].mxu0
      %v3971 = vpop.f32.mrb[0].mxu0
      %v3972 = vadd.f32 %v3816, %v3971
      %v3973 = vpop.f32.mrb[0].mxu0
      %3974 = vmatprep.mubr.bf16.mxu0 0
      %3975 = vmatmul.mubr.bf16.gmra.mrb[0].mxu0 %v3847
      %v3976 = vpop.f32.mrb[0].mxu0
      %v3977 = vadd.f32 %v3816, %v3976
      %v3978 = vpop.f32.mrb[0].mxu0
      %v3979 = vpop.f32.mrb[0].mxu0
      %v3980 = vadd.f32 %v3816, %v3979
      %v3981 = vpop.f32.mrb[0].mxu0
      %3982 = vmatprep.mubr.bf16.mxu0 0
      %3983 = vmatmul.mubr.bf16.gmra.mrb[0].mxu0 %v3850
      %v3984 = vpop.f32.mrb[0].mxu0
      %v3985 = vadd.f32 %v3816, %v3984
      %v3986 = vpop.f32.mrb[0].mxu0
      %v3987 = vpop.f32.mrb[0].mxu0
      %v3988 = vadd.f32 %v3816, %v3987
      %v3989 = vpop.f32.mrb[0].mxu0
      %3990 = vmatprep.mubr.bf16.mxu0 0
      %3991 = vmatmul.mubr.bf16.gmra.mrb[0].mxu0 %v3853
      %v3992 = vpop.f32.mrb[0].mxu0
      %v3993 = vadd.f32 %v3816, %v3992
      %v3994 = vpop.f32.mrb[0].mxu0
      %v3995 = vpop.f32.mrb[0].mxu0
      %v3996 = vadd.f32 %v3816, %v3995
      %v3997 = vpop.f32.mrb[0].mxu0
      %3998 = vmatprep.mubr.bf16.mxu0 0
      %3999 = vmatmul.mubr.bf16.gmra.mrb[0].mxu0 %v3856
      %v4000 = vpop.f32.mrb[0].mxu0
      %v4001 = vadd.f32 %v3816, %v4000
      %v4002 = vpop.f32.mrb[0].mxu0
      %v4003 = vpop.f32.mrb[0].mxu0
      %v4004 = vadd.f32 %v3816, %v4003
      %v4005 = vpop.f32.mrb[0].mxu0
      %4006 = vmatprep.mubr.bf16.mxu0 0
      %4007 = vmatmul.mubr.bf16.gmra.mrb[0].mxu0 %v3859
      %v4008 = vpop.f32.mrb[0].mxu0
      %v4009 = vadd.f32 %v3816, %v4008
      %v4010 = vpop.f32.mrb[0].mxu0
      %v4011 = vpop.f32.mrb[0].mxu0
      %v4012 = vadd.f32 %v3816, %v4011
      %v4013 = vpop.f32.mrb[0].mxu0
      %4014 = vmatprep.mubr.bf16.mxu0 0
      %4015 = vmatmul.mubr.bf16.gmra.mrb[0].mxu0 %v3862
      %v4016 = vpop.f32.mrb[0].mxu0
      %v4017 = vadd.f32 %v3816, %v4016
      %v4018 = vpop.f32.mrb[0].mxu0
      %v4019 = vpop.f32.mrb[0].mxu0
      %v4020 = vadd.f32 %v3816, %v4019
      %v4021 = vpop.f32.mrb[0].mxu0
      %4022 = vmatprep.mubr.bf16.mxu0 0
      %4023 = vmatmul.mubr.bf16.gmra.mrb[0].mxu0 %v3865
      %v4024 = vpop.f32.mrb[0].mxu0
      %v4025 = vadd.f32 %v3816, %v4024
      %v4026 = vpop.f32.mrb[0].mxu0
      %v4027 = vpop.f32.mrb[0].mxu0
      %v4028 = vadd.f32 %v3816, %v4027
      %v4029 = vpop.f32.mrb[0].mxu0
      %4030 = vdwg.mxu0
      %v4031 = vmax.f32 %v3905, 0.0
      %v4032 = vmax.f32 %v3908, 0.0
      %v4033 = vmax.f32 %v3913, 0.0
      %v4034 = vmax.f32 %v3916, 0.0
      %v4035 = vmax.f32 %v3921, 0.0
      %v4036 = vmax.f32 %v3924, 0.0
      %v4037 = vmax.f32 %v3929, 0.0
      %v4038 = vmax.f32 %v3932, 0.0
      %v4039 = vmax.f32 %v3937, 0.0
      %v4040 = vmax.f32 %v3940, 0.0
      %v4041 = vmax.f32 %v3945, 0.0
      %v4042 = vmax.f32 %v3948, 0.0
      %v4043 = vmax.f32 %v3953, 0.0
      %v4044 = vmax.f32 %v3956, 0.0
      %v4045 = vmax.f32 %v3961, 0.0
      %v4046 = vmax.f32 %v3964, 0.0
      %v4047 = vmax.f32 %v3969, 0.0
      %v4048 = vmax.f32 %v3972, 0.0
      %v4049 = vmax.f32 %v3977, 0.0
      %v4050 = vmax.f32 %v3980, 0.0
      %v4051 = vmax.f32 %v3985, 0.0
      %v4052 = vmax.f32 %v3988, 0.0
      %v4053 = vmax.f32 %v3993, 0.0
      %v4054 = vmax.f32 %v3996, 0.0
      %v4055 = vmax.f32 %v4001, 0.0
      %v4056 = vmax.f32 %v4004, 0.0
      %v4057 = vmax.f32 %v4009, 0.0
      %v4058 = vmax.f32 %v4012, 0.0
      %v4059 = vmax.f32 %v4017, 0.0
      %v4060 = vmax.f32 %v4020, 0.0
      %v4061 = vmax.f32 %v4025, 0.0
      %v4062 = vmax.f32 %v4028, 0.0
      %v4063 = vpack.c.bf16 %v4032, %v4031
      %v4064 = vpack.c.bf16 %v4034, %v4033
      %v4065 = vpack.c.bf16 %v4036, %v4035
      %v4066 = vpack.c.bf16 %v4038, %v4037
      %v4067 = vpack.c.bf16 %v4040, %v4039
      %v4068 = vpack.c.bf16 %v4042, %v4041
      %v4069 = vpack.c.bf16 %v4044, %v4043
      %v4070 = vpack.c.bf16 %v4046, %v4045
      %v4071 = vpack.c.bf16 %v4048, %v4047
      %v4072 = vpack.c.bf16 %v4050, %v4049
      %v4073 = vpack.c.bf16 %v4052, %v4051
      %v4074 = vpack.c.bf16 %v4054, %v4053
      %v4075 = vpack.c.bf16 %v4056, %v4055
      %v4076 = vpack.c.bf16 %v4058, %v4057
      %v4077 = vpack.c.bf16 %v4060, %v4059
      %v4078 = vpack.c.bf16 %v4062, %v4061
      %v4095 = vunpack.c.l.b16 %v4063
      %v4096 = vunpack.c.h.b16 %v4063
      %v4097 = vunpack.c.l.b16 %v4064
      %v4098 = vunpack.c.h.b16 %v4064
      %v4099 = vunpack.c.l.b16 %v4065
      %v4100 = vunpack.c.h.b16 %v4065
      %v4101 = vunpack.c.l.b16 %v4066
      %v4102 = vunpack.c.h.b16 %v4066
      %v4103 = vunpack.c.l.b16 %v4067
      %v4104 = vunpack.c.h.b16 %v4067
      %v4105 = vunpack.c.l.b16 %v4068
      %v4106 = vunpack.c.h.b16 %v4068
      %v4107 = vunpack.c.l.b16 %v4069
      %v4108 = vunpack.c.h.b16 %v4069
      %v4109 = vunpack.c.l.b16 %v4070
      %v4110 = vunpack.c.h.b16 %v4070
      %v4111 = vunpack.c.l.b16 %v4071
      %v4112 = vunpack.c.h.b16 %v4071
      %v4113 = vunpack.c.l.b16 %v4072
      %v4114 = vunpack.c.h.b16 %v4072
      %v4115 = vunpack.c.l.b16 %v4073
      %v4116 = vunpack.c.h.b16 %v4073
      %v4117 = vunpack.c.l.b16 %v4074
      %v4118 = vunpack.c.h.b16 %v4074
      %v4119 = vunpack.c.l.b16 %v4075
      %v4120 = vunpack.c.h.b16 %v4075
      %v4121 = vunpack.c.l.b16 %v4076
      %v4122 = vunpack.c.h.b16 %v4076
      %v4123 = vunpack.c.l.b16 %v4077
      %v4124 = vunpack.c.h.b16 %v4077
      %v4125 = vunpack.c.l.b16 %v4078
      %v4126 = vunpack.c.h.b16 %v4078
      %v4127 = vpack.c.b16 %v4095, %v4095
      %v4128 = vpack.c.b16 %v4096, %v4096
      %v4129 = vpack.c.b16 %v4097, %v4097
      %v4130 = vpack.c.b16 %v4098, %v4098
      %v4131 = vpack.c.b16 %v4099, %v4099
      %v4132 = vpack.c.b16 %v4100, %v4100
      %v4133 = vpack.c.b16 %v4101, %v4101
      %v4134 = vpack.c.b16 %v4102, %v4102
      %v4135 = vpack.c.b16 %v4103, %v4103
      %v4136 = vpack.c.b16 %v4104, %v4104
      %v4137 = vpack.c.b16 %v4105, %v4105
      %v4138 = vpack.c.b16 %v4106, %v4106
      %v4139 = vpack.c.b16 %v4107, %v4107
      %v4140 = vpack.c.b16 %v4108, %v4108
      %v4141 = vpack.c.b16 %v4109, %v4109
      %v4142 = vpack.c.b16 %v4110, %v4110
      %v4143 = vpack.c.b16 %v4111, %v4111
      %v4144 = vpack.c.b16 %v4112, %v4112
      %v4145 = vpack.c.b16 %v4113, %v4113
      %v4146 = vpack.c.b16 %v4114, %v4114
      %v4147 = vpack.c.b16 %v4115, %v4115
      %v4148 = vpack.c.b16 %v4116, %v4116
      %v4149 = vpack.c.b16 %v4117, %v4117
      %v4150 = vpack.c.b16 %v4118, %v4118
      %v4151 = vpack.c.b16 %v4119, %v4119
      %v4152 = vpack.c.b16 %v4120, %v4120
      %v4153 = vpack.c.b16 %v4121, %v4121
      %v4154 = vpack.c.b16 %v4122, %v4122
      %v4155 = vpack.c.b16 %v4123, %v4123
      %v4156 = vpack.c.b16 %v4124, %v4124
      %v4157 = vpack.c.b16 %v4125, %v4125
      %v4158 = vpack.c.b16 %v4126, %v4126
      %vm4191 = vcmask 60416
      %4192 = vst.msk [vmem:[%s441] sm:$0xf] %vm4191, %v4127
      %4193 = vst.msk [vmem:[%s441 + $0x4] sm:$0xf] %vm4191, %v4128
      %4194 = vst.msk [vmem:[%s441 + $0x8] sm:$0xf] %vm4191, %v4129
      %4195 = vst.msk [vmem:[%s441 + $0xc] sm:$0xf] %vm4191, %v4130
      %4196 = vst.msk [vmem:[%s441 + $0x10] sm:$0xf] %vm4191, %v4131
      %4197 = vst.msk [vmem:[%s441 + $0x14] sm:$0xf] %vm4191, %v4132
      %4198 = vst.msk [vmem:[%s441 + $0x18] sm:$0xf] %vm4191, %v4133
      %4199 = vst.msk [vmem:[%s441 + $0x1c] sm:$0xf] %vm4191, %v4134
      %4200 = vst.msk [vmem:[%s441 + $0x20] sm:$0xf] %vm4191, %v4135
      %4201 = vst.msk [vmem:[%s441 + $0x24] sm:$0xf] %vm4191, %v4136
      %4202 = vst.msk [vmem:[%s441 + $0x28] sm:$0xf] %vm4191, %v4137
      %4203 = vst.msk [vmem:[%s441 + $0x2c] sm:$0xf] %vm4191, %v4138
      %4204 = vst.msk [vmem:[%s441 + $0x30] sm:$0xf] %vm4191, %v4139
      %4205 = vst.msk [vmem:[%s441 + $0x34] sm:$0xf] %vm4191, %v4140
      %4206 = vst.msk [vmem:[%s441 + $0x38] sm:$0xf] %vm4191, %v4141
      %4207 = vst.msk [vmem:[%s441 + $0x3c] sm:$0xf] %vm4191, %v4142
      %4208 = vst.msk [vmem:[%s441 + $0x40] sm:$0xf] %vm4191, %v4143
      %4209 = vst.msk [vmem:[%s441 + $0x44] sm:$0xf] %vm4191, %v4144
      %4210 = vst.msk [vmem:[%s441 + $0x48] sm:$0xf] %vm4191, %v4145
      %4211 = vst.msk [vmem:[%s441 + $0x4c] sm:$0xf] %vm4191, %v4146
      %4212 = vst.msk [vmem:[%s441 + $0x50] sm:$0xf] %vm4191, %v4147
      %4213 = vst.msk [vmem:[%s441 + $0x54] sm:$0xf] %vm4191, %v4148
      %4214 = vst.msk [vmem:[%s441 + $0x58] sm:$0xf] %vm4191, %v4149
      %4215 = vst.msk [vmem:[%s441 + $0x5c] sm:$0xf] %vm4191, %v4150
      %4216 = vst.msk [vmem:[%s441 + $0x60] sm:$0xf] %vm4191, %v4151
      %4217 = vst.msk [vmem:[%s441 + $0x64] sm:$0xf] %vm4191, %v4152
      %4218 = vst.msk [vmem:[%s441 + $0x68] sm:$0xf] %vm4191, %v4153
      %4219 = vst.msk [vmem:[%s441 + $0x6c] sm:$0xf] %vm4191, %v4154
      %4220 = vst.msk [vmem:[%s441 + $0x70] sm:$0xf] %vm4191, %v4155
      %4221 = vst.msk [vmem:[%s441 + $0x74] sm:$0xf] %vm4191, %v4156
      %4222 = vst.msk [vmem:[%s441 + $0x78] sm:$0xf] %vm4191, %v4157
      %4223 = vst.msk [vmem:[%s441 + $0x7c] sm:$0xf] %vm4191, %v4158
      %p4224 = scmp.lt.s32.totalorder %s23, 1
      %s4225 = scalar_select %p4224, %s23, 1
      %p4226 = scmp.lt.s32.totalorder %s24, 0
      %s4227 = scalar_select %p4226, %s24, 0
      %s4228 = smul.addr %s4227, 32
      %s4229 = smul.addr %s4225, 32
      %s4230 = sadd.s32 %s4228, %s4229
      %s4231 = smul.addr %s4230, 4
      %s4232 = scalar_lea.vmem %s8, %s4231
      // Predicated region
      $region53: #{tlconv_forward.1} parent=51 // pred_check
        %p4233 = pneg %p242
      $region54: #{tlconv_forward.1} parent=51 // pred_check_branch
        %4235 = sbr.rel (%p4233) target = $region56
      $region55: #{tlconv_forward.1} parent=51 // pred_region
        _
      $region56: #{tlconv_forward.1} parent=51 // pred_fallthru
        _
    $region52: #{tlconv_forward.1} parent=5 // pred_fallthru
      _
    %p4236 = scmp.le.s32.totalorder 2, %s14
    // Predicated region
    $region57: #{tlconv_forward.1} parent=5 // pred_check
      %p4237 = pneg %p4236
    $region58: #{tlconv_forward.1} parent=5 // pred_check_branch
      %4239 = sbr.rel (%p4237) target = $region60
    $region59: #{tlconv_forward.1} parent=5 // pred_region
      %s4240 = ssub.s32 %s14, 2
      // Predicated region
      $region61: #{tlconv_forward.1} parent=59 // pred_check
        %p4241 = pneg %p248
      $region62: #{tlconv_forward.1} parent=59 // pred_check_branch
        %4243 = sbr.rel (%p4241) target = $region64
      $region63: #{tlconv_forward.1} parent=59 // pred_region
        %p4244 = scmp.lt.s32.totalorder %s25, 1
        %s4245 = scalar_select %p4244, %s25, 1
        %p4246 = scmp.lt.s32.totalorder %s26, 0
        %s4247 = scalar_select %p4246, %s26, 0
        %s4248 = smul.addr %s4247, 32
        %s4249 = smul.addr %s4245, 32
        %s4250 = sadd.s32 %s4248, %s4249
        %s4251 = smul.addr %s4250, 4
        %s4252 = scalar_lea.vmem %s8, %s4251
      $region64: #{tlconv_forward.1} parent=59 // pred_fallthru
        _
    $region60: #{tlconv_forward.1} parent=5 // pred_fallthru
      _
  $region6: #{tlconv_forward.1} parent=0 // loop_footer
    %s18 = sadd.s32 1, %s14
  $region7: #{tlconv_forward.1} parent=0 // loop_footer_branch
    %13 = sbr.rel target = $region3
  $region8: #{tlconv_forward.1} parent=0 // loop_exit
    _

</llo_original>
